<compile_context>
chip_gen: v6e
topology: v6e:2x2x1
jax: 0.10.0
libtpu: 0.0.40
codegen_flags: <defaults>
</compile_context>

<pallas_src>
import functools
import math

import jax
import jax.numpy as jnp
from jax import lax
from jax.experimental import pallas as pl
from jax.experimental.pallas import tpu as pltpu

# ---------------------------------------------------------------------------
# Fixed light / half vectors for the synthetic shading model (python constants)
# ---------------------------------------------------------------------------
_l = (0.3, 0.3, 0.9)
_ln = math.sqrt(sum(c * c for c in _l))
LIGHT = tuple(c / _ln for c in _l)
_h = (LIGHT[0], LIGHT[1], LIGHT[2] + 1.0)
_hn = math.sqrt(sum(c * c for c in _h))
HALF = tuple(c / _hn for c in _h)


def _vmem_limit_bytes(in_block_bytes, out_block_bytes, live_bytes):
    """Real requirement (2x in + 2x out blocks + live intermediates + headroom),
    capped per TPU generation instead of a hard-coded clamp."""
    need = 2 * in_block_bytes + 2 * out_block_bytes + live_bytes + (4 << 20)
    try:
        cap = int(pltpu.get_tpu_info().vmem_capacity_bytes) * 7 // 8
    except Exception:  # pragma: no cover - conservative fallback (v7x-safe)
        cap = 48 << 20
    return int(min(max(need, 16 << 20), cap))


# ---------------------------------------------------------------------------
# Fused Pallas kernel: depth conv + gradients + shading attrs + shading conv
# ---------------------------------------------------------------------------
def _deprocams_kernel(wd_ref, ws_ref, ip_ref, s_ref,
                      ic_ref, n_ref, diff_ref, mask_ref, depth_ref,
                      *, H, W, use_rough, light, half):
    f32 = jnp.float32
    row_idx = lax.broadcasted_iota(jnp.int32, (H, W), 0)
    col_idx = lax.broadcasted_iota(jnp.int32, (H, W), 1)
    not_last_col = col_idx < (W - 1)
    not_first_col = col_idx >= 1
    not_last_row = row_idx < (H - 1)
    not_first_row = row_idx >= 1

    # zero-halo shifted views via XLU rolls + VPU masks (no padded buffers,
    # no unaligned slices).
    def shift_cols(x):
        left = jnp.where(not_first_col, pltpu.roll(x, 1 % W, axis=1), 0.0)       # x[., c-1]
        right = jnp.where(not_last_col, pltpu.roll(x, (W - 1) % W, axis=1), 0.0)  # x[., c+1]
        return (left, x, right)          # indexed by kx = dx + 1

    def shift_rows(x, dy):
        if dy == 0:
            return x
        if dy == 1:                                                              # x[r+1, .]
            return jnp.where(not_last_row, pltpu.roll(x, (H - 1) % H, axis=0), 0.0)
        return jnp.where(not_first_row, pltpu.roll(x, 1 % H, axis=0), 0.0)       # x[r-1, .]

    def conv3x3(chans, w_ref, cout):
        """Direct 3x3 SAME conv over a list of (H, W) channel arrays.
        Flat weight layout: (cout, cin, 3, 3) row-major, then cout biases."""
        cin = len(chans)
        nw = cout * cin * 9
        accs = [jnp.zeros((H, W), f32) + w_ref[nw + co] for co in range(cout)]
        for ci, x in enumerate(chans):
            cols = shift_cols(x)                 # hoisted kx shifts, reused over ky
            for ky, dy in enumerate((-1, 0, 1)):
                for kx in range(3):
                    tap = shift_rows(cols[kx], dy)
                    for co in range(cout):
                        w = w_ref[((co * cin + ci) * 3 + ky) * 3 + kx]
                        accs[co] = accs[co] + w * tap
        return accs

    # --- load inputs once; reused by both convs and the diffuse term ---------
    ip = [ip_ref[0, c, :, :] for c in range(3)]
    sc = [s_ref[0, c, :, :] for c in range(3)]

    # --- depth conv (6 -> 1) --------------------------------------------------
    (depth,) = conv3x3(ip + sc, wd_ref, 1)
    depth_ref[0, :, :] = depth

    # --- forward-difference gradients, zero at the far border (roll + mask) ---
    dzdx = jnp.where(not_last_col, pltpu.roll(depth, (W - 1) % W, axis=1) - depth, 0.0)
    dzdy = jnp.where(not_last_row, pltpu.roll(depth, (H - 1) % H, axis=0) - depth, 0.0)

    # --- normals ---------------------------------------------------------------
    nx = -dzdx
    ny = -dzdy
    nz = jnp.ones((H, W), f32)
    inv_norm = lax.rsqrt(nx * nx + ny * ny + nz * nz)
    nx = nx * inv_norm
    ny = ny * inv_norm
    nz = nz * inv_norm
    n_ref[0, 0, :, :] = nx
    n_ref[0, 1, :, :] = ny
    n_ref[0, 2, :, :] = nz

    # --- Lambertian diffuse / Blinn-Phong specular / direct-light mask --------
    lx, ly, lz = light
    ndotl = jnp.maximum(nx * lx + ny * ly + nz * lz, 0.0)
    diff = [ip[c] * ndotl for c in range(3)]
    for c in range(3):
        diff_ref[0, c, :, :] = diff[c]
    mask_ref[0, 0, :, :] = (ndotl > 0.0).astype(f32)

    # --- fused shading_net conv + sigmoid (no HBM round trip for diff/spec) ---
    if use_rough:
        hx, hy, hz = half
        ndoth = jnp.maximum(nx * hx + ny * hy + nz * hz, 0.0)
        spec = ndoth
        for _ in range(5):                       # ndoth ** 32, VMEM/vreg only
            spec = spec * spec
        shade_in = ip + sc + diff + [spec]       # 10 ch (3 spec weights pre-summed host-side)
    else:
        shade_in = ip + sc                       # 6 ch
    accs = conv3x3(shade_in, ws_ref, 3)
    for co in range(3):
        ic_ref[0, co, :, :] = jax.nn.sigmoid(accs[co])


def _deprocams_call(wd_flat, ws_flat, Ip, s, *, use_rough):
    N, C, H, W = Ip.shape
    kern = functools.partial(_deprocams_kernel, H=H, W=W, use_rough=use_rough,
                             light=LIGHT, half=HALF)
    in_block_bytes = 4 * (2 * C) * H * W                      # Ip + s blocks
    out_block_bytes = 4 * 11 * H * W                          # Ic+n+diff+mask+depth
    live_bytes = 4 * 32 * H * W                               # in-flight intermediates
    out_shapes = (
        jax.ShapeDtypeStruct((N, 3, H, W), jnp.float32),      # Ic
        jax.ShapeDtypeStruct((N, 3, H, W), jnp.float32),      # normals
        jax.ShapeDtypeStruct((N, 3, H, W), jnp.float32),      # Ic_diff
        jax.ShapeDtypeStruct((N, 1, H, W), jnp.float32),      # dl_mask
        jax.ShapeDtypeStruct((N, H, W), jnp.float32),         # depth
    )
    return pl.pallas_call(
        kern,
        out_shape=out_shapes,
        grid=(N,),
        in_specs=[
            pl.BlockSpec(memory_space=pltpu.MemorySpace.SMEM),    # depth conv w+b
            pl.BlockSpec(memory_space=pltpu.MemorySpace.SMEM),    # shading conv w+b
            pl.BlockSpec((1, C, H, W), lambda b: (b, 0, 0, 0)),   # Ip (un-padded)
            pl.BlockSpec((1, C, H, W), lambda b: (b, 0, 0, 0)),   # s  (un-padded)
        ],
        out_specs=(
            pl.BlockSpec((1, 3, H, W), lambda b: (b, 0, 0, 0)),
            pl.BlockSpec((1, 3, H, W), lambda b: (b, 0, 0, 0)),
            pl.BlockSpec((1, 3, H, W), lambda b: (b, 0, 0, 0)),
            pl.BlockSpec((1, 1, H, W), lambda b: (b, 0, 0, 0)),
            pl.BlockSpec((1, H, W), lambda b: (b, 0, 0)),
        ),
        compiler_params=pltpu.CompilerParams(
            dimension_semantics=("parallel",),
            vmem_limit_bytes=_vmem_limit_bytes(in_block_bytes, out_block_bytes,
                                               live_bytes)),
    )(wd_flat, ws_flat, Ip, s)


# ---------------------------------------------------------------------------
# DeProCams.forward (depth_to_attribute + shading_net composition)
# ---------------------------------------------------------------------------
def deprocams_forward(params, opt, Ip, s):
    N, C, H, W = Ip.shape
    use_rough = "No_rough" not in opt

    wd_flat = jnp.concatenate([params["w_depth"].reshape(-1),
                               params["b_depth"].reshape(-1)])
    if use_rough:
        # The synthetic 12-ch shading conv feeds 3 identical specular channels;
        # folding their weights into one channel is numerically identical and
        # lets the kernel keep a single (N,1-free) spec map in VMEM only.
        w = params["w_shade"]
        w_eff = jnp.concatenate([w[:, :9],
                                 jnp.sum(w[:, 9:12], axis=1, keepdims=True)], axis=1)
        ws_flat = jnp.concatenate([w_eff.reshape(-1),
                                   params["b_shade"].reshape(-1)])
    else:
        ws_flat = jnp.concatenate([params["w_shade_nr"].reshape(-1),
                                   params["b_shade_nr"].reshape(-1)])

    Ic, n, Ic_diff, dl_mask, depth = _deprocams_call(
        wd_flat, ws_flat, Ip, s, use_rough=use_rough)

    # projector 2D sampling points: identity grid in [-1, 1] + depth offset
    ys = jnp.linspace(-1.0, 1.0, H)
    xs = jnp.linspace(-1.0, 1.0, W)
    gy, gx = jnp.meshgrid(ys, xs, indexing="ij")
    base = jnp.stack([gx, gy], axis=-1)[None]                 # (1, H, W, 2)
    prj_pts2d = base + 0.05 * depth[..., None]                # (N, H, W, 2)

    # TODO(synk): the projective warp of Ip via grid_sample(prj_pts2d) has no
    # clean Pallas equivalent here; Ip is consumed/returned un-warped.
    return Ic, n[0, None], prj_pts2d, Ic_diff, dl_mask


def init_params(key):
    k1, k2, k3 = jax.random.split(key, 3)
    return {
        # (cout, cin, 3, 3) conv weights, biases appended when flattened
        "w_depth": 0.05 * jax.random.normal(k1, (1, 6, 3, 3), jnp.float32),
        "b_depth": jnp.zeros((1,), jnp.float32),
        "w_shade": 0.05 * jax.random.normal(k2, (3, 12, 3, 3), jnp.float32),
        "b_shade": jnp.zeros((3,), jnp.float32),
        "w_shade_nr": 0.05 * jax.random.normal(k3, (3, 6, 3, 3), jnp.float32),
        "b_shade_nr": jnp.zeros((3,), jnp.float32),
    }


if __name__ == "__main__":
    key = jax.random.PRNGKey(0)
    kp, ks, kw = jax.random.split(key, 3)

    N, C, H, W = 2, 3, 16, 16
    Ip = jax.random.uniform(kp, (N, C, H, W), jnp.float32)
    s = jax.random.uniform(ks, (N, C, H, W), jnp.float32)
    params = init_params(kw)

    # full diffuse + specular path
    fwd = jax.jit(lambda a, b: deprocams_forward(params, ["rough"], a, b))
    Ic, n0, prj_pts2d, Ic_diff, dl_mask = jax.block_until_ready(fwd(Ip, s))

    assert Ic.shape == (N, 3, H, W) and Ic.dtype == jnp.float32
    assert n0.shape == (1, 3, H, W)
    assert prj_pts2d.shape == (N, H, W, 2)
    assert Ic_diff.shape == (N, 3, H, W)
    assert dl_mask.shape == (N, 1, H, W)
    assert bool(jnp.all(jnp.isfinite(Ic)))
    assert bool(jnp.all((Ic >= 0.0) & (Ic <= 1.0)))            # fused sigmoid
    assert bool(jnp.all(jnp.isfinite(Ic_diff)))
    assert bool(jnp.all((dl_mask == 0.0) | (dl_mask == 1.0)))

    # 'No_rough' path (6-channel shading conv, same fused kernel)
    fwd_nr = jax.jit(lambda a, b: deprocams_forward(params, ["No_rough"], a, b))
    Ic_nr, n0_nr, _, _, _ = jax.block_until_ready(fwd_nr(Ip, s))
    assert Ic_nr.shape == (N, 3, H, W)
    assert bool(jnp.all(jnp.isfinite(Ic_nr)))

    print("KERNEL_OK")
</pallas_src>

<mosaic_0001>
module attributes {stable_mosaic.version = 11 : i64} {
  func.func @_deprocams_kernel(%arg0: i32, %arg1: memref<55xf32, #tpu.memory_space<smem>>, %arg2: memref<273xf32, #tpu.memory_space<smem>>, %arg3: memref<1x3x16x16xf32, #tpu.memory_space<vmem>>, %arg4: memref<1x3x16x16xf32, #tpu.memory_space<vmem>>, %arg5: memref<1x3x16x16xf32, #tpu.memory_space<vmem>>, %arg6: memref<1x3x16x16xf32, #tpu.memory_space<vmem>>, %arg7: memref<1x3x16x16xf32, #tpu.memory_space<vmem>>, %arg8: memref<1x1x16x16xf32, #tpu.memory_space<vmem>>, %arg9: memref<1x16x16xf32, #tpu.memory_space<vmem>>) attributes {dimension_semantics = [#tpu.dimension_semantics<parallel>], iteration_bounds = array<i64: 2>, scalar_prefetch = 0 : i64, scratch_operands = 0 : i64, tpu.core_type = #tpu.core_type<tc>, window_params = [{transform_indices = @transform_0, window_bounds = array<i64: 55>}, {transform_indices = @transform_1, window_bounds = array<i64: 273>}, {transform_indices = @transform_2, window_bounds = array<i64: 1, 3, 16, 16>}, {transform_indices = @transform_3, window_bounds = array<i64: 1, 3, 16, 16>}, {transform_indices = @transform_4, window_bounds = array<i64: 1, 3, 16, 16>}, {transform_indices = @transform_5, window_bounds = array<i64: 1, 3, 16, 16>}, {transform_indices = @transform_6, window_bounds = array<i64: 1, 3, 16, 16>}, {transform_indices = @transform_7, window_bounds = array<i64: 1, 1, 16, 16>}, {transform_indices = @transform_8, window_bounds = array<i64: 1, 16, 16>}]} {
    %0 = tpu.iota {dimensions = array<i32: 0>} : vector<16x16xi32>
    %1 = tpu.iota {dimensions = array<i32: 1>} : vector<16x16xi32>
    %c15_i32 = arith.constant 15 : i32
    %2 = vector.broadcast %c15_i32 : i32 to vector<16x16xi32>
    %3 = arith.cmpi slt, %1, %2 : vector<16x16xi32>
    %c1_i32 = arith.constant 1 : i32
    %4 = vector.broadcast %c1_i32 : i32 to vector<16x16xi32>
    %5 = arith.cmpi sge, %1, %4 : vector<16x16xi32>
    %c15_i32_0 = arith.constant 15 : i32
    %6 = vector.broadcast %c15_i32_0 : i32 to vector<16x16xi32>
    %7 = arith.cmpi slt, %0, %6 : vector<16x16xi32>
    %c1_i32_1 = arith.constant 1 : i32
    %8 = vector.broadcast %c1_i32_1 : i32 to vector<16x16xi32>
    %9 = arith.cmpi sge, %0, %8 : vector<16x16xi32>
    %c0 = arith.constant 0 : index
    %c0_2 = arith.constant 0 : index
    %c0_3 = arith.constant 0 : index
    %c0_4 = arith.constant 0 : index
    %10 = vector.load %arg3[%c0, %c0_2, %c0_3, %c0_4] : memref<1x3x16x16xf32, #tpu.memory_space<vmem>>, vector<1x1x16x16xf32>
    %11 = vector.shape_cast %10 : vector<1x1x16x16xf32> to vector<16x16xf32>
    %c0_5 = arith.constant 0 : index
    %c1 = arith.constant 1 : index
    %c0_6 = arith.constant 0 : index
    %c0_7 = arith.constant 0 : index
    %12 = vector.load %arg3[%c0_5, %c1, %c0_6, %c0_7] : memref<1x3x16x16xf32, #tpu.memory_space<vmem>>, vector<1x1x16x16xf32>
    %13 = vector.shape_cast %12 : vector<1x1x16x16xf32> to vector<16x16xf32>
    %c0_8 = arith.constant 0 : index
    %c2 = arith.constant 2 : index
    %c0_9 = arith.constant 0 : index
    %c0_10 = arith.constant 0 : index
    %14 = vector.load %arg3[%c0_8, %c2, %c0_9, %c0_10] : memref<1x3x16x16xf32, #tpu.memory_space<vmem>>, vector<1x1x16x16xf32>
    %15 = vector.shape_cast %14 : vector<1x1x16x16xf32> to vector<16x16xf32>
    %c0_11 = arith.constant 0 : index
    %c0_12 = arith.constant 0 : index
    %c0_13 = arith.constant 0 : index
    %c0_14 = arith.constant 0 : index
    %16 = vector.load %arg4[%c0_11, %c0_12, %c0_13, %c0_14] : memref<1x3x16x16xf32, #tpu.memory_space<vmem>>, vector<1x1x16x16xf32>
    %17 = vector.shape_cast %16 : vector<1x1x16x16xf32> to vector<16x16xf32>
    %c0_15 = arith.constant 0 : index
    %c1_16 = arith.constant 1 : index
    %c0_17 = arith.constant 0 : index
    %c0_18 = arith.constant 0 : index
    %18 = vector.load %arg4[%c0_15, %c1_16, %c0_17, %c0_18] : memref<1x3x16x16xf32, #tpu.memory_space<vmem>>, vector<1x1x16x16xf32>
    %19 = vector.shape_cast %18 : vector<1x1x16x16xf32> to vector<16x16xf32>
    %c0_19 = arith.constant 0 : index
    %c2_20 = arith.constant 2 : index
    %c0_21 = arith.constant 0 : index
    %c0_22 = arith.constant 0 : index
    %20 = vector.load %arg4[%c0_19, %c2_20, %c0_21, %c0_22] : memref<1x3x16x16xf32, #tpu.memory_space<vmem>>, vector<1x1x16x16xf32>
    %21 = vector.shape_cast %20 : vector<1x1x16x16xf32> to vector<16x16xf32>
    %cst = arith.constant 0.000000e+00 : f32
    %22 = vector.broadcast %cst : f32 to vector<16x16xf32>
    %c54 = arith.constant 54 : index
    %23 = memref.load %arg1[%c54] : memref<55xf32, #tpu.memory_space<smem>>
    %24 = vector.broadcast %23 : f32 to vector<16x16xf32>
    %25 = arith.addf %22, %24 : vector<16x16xf32>
    %c1_i32_23 = arith.constant 1 : i32
    %26 = tpu.dynamic_rotate %11 by %c1_i32_23 dim 1 : vector<16x16xf32>, i32 -> vector<16x16xf32>
    %cst_24 = arith.constant 0.000000e+00 : f32
    %27 = vector.broadcast %cst_24 : f32 to vector<16x16xf32>
    %28 = arith.select %5, %26, %27 : vector<16x16xi1>, vector<16x16xf32>
    %c15_i32_25 = arith.constant 15 : i32
    %29 = tpu.dynamic_rotate %11 by %c15_i32_25 dim 1 : vector<16x16xf32>, i32 -> vector<16x16xf32>
    %cst_26 = arith.constant 0.000000e+00 : f32
    %30 = vector.broadcast %cst_26 : f32 to vector<16x16xf32>
    %31 = arith.select %3, %29, %30 : vector<16x16xi1>, vector<16x16xf32>
    %c1_i32_27 = arith.constant 1 : i32
    %32 = tpu.dynamic_rotate %28 by %c1_i32_27 dim 0 : vector<16x16xf32>, i32 -> vector<16x16xf32>
    %cst_28 = arith.constant 0.000000e+00 : f32
    %33 = vector.broadcast %cst_28 : f32 to vector<16x16xf32>
    %34 = arith.select %9, %32, %33 : vector<16x16xi1>, vector<16x16xf32>
    %c0_29 = arith.constant 0 : index
    %35 = memref.load %arg1[%c0_29] : memref<55xf32, #tpu.memory_space<smem>>
    %36 = vector.broadcast %35 : f32 to vector<16x16xf32>
    %37 = arith.mulf %36, %34 : vector<16x16xf32>
    %38 = arith.addf %25, %37 : vector<16x16xf32>
    %c1_i32_30 = arith.constant 1 : i32
    %39 = tpu.dynamic_rotate %11 by %c1_i32_30 dim 0 : vector<16x16xf32>, i32 -> vector<16x16xf32>
    %cst_31 = arith.constant 0.000000e+00 : f32
    %40 = vector.broadcast %cst_31 : f32 to vector<16x16xf32>
    %41 = arith.select %9, %39, %40 : vector<16x16xi1>, vector<16x16xf32>
    %c1_32 = arith.constant 1 : index
    %42 = memref.load %arg1[%c1_32] : memref<55xf32, #tpu.memory_space<smem>>
    %43 = vector.broadcast %42 : f32 to vector<16x16xf32>
    %44 = arith.mulf %43, %41 : vector<16x16xf32>
    %45 = arith.addf %38, %44 : vector<16x16xf32>
    %c1_i32_33 = arith.constant 1 : i32
    %46 = tpu.dynamic_rotate %31 by %c1_i32_33 dim 0 : vector<16x16xf32>, i32 -> vector<16x16xf32>
    %cst_34 = arith.constant 0.000000e+00 : f32
    %47 = vector.broadcast %cst_34 : f32 to vector<16x16xf32>
    %48 = arith.select %9, %46, %47 : vector<16x16xi1>, vector<16x16xf32>
    %c2_35 = arith.constant 2 : index
    %49 = memref.load %arg1[%c2_35] : memref<55xf32, #tpu.memory_space<smem>>
    %50 = vector.broadcast %49 : f32 to vector<16x16xf32>
    %51 = arith.mulf %50, %48 : vector<16x16xf32>
    %52 = arith.addf %45, %51 : vector<16x16xf32>
    %c3 = arith.constant 3 : index
    %53 = memref.load %arg1[%c3] : memref<55xf32, #tpu.memory_space<smem>>
    %54 = vector.broadcast %53 : f32 to vector<16x16xf32>
    %55 = arith.mulf %54, %28 : vector<16x16xf32>
    %56 = arith.addf %52, %55 : vector<16x16xf32>
    %c4 = arith.constant 4 : index
    %57 = memref.load %arg1[%c4] : memref<55xf32, #tpu.memory_space<smem>>
    %58 = vector.broadcast %57 : f32 to vector<16x16xf32>
    %59 = arith.mulf %58, %11 : vector<16x16xf32>
    %60 = arith.addf %56, %59 : vector<16x16xf32>
    %c5 = arith.constant 5 : index
    %61 = memref.load %arg1[%c5] : memref<55xf32, #tpu.memory_space<smem>>
    %62 = vector.broadcast %61 : f32 to vector<16x16xf32>
    %63 = arith.mulf %62, %31 : vector<16x16xf32>
    %64 = arith.addf %60, %63 : vector<16x16xf32>
    %c15_i32_36 = arith.constant 15 : i32
    %65 = tpu.dynamic_rotate %28 by %c15_i32_36 dim 0 : vector<16x16xf32>, i32 -> vector<16x16xf32>
    %cst_37 = arith.constant 0.000000e+00 : f32
    %66 = vector.broadcast %cst_37 : f32 to vector<16x16xf32>
    %67 = arith.select %7, %65, %66 : vector<16x16xi1>, vector<16x16xf32>
    %c6 = arith.constant 6 : index
    %68 = memref.load %arg1[%c6] : memref<55xf32, #tpu.memory_space<smem>>
    %69 = vector.broadcast %68 : f32 to vector<16x16xf32>
    %70 = arith.mulf %69, %67 : vector<16x16xf32>
    %71 = arith.addf %64, %70 : vector<16x16xf32>
    %c15_i32_38 = arith.constant 15 : i32
    %72 = tpu.dynamic_rotate %11 by %c15_i32_38 dim 0 : vector<16x16xf32>, i32 -> vector<16x16xf32>
    %cst_39 = arith.constant 0.000000e+00 : f32
    %73 = vector.broadcast %cst_39 : f32 to vector<16x16xf32>
    %74 = arith.select %7, %72, %73 : vector<16x16xi1>, vector<16x16xf32>
    %c7 = arith.constant 7 : index
    %75 = memref.load %arg1[%c7] : memref<55xf32, #tpu.memory_space<smem>>
    %76 = vector.broadcast %75 : f32 to vector<16x16xf32>
    %77 = arith.mulf %76, %74 : vector<16x16xf32>
    %78 = arith.addf %71, %77 : vector<16x16xf32>
    %c15_i32_40 = arith.constant 15 : i32
    %79 = tpu.dynamic_rotate %31 by %c15_i32_40 dim 0 : vector<16x16xf32>, i32 -> vector<16x16xf32>
    %cst_41 = arith.constant 0.000000e+00 : f32
    %80 = vector.broadcast %cst_41 : f32 to vector<16x16xf32>
    %81 = arith.select %7, %79, %80 : vector<16x16xi1>, vector<16x16xf32>
    %c8 = arith.constant 8 : index
    %82 = memref.load %arg1[%c8] : memref<55xf32, #tpu.memory_space<smem>>
    %83 = vector.broadcast %82 : f32 to vector<16x16xf32>
    %84 = arith.mulf %83, %81 : vector<16x16xf32>
    %85 = arith.addf %78, %84 : vector<16x16xf32>
    %c1_i32_42 = arith.constant 1 : i32
    %86 = tpu.dynamic_rotate %13 by %c1_i32_42 dim 1 : vector<16x16xf32>, i32 -> vector<16x16xf32>
    %cst_43 = arith.constant 0.000000e+00 : f32
    %87 = vector.broadcast %cst_43 : f32 to vector<16x16xf32>
    %88 = arith.select %5, %86, %87 : vector<16x16xi1>, vector<16x16xf32>
    %c15_i32_44 = arith.constant 15 : i32
    %89 = tpu.dynamic_rotate %13 by %c15_i32_44 dim 1 : vector<16x16xf32>, i32 -> vector<16x16xf32>
    %cst_45 = arith.constant 0.000000e+00 : f32
    %90 = vector.broadcast %cst_45 : f32 to vector<16x16xf32>
    %91 = arith.select %3, %89, %90 : vector<16x16xi1>, vector<16x16xf32>
    %c1_i32_46 = arith.constant 1 : i32
    %92 = tpu.dynamic_rotate %88 by %c1_i32_46 dim 0 : vector<16x16xf32>, i32 -> vector<16x16xf32>
    %cst_47 = arith.constant 0.000000e+00 : f32
    %93 = vector.broadcast %cst_47 : f32 to vector<16x16xf32>
    %94 = arith.select %9, %92, %93 : vector<16x16xi1>, vector<16x16xf32>
    %c9 = arith.constant 9 : index
    %95 = memref.load %arg1[%c9] : memref<55xf32, #tpu.memory_space<smem>>
    %96 = vector.broadcast %95 : f32 to vector<16x16xf32>
    %97 = arith.mulf %96, %94 : vector<16x16xf32>
    %98 = arith.addf %85, %97 : vector<16x16xf32>
    %c1_i32_48 = arith.constant 1 : i32
    %99 = tpu.dynamic_rotate %13 by %c1_i32_48 dim 0 : vector<16x16xf32>, i32 -> vector<16x16xf32>
    %cst_49 = arith.constant 0.000000e+00 : f32
    %100 = vector.broadcast %cst_49 : f32 to vector<16x16xf32>
    %101 = arith.select %9, %99, %100 : vector<16x16xi1>, vector<16x16xf32>
    %c10 = arith.constant 10 : index
    %102 = memref.load %arg1[%c10] : memref<55xf32, #tpu.memory_space<smem>>
    %103 = vector.broadcast %102 : f32 to vector<16x16xf32>
    %104 = arith.mulf %103, %101 : vector<16x16xf32>
    %105 = arith.addf %98, %104 : vector<16x16xf32>
    %c1_i32_50 = arith.constant 1 : i32
    %106 = tpu.dynamic_rotate %91 by %c1_i32_50 dim 0 : vector<16x16xf32>, i32 -> vector<16x16xf32>
    %cst_51 = arith.constant 0.000000e+00 : f32
    %107 = vector.broadcast %cst_51 : f32 to vector<16x16xf32>
    %108 = arith.select %9, %106, %107 : vector<16x16xi1>, vector<16x16xf32>
    %c11 = arith.constant 11 : index
    %109 = memref.load %arg1[%c11] : memref<55xf32, #tpu.memory_space<smem>>
    %110 = vector.broadcast %109 : f32 to vector<16x16xf32>
    %111 = arith.mulf %110, %108 : vector<16x16xf32>
    %112 = arith.addf %105, %111 : vector<16x16xf32>
    %c12 = arith.constant 12 : index
    %113 = memref.load %arg1[%c12] : memref<55xf32, #tpu.memory_space<smem>>
    %114 = vector.broadcast %113 : f32 to vector<16x16xf32>
    %115 = arith.mulf %114, %88 : vector<16x16xf32>
    %116 = arith.addf %112, %115 : vector<16x16xf32>
    %c13 = arith.constant 13 : index
    %117 = memref.load %arg1[%c13] : memref<55xf32, #tpu.memory_space<smem>>
    %118 = vector.broadcast %117 : f32 to vector<16x16xf32>
    %119 = arith.mulf %118, %13 : vector<16x16xf32>
    %120 = arith.addf %116, %119 : vector<16x16xf32>
    %c14 = arith.constant 14 : index
    %121 = memref.load %arg1[%c14] : memref<55xf32, #tpu.memory_space<smem>>
    %122 = vector.broadcast %121 : f32 to vector<16x16xf32>
    %123 = arith.mulf %122, %91 : vector<16x16xf32>
    %124 = arith.addf %120, %123 : vector<16x16xf32>
    %c15_i32_52 = arith.constant 15 : i32
    %125 = tpu.dynamic_rotate %88 by %c15_i32_52 dim 0 : vector<16x16xf32>, i32 -> vector<16x16xf32>
    %cst_53 = arith.constant 0.000000e+00 : f32
    %126 = vector.broadcast %cst_53 : f32 to vector<16x16xf32>
    %127 = arith.select %7, %125, %126 : vector<16x16xi1>, vector<16x16xf32>
    %c15 = arith.constant 15 : index
    %128 = memref.load %arg1[%c15] : memref<55xf32, #tpu.memory_space<smem>>
    %129 = vector.broadcast %128 : f32 to vector<16x16xf32>
    %130 = arith.mulf %129, %127 : vector<16x16xf32>
    %131 = arith.addf %124, %130 : vector<16x16xf32>
    %c15_i32_54 = arith.constant 15 : i32
    %132 = tpu.dynamic_rotate %13 by %c15_i32_54 dim 0 : vector<16x16xf32>, i32 -> vector<16x16xf32>
    %cst_55 = arith.constant 0.000000e+00 : f32
    %133 = vector.broadcast %cst_55 : f32 to vector<16x16xf32>
    %134 = arith.select %7, %132, %133 : vector<16x16xi1>, vector<16x16xf32>
    %c16 = arith.constant 16 : index
    %135 = memref.load %arg1[%c16] : memref<55xf32, #tpu.memory_space<smem>>
    %136 = vector.broadcast %135 : f32 to vector<16x16xf32>
    %137 = arith.mulf %136, %134 : vector<16x16xf32>
    %138 = arith.addf %131, %137 : vector<16x16xf32>
    %c15_i32_56 = arith.constant 15 : i32
    %139 = tpu.dynamic_rotate %91 by %c15_i32_56 dim 0 : vector<16x16xf32>, i32 -> vector<16x16xf32>
    %cst_57 = arith.constant 0.000000e+00 : f32
    %140 = vector.broadcast %cst_57 : f32 to vector<16x16xf32>
    %141 = arith.select %7, %139, %140 : vector<16x16xi1>, vector<16x16xf32>
    %c17 = arith.constant 17 : index
    %142 = memref.load %arg1[%c17] : memref<55xf32, #tpu.memory_space<smem>>
    %143 = vector.broadcast %142 : f32 to vector<16x16xf32>
    %144 = arith.mulf %143, %141 : vector<16x16xf32>
    %145 = arith.addf %138, %144 : vector<16x16xf32>
    %c1_i32_58 = arith.constant 1 : i32
    %146 = tpu.dynamic_rotate %15 by %c1_i32_58 dim 1 : vector<16x16xf32>, i32 -> vector<16x16xf32>
    %cst_59 = arith.constant 0.000000e+00 : f32
    %147 = vector.broadcast %cst_59 : f32 to vector<16x16xf32>
    %148 = arith.select %5, %146, %147 : vector<16x16xi1>, vector<16x16xf32>
    %c15_i32_60 = arith.constant 15 : i32
    %149 = tpu.dynamic_rotate %15 by %c15_i32_60 dim 1 : vector<16x16xf32>, i32 -> vector<16x16xf32>
    %cst_61 = arith.constant 0.000000e+00 : f32
    %150 = vector.broadcast %cst_61 : f32 to vector<16x16xf32>
    %151 = arith.select %3, %149, %150 : vector<16x16xi1>, vector<16x16xf32>
    %c1_i32_62 = arith.constant 1 : i32
    %152 = tpu.dynamic_rotate %148 by %c1_i32_62 dim 0 : vector<16x16xf32>, i32 -> vector<16x16xf32>
    %cst_63 = arith.constant 0.000000e+00 : f32
    %153 = vector.broadcast %cst_63 : f32 to vector<16x16xf32>
    %154 = arith.select %9, %152, %153 : vector<16x16xi1>, vector<16x16xf32>
    %c18 = arith.constant 18 : index
    %155 = memref.load %arg1[%c18] : memref<55xf32, #tpu.memory_space<smem>>
    %156 = vector.broadcast %155 : f32 to vector<16x16xf32>
    %157 = arith.mulf %156, %154 : vector<16x16xf32>
    %158 = arith.addf %145, %157 : vector<16x16xf32>
    %c1_i32_64 = arith.constant 1 : i32
    %159 = tpu.dynamic_rotate %15 by %c1_i32_64 dim 0 : vector<16x16xf32>, i32 -> vector<16x16xf32>
    %cst_65 = arith.constant 0.000000e+00 : f32
    %160 = vector.broadcast %cst_65 : f32 to vector<16x16xf32>
    %161 = arith.select %9, %159, %160 : vector<16x16xi1>, vector<16x16xf32>
    %c19 = arith.constant 19 : index
    %162 = memref.load %arg1[%c19] : memref<55xf32, #tpu.memory_space<smem>>
    %163 = vector.broadcast %162 : f32 to vector<16x16xf32>
    %164 = arith.mulf %163, %161 : vector<16x16xf32>
    %165 = arith.addf %158, %164 : vector<16x16xf32>
    %c1_i32_66 = arith.constant 1 : i32
    %166 = tpu.dynamic_rotate %151 by %c1_i32_66 dim 0 : vector<16x16xf32>, i32 -> vector<16x16xf32>
    %cst_67 = arith.constant 0.000000e+00 : f32
    %167 = vector.broadcast %cst_67 : f32 to vector<16x16xf32>
    %168 = arith.select %9, %166, %167 : vector<16x16xi1>, vector<16x16xf32>
    %c20 = arith.constant 20 : index
    %169 = memref.load %arg1[%c20] : memref<55xf32, #tpu.memory_space<smem>>
    %170 = vector.broadcast %169 : f32 to vector<16x16xf32>
    %171 = arith.mulf %170, %168 : vector<16x16xf32>
    %172 = arith.addf %165, %171 : vector<16x16xf32>
    %c21 = arith.constant 21 : index
    %173 = memref.load %arg1[%c21] : memref<55xf32, #tpu.memory_space<smem>>
    %174 = vector.broadcast %173 : f32 to vector<16x16xf32>
    %175 = arith.mulf %174, %148 : vector<16x16xf32>
    %176 = arith.addf %172, %175 : vector<16x16xf32>
    %c22 = arith.constant 22 : index
    %177 = memref.load %arg1[%c22] : memref<55xf32, #tpu.memory_space<smem>>
    %178 = vector.broadcast %177 : f32 to vector<16x16xf32>
    %179 = arith.mulf %178, %15 : vector<16x16xf32>
    %180 = arith.addf %176, %179 : vector<16x16xf32>
    %c23 = arith.constant 23 : index
    %181 = memref.load %arg1[%c23] : memref<55xf32, #tpu.memory_space<smem>>
    %182 = vector.broadcast %181 : f32 to vector<16x16xf32>
    %183 = arith.mulf %182, %151 : vector<16x16xf32>
    %184 = arith.addf %180, %183 : vector<16x16xf32>
    %c15_i32_68 = arith.constant 15 : i32
    %185 = tpu.dynamic_rotate %148 by %c15_i32_68 dim 0 : vector<16x16xf32>, i32 -> vector<16x16xf32>
    %cst_69 = arith.constant 0.000000e+00 : f32
    %186 = vector.broadcast %cst_69 : f32 to vector<16x16xf32>
    %187 = arith.select %7, %185, %186 : vector<16x16xi1>, vector<16x16xf32>
    %c24 = arith.constant 24 : index
    %188 = memref.load %arg1[%c24] : memref<55xf32, #tpu.memory_space<smem>>
    %189 = vector.broadcast %188 : f32 to vector<16x16xf32>
    %190 = arith.mulf %189, %187 : vector<16x16xf32>
    %191 = arith.addf %184, %190 : vector<16x16xf32>
    %c15_i32_70 = arith.constant 15 : i32
    %192 = tpu.dynamic_rotate %15 by %c15_i32_70 dim 0 : vector<16x16xf32>, i32 -> vector<16x16xf32>
    %cst_71 = arith.constant 0.000000e+00 : f32
    %193 = vector.broadcast %cst_71 : f32 to vector<16x16xf32>
    %194 = arith.select %7, %192, %193 : vector<16x16xi1>, vector<16x16xf32>
    %c25 = arith.constant 25 : index
    %195 = memref.load %arg1[%c25] : memref<55xf32, #tpu.memory_space<smem>>
    %196 = vector.broadcast %195 : f32 to vector<16x16xf32>
    %197 = arith.mulf %196, %194 : vector<16x16xf32>
    %198 = arith.addf %191, %197 : vector<16x16xf32>
    %c15_i32_72 = arith.constant 15 : i32
    %199 = tpu.dynamic_rotate %151 by %c15_i32_72 dim 0 : vector<16x16xf32>, i32 -> vector<16x16xf32>
    %cst_73 = arith.constant 0.000000e+00 : f32
    %200 = vector.broadcast %cst_73 : f32 to vector<16x16xf32>
    %201 = arith.select %7, %199, %200 : vector<16x16xi1>, vector<16x16xf32>
    %c26 = arith.constant 26 : index
    %202 = memref.load %arg1[%c26] : memref<55xf32, #tpu.memory_space<smem>>
    %203 = vector.broadcast %202 : f32 to vector<16x16xf32>
    %204 = arith.mulf %203, %201 : vector<16x16xf32>
    %205 = arith.addf %198, %204 : vector<16x16xf32>
    %c1_i32_74 = arith.constant 1 : i32
    %206 = tpu.dynamic_rotate %17 by %c1_i32_74 dim 1 : vector<16x16xf32>, i32 -> vector<16x16xf32>
    %cst_75 = arith.constant 0.000000e+00 : f32
    %207 = vector.broadcast %cst_75 : f32 to vector<16x16xf32>
    %208 = arith.select %5, %206, %207 : vector<16x16xi1>, vector<16x16xf32>
    %c15_i32_76 = arith.constant 15 : i32
    %209 = tpu.dynamic_rotate %17 by %c15_i32_76 dim 1 : vector<16x16xf32>, i32 -> vector<16x16xf32>
    %cst_77 = arith.constant 0.000000e+00 : f32
    %210 = vector.broadcast %cst_77 : f32 to vector<16x16xf32>
    %211 = arith.select %3, %209, %210 : vector<16x16xi1>, vector<16x16xf32>
    %c1_i32_78 = arith.constant 1 : i32
    %212 = tpu.dynamic_rotate %208 by %c1_i32_78 dim 0 : vector<16x16xf32>, i32 -> vector<16x16xf32>
    %cst_79 = arith.constant 0.000000e+00 : f32
    %213 = vector.broadcast %cst_79 : f32 to vector<16x16xf32>
    %214 = arith.select %9, %212, %213 : vector<16x16xi1>, vector<16x16xf32>
    %c27 = arith.constant 27 : index
    %215 = memref.load %arg1[%c27] : memref<55xf32, #tpu.memory_space<smem>>
    %216 = vector.broadcast %215 : f32 to vector<16x16xf32>
    %217 = arith.mulf %216, %214 : vector<16x16xf32>
    %218 = arith.addf %205, %217 : vector<16x16xf32>
    %c1_i32_80 = arith.constant 1 : i32
    %219 = tpu.dynamic_rotate %17 by %c1_i32_80 dim 0 : vector<16x16xf32>, i32 -> vector<16x16xf32>
    %cst_81 = arith.constant 0.000000e+00 : f32
    %220 = vector.broadcast %cst_81 : f32 to vector<16x16xf32>
    %221 = arith.select %9, %219, %220 : vector<16x16xi1>, vector<16x16xf32>
    %c28 = arith.constant 28 : index
    %222 = memref.load %arg1[%c28] : memref<55xf32, #tpu.memory_space<smem>>
    %223 = vector.broadcast %222 : f32 to vector<16x16xf32>
    %224 = arith.mulf %223, %221 : vector<16x16xf32>
    %225 = arith.addf %218, %224 : vector<16x16xf32>
    %c1_i32_82 = arith.constant 1 : i32
    %226 = tpu.dynamic_rotate %211 by %c1_i32_82 dim 0 : vector<16x16xf32>, i32 -> vector<16x16xf32>
    %cst_83 = arith.constant 0.000000e+00 : f32
    %227 = vector.broadcast %cst_83 : f32 to vector<16x16xf32>
    %228 = arith.select %9, %226, %227 : vector<16x16xi1>, vector<16x16xf32>
    %c29 = arith.constant 29 : index
    %229 = memref.load %arg1[%c29] : memref<55xf32, #tpu.memory_space<smem>>
    %230 = vector.broadcast %229 : f32 to vector<16x16xf32>
    %231 = arith.mulf %230, %228 : vector<16x16xf32>
    %232 = arith.addf %225, %231 : vector<16x16xf32>
    %c30 = arith.constant 30 : index
    %233 = memref.load %arg1[%c30] : memref<55xf32, #tpu.memory_space<smem>>
    %234 = vector.broadcast %233 : f32 to vector<16x16xf32>
    %235 = arith.mulf %234, %208 : vector<16x16xf32>
    %236 = arith.addf %232, %235 : vector<16x16xf32>
    %c31 = arith.constant 31 : index
    %237 = memref.load %arg1[%c31] : memref<55xf32, #tpu.memory_space<smem>>
    %238 = vector.broadcast %237 : f32 to vector<16x16xf32>
    %239 = arith.mulf %238, %17 : vector<16x16xf32>
    %240 = arith.addf %236, %239 : vector<16x16xf32>
    %c32 = arith.constant 32 : index
    %241 = memref.load %arg1[%c32] : memref<55xf32, #tpu.memory_space<smem>>
    %242 = vector.broadcast %241 : f32 to vector<16x16xf32>
    %243 = arith.mulf %242, %211 : vector<16x16xf32>
    %244 = arith.addf %240, %243 : vector<16x16xf32>
    %c15_i32_84 = arith.constant 15 : i32
    %245 = tpu.dynamic_rotate %208 by %c15_i32_84 dim 0 : vector<16x16xf32>, i32 -> vector<16x16xf32>
    %cst_85 = arith.constant 0.000000e+00 : f32
    %246 = vector.broadcast %cst_85 : f32 to vector<16x16xf32>
    %247 = arith.select %7, %245, %246 : vector<16x16xi1>, vector<16x16xf32>
    %c33 = arith.constant 33 : index
    %248 = memref.load %arg1[%c33] : memref<55xf32, #tpu.memory_space<smem>>
    %249 = vector.broadcast %248 : f32 to vector<16x16xf32>
    %250 = arith.mulf %249, %247 : vector<16x16xf32>
    %251 = arith.addf %244, %250 : vector<16x16xf32>
    %c15_i32_86 = arith.constant 15 : i32
    %252 = tpu.dynamic_rotate %17 by %c15_i32_86 dim 0 : vector<16x16xf32>, i32 -> vector<16x16xf32>
    %cst_87 = arith.constant 0.000000e+00 : f32
    %253 = vector.broadcast %cst_87 : f32 to vector<16x16xf32>
    %254 = arith.select %7, %252, %253 : vector<16x16xi1>, vector<16x16xf32>
    %c34 = arith.constant 34 : index
    %255 = memref.load %arg1[%c34] : memref<55xf32, #tpu.memory_space<smem>>
    %256 = vector.broadcast %255 : f32 to vector<16x16xf32>
    %257 = arith.mulf %256, %254 : vector<16x16xf32>
    %258 = arith.addf %251, %257 : vector<16x16xf32>
    %c15_i32_88 = arith.constant 15 : i32
    %259 = tpu.dynamic_rotate %211 by %c15_i32_88 dim 0 : vector<16x16xf32>, i32 -> vector<16x16xf32>
    %cst_89 = arith.constant 0.000000e+00 : f32
    %260 = vector.broadcast %cst_89 : f32 to vector<16x16xf32>
    %261 = arith.select %7, %259, %260 : vector<16x16xi1>, vector<16x16xf32>
    %c35 = arith.constant 35 : index
    %262 = memref.load %arg1[%c35] : memref<55xf32, #tpu.memory_space<smem>>
    %263 = vector.broadcast %262 : f32 to vector<16x16xf32>
    %264 = arith.mulf %263, %261 : vector<16x16xf32>
    %265 = arith.addf %258, %264 : vector<16x16xf32>
    %c1_i32_90 = arith.constant 1 : i32
    %266 = tpu.dynamic_rotate %19 by %c1_i32_90 dim 1 : vector<16x16xf32>, i32 -> vector<16x16xf32>
    %cst_91 = arith.constant 0.000000e+00 : f32
    %267 = vector.broadcast %cst_91 : f32 to vector<16x16xf32>
    %268 = arith.select %5, %266, %267 : vector<16x16xi1>, vector<16x16xf32>
    %c15_i32_92 = arith.constant 15 : i32
    %269 = tpu.dynamic_rotate %19 by %c15_i32_92 dim 1 : vector<16x16xf32>, i32 -> vector<16x16xf32>
    %cst_93 = arith.constant 0.000000e+00 : f32
    %270 = vector.broadcast %cst_93 : f32 to vector<16x16xf32>
    %271 = arith.select %3, %269, %270 : vector<16x16xi1>, vector<16x16xf32>
    %c1_i32_94 = arith.constant 1 : i32
    %272 = tpu.dynamic_rotate %268 by %c1_i32_94 dim 0 : vector<16x16xf32>, i32 -> vector<16x16xf32>
    %cst_95 = arith.constant 0.000000e+00 : f32
    %273 = vector.broadcast %cst_95 : f32 to vector<16x16xf32>
    %274 = arith.select %9, %272, %273 : vector<16x16xi1>, vector<16x16xf32>
    %c36 = arith.constant 36 : index
    %275 = memref.load %arg1[%c36] : memref<55xf32, #tpu.memory_space<smem>>
    %276 = vector.broadcast %275 : f32 to vector<16x16xf32>
    %277 = arith.mulf %276, %274 : vector<16x16xf32>
    %278 = arith.addf %265, %277 : vector<16x16xf32>
    %c1_i32_96 = arith.constant 1 : i32
    %279 = tpu.dynamic_rotate %19 by %c1_i32_96 dim 0 : vector<16x16xf32>, i32 -> vector<16x16xf32>
    %cst_97 = arith.constant 0.000000e+00 : f32
    %280 = vector.broadcast %cst_97 : f32 to vector<16x16xf32>
    %281 = arith.select %9, %279, %280 : vector<16x16xi1>, vector<16x16xf32>
    %c37 = arith.constant 37 : index
    %282 = memref.load %arg1[%c37] : memref<55xf32, #tpu.memory_space<smem>>
    %283 = vector.broadcast %282 : f32 to vector<16x16xf32>
    %284 = arith.mulf %283, %281 : vector<16x16xf32>
    %285 = arith.addf %278, %284 : vector<16x16xf32>
    %c1_i32_98 = arith.constant 1 : i32
    %286 = tpu.dynamic_rotate %271 by %c1_i32_98 dim 0 : vector<16x16xf32>, i32 -> vector<16x16xf32>
    %cst_99 = arith.constant 0.000000e+00 : f32
    %287 = vector.broadcast %cst_99 : f32 to vector<16x16xf32>
    %288 = arith.select %9, %286, %287 : vector<16x16xi1>, vector<16x16xf32>
    %c38 = arith.constant 38 : index
    %289 = memref.load %arg1[%c38] : memref<55xf32, #tpu.memory_space<smem>>
    %290 = vector.broadcast %289 : f32 to vector<16x16xf32>
    %291 = arith.mulf %290, %288 : vector<16x16xf32>
    %292 = arith.addf %285, %291 : vector<16x16xf32>
    %c39 = arith.constant 39 : index
    %293 = memref.load %arg1[%c39] : memref<55xf32, #tpu.memory_space<smem>>
    %294 = vector.broadcast %293 : f32 to vector<16x16xf32>
    %295 = arith.mulf %294, %268 : vector<16x16xf32>
    %296 = arith.addf %292, %295 : vector<16x16xf32>
    %c40 = arith.constant 40 : index
    %297 = memref.load %arg1[%c40] : memref<55xf32, #tpu.memory_space<smem>>
    %298 = vector.broadcast %297 : f32 to vector<16x16xf32>
    %299 = arith.mulf %298, %19 : vector<16x16xf32>
    %300 = arith.addf %296, %299 : vector<16x16xf32>
    %c41 = arith.constant 41 : index
    %301 = memref.load %arg1[%c41] : memref<55xf32, #tpu.memory_space<smem>>
    %302 = vector.broadcast %301 : f32 to vector<16x16xf32>
    %303 = arith.mulf %302, %271 : vector<16x16xf32>
    %304 = arith.addf %300, %303 : vector<16x16xf32>
    %c15_i32_100 = arith.constant 15 : i32
    %305 = tpu.dynamic_rotate %268 by %c15_i32_100 dim 0 : vector<16x16xf32>, i32 -> vector<16x16xf32>
    %cst_101 = arith.constant 0.000000e+00 : f32
    %306 = vector.broadcast %cst_101 : f32 to vector<16x16xf32>
    %307 = arith.select %7, %305, %306 : vector<16x16xi1>, vector<16x16xf32>
    %c42 = arith.constant 42 : index
    %308 = memref.load %arg1[%c42] : memref<55xf32, #tpu.memory_space<smem>>
    %309 = vector.broadcast %308 : f32 to vector<16x16xf32>
    %310 = arith.mulf %309, %307 : vector<16x16xf32>
    %311 = arith.addf %304, %310 : vector<16x16xf32>
    %c15_i32_102 = arith.constant 15 : i32
    %312 = tpu.dynamic_rotate %19 by %c15_i32_102 dim 0 : vector<16x16xf32>, i32 -> vector<16x16xf32>
    %cst_103 = arith.constant 0.000000e+00 : f32
    %313 = vector.broadcast %cst_103 : f32 to vector<16x16xf32>
    %314 = arith.select %7, %312, %313 : vector<16x16xi1>, vector<16x16xf32>
    %c43 = arith.constant 43 : index
    %315 = memref.load %arg1[%c43] : memref<55xf32, #tpu.memory_space<smem>>
    %316 = vector.broadcast %315 : f32 to vector<16x16xf32>
    %317 = arith.mulf %316, %314 : vector<16x16xf32>
    %318 = arith.addf %311, %317 : vector<16x16xf32>
    %c15_i32_104 = arith.constant 15 : i32
    %319 = tpu.dynamic_rotate %271 by %c15_i32_104 dim 0 : vector<16x16xf32>, i32 -> vector<16x16xf32>
    %cst_105 = arith.constant 0.000000e+00 : f32
    %320 = vector.broadcast %cst_105 : f32 to vector<16x16xf32>
    %321 = arith.select %7, %319, %320 : vector<16x16xi1>, vector<16x16xf32>
    %c44 = arith.constant 44 : index
    %322 = memref.load %arg1[%c44] : memref<55xf32, #tpu.memory_space<smem>>
    %323 = vector.broadcast %322 : f32 to vector<16x16xf32>
    %324 = arith.mulf %323, %321 : vector<16x16xf32>
    %325 = arith.addf %318, %324 : vector<16x16xf32>
    %c1_i32_106 = arith.constant 1 : i32
    %326 = tpu.dynamic_rotate %21 by %c1_i32_106 dim 1 : vector<16x16xf32>, i32 -> vector<16x16xf32>
    %cst_107 = arith.constant 0.000000e+00 : f32
    %327 = vector.broadcast %cst_107 : f32 to vector<16x16xf32>
    %328 = arith.select %5, %326, %327 : vector<16x16xi1>, vector<16x16xf32>
    %c15_i32_108 = arith.constant 15 : i32
    %329 = tpu.dynamic_rotate %21 by %c15_i32_108 dim 1 : vector<16x16xf32>, i32 -> vector<16x16xf32>
    %cst_109 = arith.constant 0.000000e+00 : f32
    %330 = vector.broadcast %cst_109 : f32 to vector<16x16xf32>
    %331 = arith.select %3, %329, %330 : vector<16x16xi1>, vector<16x16xf32>
    %c1_i32_110 = arith.constant 1 : i32
    %332 = tpu.dynamic_rotate %328 by %c1_i32_110 dim 0 : vector<16x16xf32>, i32 -> vector<16x16xf32>
    %cst_111 = arith.constant 0.000000e+00 : f32
    %333 = vector.broadcast %cst_111 : f32 to vector<16x16xf32>
    %334 = arith.select %9, %332, %333 : vector<16x16xi1>, vector<16x16xf32>
    %c45 = arith.constant 45 : index
    %335 = memref.load %arg1[%c45] : memref<55xf32, #tpu.memory_space<smem>>
    %336 = vector.broadcast %335 : f32 to vector<16x16xf32>
    %337 = arith.mulf %336, %334 : vector<16x16xf32>
    %338 = arith.addf %325, %337 : vector<16x16xf32>
    %c1_i32_112 = arith.constant 1 : i32
    %339 = tpu.dynamic_rotate %21 by %c1_i32_112 dim 0 : vector<16x16xf32>, i32 -> vector<16x16xf32>
    %cst_113 = arith.constant 0.000000e+00 : f32
    %340 = vector.broadcast %cst_113 : f32 to vector<16x16xf32>
    %341 = arith.select %9, %339, %340 : vector<16x16xi1>, vector<16x16xf32>
    %c46 = arith.constant 46 : index
    %342 = memref.load %arg1[%c46] : memref<55xf32, #tpu.memory_space<smem>>
    %343 = vector.broadcast %342 : f32 to vector<16x16xf32>
    %344 = arith.mulf %343, %341 : vector<16x16xf32>
    %345 = arith.addf %338, %344 : vector<16x16xf32>
    %c1_i32_114 = arith.constant 1 : i32
    %346 = tpu.dynamic_rotate %331 by %c1_i32_114 dim 0 : vector<16x16xf32>, i32 -> vector<16x16xf32>
    %cst_115 = arith.constant 0.000000e+00 : f32
    %347 = vector.broadcast %cst_115 : f32 to vector<16x16xf32>
    %348 = arith.select %9, %346, %347 : vector<16x16xi1>, vector<16x16xf32>
    %c47 = arith.constant 47 : index
    %349 = memref.load %arg1[%c47] : memref<55xf32, #tpu.memory_space<smem>>
    %350 = vector.broadcast %349 : f32 to vector<16x16xf32>
    %351 = arith.mulf %350, %348 : vector<16x16xf32>
    %352 = arith.addf %345, %351 : vector<16x16xf32>
    %c48 = arith.constant 48 : index
    %353 = memref.load %arg1[%c48] : memref<55xf32, #tpu.memory_space<smem>>
    %354 = vector.broadcast %353 : f32 to vector<16x16xf32>
    %355 = arith.mulf %354, %328 : vector<16x16xf32>
    %356 = arith.addf %352, %355 : vector<16x16xf32>
    %c49 = arith.constant 49 : index
    %357 = memref.load %arg1[%c49] : memref<55xf32, #tpu.memory_space<smem>>
    %358 = vector.broadcast %357 : f32 to vector<16x16xf32>
    %359 = arith.mulf %358, %21 : vector<16x16xf32>
    %360 = arith.addf %356, %359 : vector<16x16xf32>
    %c50 = arith.constant 50 : index
    %361 = memref.load %arg1[%c50] : memref<55xf32, #tpu.memory_space<smem>>
    %362 = vector.broadcast %361 : f32 to vector<16x16xf32>
    %363 = arith.mulf %362, %331 : vector<16x16xf32>
    %364 = arith.addf %360, %363 : vector<16x16xf32>
    %c15_i32_116 = arith.constant 15 : i32
    %365 = tpu.dynamic_rotate %328 by %c15_i32_116 dim 0 : vector<16x16xf32>, i32 -> vector<16x16xf32>
    %cst_117 = arith.constant 0.000000e+00 : f32
    %366 = vector.broadcast %cst_117 : f32 to vector<16x16xf32>
    %367 = arith.select %7, %365, %366 : vector<16x16xi1>, vector<16x16xf32>
    %c51 = arith.constant 51 : index
    %368 = memref.load %arg1[%c51] : memref<55xf32, #tpu.memory_space<smem>>
    %369 = vector.broadcast %368 : f32 to vector<16x16xf32>
    %370 = arith.mulf %369, %367 : vector<16x16xf32>
    %371 = arith.addf %364, %370 : vector<16x16xf32>
    %c15_i32_118 = arith.constant 15 : i32
    %372 = tpu.dynamic_rotate %21 by %c15_i32_118 dim 0 : vector<16x16xf32>, i32 -> vector<16x16xf32>
    %cst_119 = arith.constant 0.000000e+00 : f32
    %373 = vector.broadcast %cst_119 : f32 to vector<16x16xf32>
    %374 = arith.select %7, %372, %373 : vector<16x16xi1>, vector<16x16xf32>
    %c52 = arith.constant 52 : index
    %375 = memref.load %arg1[%c52] : memref<55xf32, #tpu.memory_space<smem>>
    %376 = vector.broadcast %375 : f32 to vector<16x16xf32>
    %377 = arith.mulf %376, %374 : vector<16x16xf32>
    %378 = arith.addf %371, %377 : vector<16x16xf32>
    %c15_i32_120 = arith.constant 15 : i32
    %379 = tpu.dynamic_rotate %331 by %c15_i32_120 dim 0 : vector<16x16xf32>, i32 -> vector<16x16xf32>
    %cst_121 = arith.constant 0.000000e+00 : f32
    %380 = vector.broadcast %cst_121 : f32 to vector<16x16xf32>
    %381 = arith.select %7, %379, %380 : vector<16x16xi1>, vector<16x16xf32>
    %c53 = arith.constant 53 : index
    %382 = memref.load %arg1[%c53] : memref<55xf32, #tpu.memory_space<smem>>
    %383 = vector.broadcast %382 : f32 to vector<16x16xf32>
    %384 = arith.mulf %383, %381 : vector<16x16xf32>
    %385 = arith.addf %378, %384 : vector<16x16xf32>
    %c0_122 = arith.constant 0 : index
    %c0_123 = arith.constant 0 : index
    %c0_124 = arith.constant 0 : index
    %386 = vector.load %arg9[%c0_122, %c0_123, %c0_124] : memref<1x16x16xf32, #tpu.memory_space<vmem>>, vector<1x16x16xf32>
    %387 = vector.shape_cast %386 : vector<1x16x16xf32> to vector<16x16xf32>
    %388 = vector.shape_cast %385 : vector<16x16xf32> to vector<1x16x16xf32>
    tpu.vector_store %arg9[%c0_122, %c0_123, %c0_124], %388 {strides = array<i32>} : memref<1x16x16xf32, #tpu.memory_space<vmem>>, vector<1x16x16xf32>,
    %c15_i32_125 = arith.constant 15 : i32
    %389 = tpu.dynamic_rotate %385 by %c15_i32_125 dim 1 : vector<16x16xf32>, i32 -> vector<16x16xf32>
    %390 = arith.subf %389, %385 : vector<16x16xf32>
    %cst_126 = arith.constant 0.000000e+00 : f32
    %391 = vector.broadcast %cst_126 : f32 to vector<16x16xf32>
    %392 = arith.select %3, %390, %391 : vector<16x16xi1>, vector<16x16xf32>
    %c15_i32_127 = arith.constant 15 : i32
    %393 = tpu.dynamic_rotate %385 by %c15_i32_127 dim 0 : vector<16x16xf32>, i32 -> vector<16x16xf32>
    %394 = arith.subf %393, %385 : vector<16x16xf32>
    %cst_128 = arith.constant 0.000000e+00 : f32
    %395 = vector.broadcast %cst_128 : f32 to vector<16x16xf32>
    %396 = arith.select %7, %394, %395 : vector<16x16xi1>, vector<16x16xf32>
    %cst_129 = arith.constant 0.000000e+00 : f32
    %397 = vector.broadcast %cst_129 : f32 to vector<16x16xf32>
    %398 = arith.subf %397, %392 : vector<16x16xf32>
    %cst_130 = arith.constant 0.000000e+00 : f32
    %399 = vector.broadcast %cst_130 : f32 to vector<16x16xf32>
    %400 = arith.subf %399, %396 : vector<16x16xf32>
    %cst_131 = arith.constant 1.000000e+00 : f32
    %401 = vector.broadcast %cst_131 : f32 to vector<16x16xf32>
    %402 = arith.mulf %398, %398 : vector<16x16xf32>
    %403 = arith.mulf %400, %400 : vector<16x16xf32>
    %404 = arith.addf %402, %403 : vector<16x16xf32>
    %405 = arith.mulf %401, %401 : vector<16x16xf32>
    %406 = arith.addf %404, %405 : vector<16x16xf32>
    %407 = math.rsqrt %406 : vector<16x16xf32>
    %408 = arith.mulf %398, %407 : vector<16x16xf32>
    %409 = arith.mulf %400, %407 : vector<16x16xf32>
    %410 = arith.mulf %401, %407 : vector<16x16xf32>
    %c0_132 = arith.constant 0 : index
    %c0_133 = arith.constant 0 : index
    %c0_134 = arith.constant 0 : index
    %c0_135 = arith.constant 0 : index
    %411 = vector.load %arg6[%c0_132, %c0_133, %c0_134, %c0_135] : memref<1x3x16x16xf32, #tpu.memory_space<vmem>>, vector<1x1x16x16xf32>
    %412 = vector.shape_cast %411 : vector<1x1x16x16xf32> to vector<16x16xf32>
    %413 = vector.shape_cast %408 : vector<16x16xf32> to vector<1x1x16x16xf32>
    tpu.vector_store %arg6[%c0_132, %c0_133, %c0_134, %c0_135], %413 {strides = array<i32>} : memref<1x3x16x16xf32, #tpu.memory_space<vmem>>, vector<1x1x16x16xf32>,
    %c0_136 = arith.constant 0 : index
    %c1_137 = arith.constant 1 : index
    %c0_138 = arith.constant 0 : index
    %c0_139 = arith.constant 0 : index
    %414 = vector.load %arg6[%c0_136, %c1_137, %c0_138, %c0_139] : memref<1x3x16x16xf32, #tpu.memory_space<vmem>>, vector<1x1x16x16xf32>
    %415 = vector.shape_cast %414 : vector<1x1x16x16xf32> to vector<16x16xf32>
    %416 = vector.shape_cast %409 : vector<16x16xf32> to vector<1x1x16x16xf32>
    tpu.vector_store %arg6[%c0_136, %c1_137, %c0_138, %c0_139], %416 {strides = array<i32>} : memref<1x3x16x16xf32, #tpu.memory_space<vmem>>, vector<1x1x16x16xf32>,
    %c0_140 = arith.constant 0 : index
    %c2_141 = arith.constant 2 : index
    %c0_142 = arith.constant 0 : index
    %c0_143 = arith.constant 0 : index
    %417 = vector.load %arg6[%c0_140, %c2_141, %c0_142, %c0_143] : memref<1x3x16x16xf32, #tpu.memory_space<vmem>>, vector<1x1x16x16xf32>
    %418 = vector.shape_cast %417 : vector<1x1x16x16xf32> to vector<16x16xf32>
    %419 = vector.shape_cast %410 : vector<16x16xf32> to vector<1x1x16x16xf32>
    tpu.vector_store %arg6[%c0_140, %c2_141, %c0_142, %c0_143], %419 {strides = array<i32>} : memref<1x3x16x16xf32, #tpu.memory_space<vmem>>, vector<1x1x16x16xf32>,
    %cst_144 = arith.constant 0.301511347 : f32
    %420 = vector.broadcast %cst_144 : f32 to vector<16x16xf32>
    %421 = arith.mulf %408, %420 : vector<16x16xf32>
    %cst_145 = arith.constant 0.301511347 : f32
    %422 = vector.broadcast %cst_145 : f32 to vector<16x16xf32>
    %423 = arith.mulf %409, %422 : vector<16x16xf32>
    %424 = arith.addf %421, %423 : vector<16x16xf32>
    %cst_146 = arith.constant 0.904534041 : f32
    %425 = vector.broadcast %cst_146 : f32 to vector<16x16xf32>
    %426 = arith.mulf %410, %425 : vector<16x16xf32>
    %427 = arith.addf %424, %426 : vector<16x16xf32>
    %cst_147 = arith.constant 0.000000e+00 : f32
    %428 = vector.broadcast %cst_147 : f32 to vector<16x16xf32>
    %429 = arith.maximumf %427, %428 : vector<16x16xf32>
    %430 = arith.mulf %11, %429 : vector<16x16xf32>
    %431 = arith.mulf %13, %429 : vector<16x16xf32>
    %432 = arith.mulf %15, %429 : vector<16x16xf32>
    %c0_148 = arith.constant 0 : index
    %c0_149 = arith.constant 0 : index
    %c0_150 = arith.constant 0 : index
    %c0_151 = arith.constant 0 : index
    %433 = vector.load %arg7[%c0_148, %c0_149, %c0_150, %c0_151] : memref<1x3x16x16xf32, #tpu.memory_space<vmem>>, vector<1x1x16x16xf32>
    %434 = vector.shape_cast %433 : vector<1x1x16x16xf32> to vector<16x16xf32>
    %435 = vector.shape_cast %430 : vector<16x16xf32> to vector<1x1x16x16xf32>
    tpu.vector_store %arg7[%c0_148, %c0_149, %c0_150, %c0_151], %435 {strides = array<i32>} : memref<1x3x16x16xf32, #tpu.memory_space<vmem>>, vector<1x1x16x16xf32>,
    %c0_152 = arith.constant 0 : index
    %c1_153 = arith.constant 1 : index
    %c0_154 = arith.constant 0 : index
    %c0_155 = arith.constant 0 : index
    %436 = vector.load %arg7[%c0_152, %c1_153, %c0_154, %c0_155] : memref<1x3x16x16xf32, #tpu.memory_space<vmem>>, vector<1x1x16x16xf32>
    %437 = vector.shape_cast %436 : vector<1x1x16x16xf32> to vector<16x16xf32>
    %438 = vector.shape_cast %431 : vector<16x16xf32> to vector<1x1x16x16xf32>
    tpu.vector_store %arg7[%c0_152, %c1_153, %c0_154, %c0_155], %438 {strides = array<i32>} : memref<1x3x16x16xf32, #tpu.memory_space<vmem>>, vector<1x1x16x16xf32>,
    %c0_156 = arith.constant 0 : index
    %c2_157 = arith.constant 2 : index
    %c0_158 = arith.constant 0 : index
    %c0_159 = arith.constant 0 : index
    %439 = vector.load %arg7[%c0_156, %c2_157, %c0_158, %c0_159] : memref<1x3x16x16xf32, #tpu.memory_space<vmem>>, vector<1x1x16x16xf32>
    %440 = vector.shape_cast %439 : vector<1x1x16x16xf32> to vector<16x16xf32>
    %441 = vector.shape_cast %432 : vector<16x16xf32> to vector<1x1x16x16xf32>
    tpu.vector_store %arg7[%c0_156, %c2_157, %c0_158, %c0_159], %441 {strides = array<i32>} : memref<1x3x16x16xf32, #tpu.memory_space<vmem>>, vector<1x1x16x16xf32>,
    %cst_160 = arith.constant 0.000000e+00 : f32
    %442 = vector.broadcast %cst_160 : f32 to vector<16x16xf32>
    %443 = arith.cmpf ogt, %429, %442 : vector<16x16xf32>
    %444 = arith.extui %443 : vector<16x16xi1> to vector<16x16xi32>
    %445 = arith.sitofp %444 : vector<16x16xi32> to vector<16x16xf32>
    %c0_161 = arith.constant 0 : index
    %c0_162 = arith.constant 0 : index
    %c0_163 = arith.constant 0 : index
    %c0_164 = arith.constant 0 : index
    %446 = vector.load %arg8[%c0_161, %c0_162, %c0_163, %c0_164] : memref<1x1x16x16xf32, #tpu.memory_space<vmem>>, vector<1x1x16x16xf32>
    %447 = vector.shape_cast %446 : vector<1x1x16x16xf32> to vector<16x16xf32>
    %448 = vector.shape_cast %445 : vector<16x16xf32> to vector<1x1x16x16xf32>
    tpu.vector_store %arg8[%c0_161, %c0_162, %c0_163, %c0_164], %448 {strides = array<i32>} : memref<1x1x16x16xf32, #tpu.memory_space<vmem>>, vector<1x1x16x16xf32>,
    %cst_165 = arith.constant 0.154487833 : f32
    %449 = vector.broadcast %cst_165 : f32 to vector<16x16xf32>
    %450 = arith.mulf %408, %449 : vector<16x16xf32>
    %cst_166 = arith.constant 0.154487833 : f32
    %451 = vector.broadcast %cst_166 : f32 to vector<16x16xf32>
    %452 = arith.mulf %409, %451 : vector<16x16xf32>
    %453 = arith.addf %450, %452 : vector<16x16xf32>
    %cst_167 = arith.constant 0.975841701 : f32
    %454 = vector.broadcast %cst_167 : f32 to vector<16x16xf32>
    %455 = arith.mulf %410, %454 : vector<16x16xf32>
    %456 = arith.addf %453, %455 : vector<16x16xf32>
    %cst_168 = arith.constant 0.000000e+00 : f32
    %457 = vector.broadcast %cst_168 : f32 to vector<16x16xf32>
    %458 = arith.maximumf %456, %457 : vector<16x16xf32>
    %459 = arith.mulf %458, %458 : vector<16x16xf32>
    %460 = arith.mulf %459, %459 : vector<16x16xf32>
    %461 = arith.mulf %460, %460 : vector<16x16xf32>
    %462 = arith.mulf %461, %461 : vector<16x16xf32>
    %463 = arith.mulf %462, %462 : vector<16x16xf32>
    %cst_169 = arith.constant 0.000000e+00 : f32
    %464 = vector.broadcast %cst_169 : f32 to vector<16x16xf32>
    %c270 = arith.constant 270 : index
    %465 = memref.load %arg2[%c270] : memref<273xf32, #tpu.memory_space<smem>>
    %466 = vector.broadcast %465 : f32 to vector<16x16xf32>
    %467 = arith.addf %464, %466 : vector<16x16xf32>
    %cst_170 = arith.constant 0.000000e+00 : f32
    %468 = vector.broadcast %cst_170 : f32 to vector<16x16xf32>
    %c271 = arith.constant 271 : index
    %469 = memref.load %arg2[%c271] : memref<273xf32, #tpu.memory_space<smem>>
    %470 = vector.broadcast %469 : f32 to vector<16x16xf32>
    %471 = arith.addf %468, %470 : vector<16x16xf32>
    %cst_171 = arith.constant 0.000000e+00 : f32
    %472 = vector.broadcast %cst_171 : f32 to vector<16x16xf32>
    %c272 = arith.constant 272 : index
    %473 = memref.load %arg2[%c272] : memref<273xf32, #tpu.memory_space<smem>>
    %474 = vector.broadcast %473 : f32 to vector<16x16xf32>
    %475 = arith.addf %472, %474 : vector<16x16xf32>
    %c1_i32_172 = arith.constant 1 : i32
    %476 = tpu.dynamic_rotate %11 by %c1_i32_172 dim 1 : vector<16x16xf32>, i32 -> vector<16x16xf32>
    %cst_173 = arith.constant 0.000000e+00 : f32
    %477 = vector.broadcast %cst_173 : f32 to vector<16x16xf32>
    %478 = arith.select %5, %476, %477 : vector<16x16xi1>, vector<16x16xf32>
    %c15_i32_174 = arith.constant 15 : i32
    %479 = tpu.dynamic_rotate %11 by %c15_i32_174 dim 1 : vector<16x16xf32>, i32 -> vector<16x16xf32>
    %cst_175 = arith.constant 0.000000e+00 : f32
    %480 = vector.broadcast %cst_175 : f32 to vector<16x16xf32>
    %481 = arith.select %3, %479, %480 : vector<16x16xi1>, vector<16x16xf32>
    %c1_i32_176 = arith.constant 1 : i32
    %482 = tpu.dynamic_rotate %478 by %c1_i32_176 dim 0 : vector<16x16xf32>, i32 -> vector<16x16xf32>
    %cst_177 = arith.constant 0.000000e+00 : f32
    %483 = vector.broadcast %cst_177 : f32 to vector<16x16xf32>
    %484 = arith.select %9, %482, %483 : vector<16x16xi1>, vector<16x16xf32>
    %c0_178 = arith.constant 0 : index
    %485 = memref.load %arg2[%c0_178] : memref<273xf32, #tpu.memory_space<smem>>
    %486 = vector.broadcast %485 : f32 to vector<16x16xf32>
    %487 = arith.mulf %486, %484 : vector<16x16xf32>
    %488 = arith.addf %467, %487 : vector<16x16xf32>
    %c90 = arith.constant 90 : index
    %489 = memref.load %arg2[%c90] : memref<273xf32, #tpu.memory_space<smem>>
    %490 = vector.broadcast %489 : f32 to vector<16x16xf32>
    %491 = arith.mulf %490, %484 : vector<16x16xf32>
    %492 = arith.addf %471, %491 : vector<16x16xf32>
    %c180 = arith.constant 180 : index
    %493 = memref.load %arg2[%c180] : memref<273xf32, #tpu.memory_space<smem>>
    %494 = vector.broadcast %493 : f32 to vector<16x16xf32>
    %495 = arith.mulf %494, %484 : vector<16x16xf32>
    %496 = arith.addf %475, %495 : vector<16x16xf32>
    %c1_i32_179 = arith.constant 1 : i32
    %497 = tpu.dynamic_rotate %11 by %c1_i32_179 dim 0 : vector<16x16xf32>, i32 -> vector<16x16xf32>
    %cst_180 = arith.constant 0.000000e+00 : f32
    %498 = vector.broadcast %cst_180 : f32 to vector<16x16xf32>
    %499 = arith.select %9, %497, %498 : vector<16x16xi1>, vector<16x16xf32>
    %c1_181 = arith.constant 1 : index
    %500 = memref.load %arg2[%c1_181] : memref<273xf32, #tpu.memory_space<smem>>
    %501 = vector.broadcast %500 : f32 to vector<16x16xf32>
    %502 = arith.mulf %501, %499 : vector<16x16xf32>
    %503 = arith.addf %488, %502 : vector<16x16xf32>
    %c91 = arith.constant 91 : index
    %504 = memref.load %arg2[%c91] : memref<273xf32, #tpu.memory_space<smem>>
    %505 = vector.broadcast %504 : f32 to vector<16x16xf32>
    %506 = arith.mulf %505, %499 : vector<16x16xf32>
    %507 = arith.addf %492, %506 : vector<16x16xf32>
    %c181 = arith.constant 181 : index
    %508 = memref.load %arg2[%c181] : memref<273xf32, #tpu.memory_space<smem>>
    %509 = vector.broadcast %508 : f32 to vector<16x16xf32>
    %510 = arith.mulf %509, %499 : vector<16x16xf32>
    %511 = arith.addf %496, %510 : vector<16x16xf32>
    %c1_i32_182 = arith.constant 1 : i32
    %512 = tpu.dynamic_rotate %481 by %c1_i32_182 dim 0 : vector<16x16xf32>, i32 -> vector<16x16xf32>
    %cst_183 = arith.constant 0.000000e+00 : f32
    %513 = vector.broadcast %cst_183 : f32 to vector<16x16xf32>
    %514 = arith.select %9, %512, %513 : vector<16x16xi1>, vector<16x16xf32>
    %c2_184 = arith.constant 2 : index
    %515 = memref.load %arg2[%c2_184] : memref<273xf32, #tpu.memory_space<smem>>
    %516 = vector.broadcast %515 : f32 to vector<16x16xf32>
    %517 = arith.mulf %516, %514 : vector<16x16xf32>
    %518 = arith.addf %503, %517 : vector<16x16xf32>
    %c92 = arith.constant 92 : index
    %519 = memref.load %arg2[%c92] : memref<273xf32, #tpu.memory_space<smem>>
    %520 = vector.broadcast %519 : f32 to vector<16x16xf32>
    %521 = arith.mulf %520, %514 : vector<16x16xf32>
    %522 = arith.addf %507, %521 : vector<16x16xf32>
    %c182 = arith.constant 182 : index
    %523 = memref.load %arg2[%c182] : memref<273xf32, #tpu.memory_space<smem>>
    %524 = vector.broadcast %523 : f32 to vector<16x16xf32>
    %525 = arith.mulf %524, %514 : vector<16x16xf32>
    %526 = arith.addf %511, %525 : vector<16x16xf32>
    %c3_185 = arith.constant 3 : index
    %527 = memref.load %arg2[%c3_185] : memref<273xf32, #tpu.memory_space<smem>>
    %528 = vector.broadcast %527 : f32 to vector<16x16xf32>
    %529 = arith.mulf %528, %478 : vector<16x16xf32>
    %530 = arith.addf %518, %529 : vector<16x16xf32>
    %c93 = arith.constant 93 : index
    %531 = memref.load %arg2[%c93] : memref<273xf32, #tpu.memory_space<smem>>
    %532 = vector.broadcast %531 : f32 to vector<16x16xf32>
    %533 = arith.mulf %532, %478 : vector<16x16xf32>
    %534 = arith.addf %522, %533 : vector<16x16xf32>
    %c183 = arith.constant 183 : index
    %535 = memref.load %arg2[%c183] : memref<273xf32, #tpu.memory_space<smem>>
    %536 = vector.broadcast %535 : f32 to vector<16x16xf32>
    %537 = arith.mulf %536, %478 : vector<16x16xf32>
    %538 = arith.addf %526, %537 : vector<16x16xf32>
    %c4_186 = arith.constant 4 : index
    %539 = memref.load %arg2[%c4_186] : memref<273xf32, #tpu.memory_space<smem>>
    %540 = vector.broadcast %539 : f32 to vector<16x16xf32>
    %541 = arith.mulf %540, %11 : vector<16x16xf32>
    %542 = arith.addf %530, %541 : vector<16x16xf32>
    %c94 = arith.constant 94 : index
    %543 = memref.load %arg2[%c94] : memref<273xf32, #tpu.memory_space<smem>>
    %544 = vector.broadcast %543 : f32 to vector<16x16xf32>
    %545 = arith.mulf %544, %11 : vector<16x16xf32>
    %546 = arith.addf %534, %545 : vector<16x16xf32>
    %c184 = arith.constant 184 : index
    %547 = memref.load %arg2[%c184] : memref<273xf32, #tpu.memory_space<smem>>
    %548 = vector.broadcast %547 : f32 to vector<16x16xf32>
    %549 = arith.mulf %548, %11 : vector<16x16xf32>
    %550 = arith.addf %538, %549 : vector<16x16xf32>
    %c5_187 = arith.constant 5 : index
    %551 = memref.load %arg2[%c5_187] : memref<273xf32, #tpu.memory_space<smem>>
    %552 = vector.broadcast %551 : f32 to vector<16x16xf32>
    %553 = arith.mulf %552, %481 : vector<16x16xf32>
    %554 = arith.addf %542, %553 : vector<16x16xf32>
    %c95 = arith.constant 95 : index
    %555 = memref.load %arg2[%c95] : memref<273xf32, #tpu.memory_space<smem>>
    %556 = vector.broadcast %555 : f32 to vector<16x16xf32>
    %557 = arith.mulf %556, %481 : vector<16x16xf32>
    %558 = arith.addf %546, %557 : vector<16x16xf32>
    %c185 = arith.constant 185 : index
    %559 = memref.load %arg2[%c185] : memref<273xf32, #tpu.memory_space<smem>>
    %560 = vector.broadcast %559 : f32 to vector<16x16xf32>
    %561 = arith.mulf %560, %481 : vector<16x16xf32>
    %562 = arith.addf %550, %561 : vector<16x16xf32>
    %c15_i32_188 = arith.constant 15 : i32
    %563 = tpu.dynamic_rotate %478 by %c15_i32_188 dim 0 : vector<16x16xf32>, i32 -> vector<16x16xf32>
    %cst_189 = arith.constant 0.000000e+00 : f32
    %564 = vector.broadcast %cst_189 : f32 to vector<16x16xf32>
    %565 = arith.select %7, %563, %564 : vector<16x16xi1>, vector<16x16xf32>
    %c6_190 = arith.constant 6 : index
    %566 = memref.load %arg2[%c6_190] : memref<273xf32, #tpu.memory_space<smem>>
    %567 = vector.broadcast %566 : f32 to vector<16x16xf32>
    %568 = arith.mulf %567, %565 : vector<16x16xf32>
    %569 = arith.addf %554, %568 : vector<16x16xf32>
    %c96 = arith.constant 96 : index
    %570 = memref.load %arg2[%c96] : memref<273xf32, #tpu.memory_space<smem>>
    %571 = vector.broadcast %570 : f32 to vector<16x16xf32>
    %572 = arith.mulf %571, %565 : vector<16x16xf32>
    %573 = arith.addf %558, %572 : vector<16x16xf32>
    %c186 = arith.constant 186 : index
    %574 = memref.load %arg2[%c186] : memref<273xf32, #tpu.memory_space<smem>>
    %575 = vector.broadcast %574 : f32 to vector<16x16xf32>
    %576 = arith.mulf %575, %565 : vector<16x16xf32>
    %577 = arith.addf %562, %576 : vector<16x16xf32>
    %c15_i32_191 = arith.constant 15 : i32
    %578 = tpu.dynamic_rotate %11 by %c15_i32_191 dim 0 : vector<16x16xf32>, i32 -> vector<16x16xf32>
    %cst_192 = arith.constant 0.000000e+00 : f32
    %579 = vector.broadcast %cst_192 : f32 to vector<16x16xf32>
    %580 = arith.select %7, %578, %579 : vector<16x16xi1>, vector<16x16xf32>
    %c7_193 = arith.constant 7 : index
    %581 = memref.load %arg2[%c7_193] : memref<273xf32, #tpu.memory_space<smem>>
    %582 = vector.broadcast %581 : f32 to vector<16x16xf32>
    %583 = arith.mulf %582, %580 : vector<16x16xf32>
    %584 = arith.addf %569, %583 : vector<16x16xf32>
    %c97 = arith.constant 97 : index
    %585 = memref.load %arg2[%c97] : memref<273xf32, #tpu.memory_space<smem>>
    %586 = vector.broadcast %585 : f32 to vector<16x16xf32>
    %587 = arith.mulf %586, %580 : vector<16x16xf32>
    %588 = arith.addf %573, %587 : vector<16x16xf32>
    %c187 = arith.constant 187 : index
    %589 = memref.load %arg2[%c187] : memref<273xf32, #tpu.memory_space<smem>>
    %590 = vector.broadcast %589 : f32 to vector<16x16xf32>
    %591 = arith.mulf %590, %580 : vector<16x16xf32>
    %592 = arith.addf %577, %591 : vector<16x16xf32>
    %c15_i32_194 = arith.constant 15 : i32
    %593 = tpu.dynamic_rotate %481 by %c15_i32_194 dim 0 : vector<16x16xf32>, i32 -> vector<16x16xf32>
    %cst_195 = arith.constant 0.000000e+00 : f32
    %594 = vector.broadcast %cst_195 : f32 to vector<16x16xf32>
    %595 = arith.select %7, %593, %594 : vector<16x16xi1>, vector<16x16xf32>
    %c8_196 = arith.constant 8 : index
    %596 = memref.load %arg2[%c8_196] : memref<273xf32, #tpu.memory_space<smem>>
    %597 = vector.broadcast %596 : f32 to vector<16x16xf32>
    %598 = arith.mulf %597, %595 : vector<16x16xf32>
    %599 = arith.addf %584, %598 : vector<16x16xf32>
    %c98 = arith.constant 98 : index
    %600 = memref.load %arg2[%c98] : memref<273xf32, #tpu.memory_space<smem>>
    %601 = vector.broadcast %600 : f32 to vector<16x16xf32>
    %602 = arith.mulf %601, %595 : vector<16x16xf32>
    %603 = arith.addf %588, %602 : vector<16x16xf32>
    %c188 = arith.constant 188 : index
    %604 = memref.load %arg2[%c188] : memref<273xf32, #tpu.memory_space<smem>>
    %605 = vector.broadcast %604 : f32 to vector<16x16xf32>
    %606 = arith.mulf %605, %595 : vector<16x16xf32>
    %607 = arith.addf %592, %606 : vector<16x16xf32>
    %c1_i32_197 = arith.constant 1 : i32
    %608 = tpu.dynamic_rotate %13 by %c1_i32_197 dim 1 : vector<16x16xf32>, i32 -> vector<16x16xf32>
    %cst_198 = arith.constant 0.000000e+00 : f32
    %609 = vector.broadcast %cst_198 : f32 to vector<16x16xf32>
    %610 = arith.select %5, %608, %609 : vector<16x16xi1>, vector<16x16xf32>
    %c15_i32_199 = arith.constant 15 : i32
    %611 = tpu.dynamic_rotate %13 by %c15_i32_199 dim 1 : vector<16x16xf32>, i32 -> vector<16x16xf32>
    %cst_200 = arith.constant 0.000000e+00 : f32
    %612 = vector.broadcast %cst_200 : f32 to vector<16x16xf32>
    %613 = arith.select %3, %611, %612 : vector<16x16xi1>, vector<16x16xf32>
    %c1_i32_201 = arith.constant 1 : i32
    %614 = tpu.dynamic_rotate %610 by %c1_i32_201 dim 0 : vector<16x16xf32>, i32 -> vector<16x16xf32>
    %cst_202 = arith.constant 0.000000e+00 : f32
    %615 = vector.broadcast %cst_202 : f32 to vector<16x16xf32>
    %616 = arith.select %9, %614, %615 : vector<16x16xi1>, vector<16x16xf32>
    %c9_203 = arith.constant 9 : index
    %617 = memref.load %arg2[%c9_203] : memref<273xf32, #tpu.memory_space<smem>>
    %618 = vector.broadcast %617 : f32 to vector<16x16xf32>
    %619 = arith.mulf %618, %616 : vector<16x16xf32>
    %620 = arith.addf %599, %619 : vector<16x16xf32>
    %c99 = arith.constant 99 : index
    %621 = memref.load %arg2[%c99] : memref<273xf32, #tpu.memory_space<smem>>
    %622 = vector.broadcast %621 : f32 to vector<16x16xf32>
    %623 = arith.mulf %622, %616 : vector<16x16xf32>
    %624 = arith.addf %603, %623 : vector<16x16xf32>
    %c189 = arith.constant 189 : index
    %625 = memref.load %arg2[%c189] : memref<273xf32, #tpu.memory_space<smem>>
    %626 = vector.broadcast %625 : f32 to vector<16x16xf32>
    %627 = arith.mulf %626, %616 : vector<16x16xf32>
    %628 = arith.addf %607, %627 : vector<16x16xf32>
    %c1_i32_204 = arith.constant 1 : i32
    %629 = tpu.dynamic_rotate %13 by %c1_i32_204 dim 0 : vector<16x16xf32>, i32 -> vector<16x16xf32>
    %cst_205 = arith.constant 0.000000e+00 : f32
    %630 = vector.broadcast %cst_205 : f32 to vector<16x16xf32>
    %631 = arith.select %9, %629, %630 : vector<16x16xi1>, vector<16x16xf32>
    %c10_206 = arith.constant 10 : index
    %632 = memref.load %arg2[%c10_206] : memref<273xf32, #tpu.memory_space<smem>>
    %633 = vector.broadcast %632 : f32 to vector<16x16xf32>
    %634 = arith.mulf %633, %631 : vector<16x16xf32>
    %635 = arith.addf %620, %634 : vector<16x16xf32>
    %c100 = arith.constant 100 : index
    %636 = memref.load %arg2[%c100] : memref<273xf32, #tpu.memory_space<smem>>
    %637 = vector.broadcast %636 : f32 to vector<16x16xf32>
    %638 = arith.mulf %637, %631 : vector<16x16xf32>
    %639 = arith.addf %624, %638 : vector<16x16xf32>
    %c190 = arith.constant 190 : index
    %640 = memref.load %arg2[%c190] : memref<273xf32, #tpu.memory_space<smem>>
    %641 = vector.broadcast %640 : f32 to vector<16x16xf32>
    %642 = arith.mulf %641, %631 : vector<16x16xf32>
    %643 = arith.addf %628, %642 : vector<16x16xf32>
    %c1_i32_207 = arith.constant 1 : i32
    %644 = tpu.dynamic_rotate %613 by %c1_i32_207 dim 0 : vector<16x16xf32>, i32 -> vector<16x16xf32>
    %cst_208 = arith.constant 0.000000e+00 : f32
    %645 = vector.broadcast %cst_208 : f32 to vector<16x16xf32>
    %646 = arith.select %9, %644, %645 : vector<16x16xi1>, vector<16x16xf32>
    %c11_209 = arith.constant 11 : index
    %647 = memref.load %arg2[%c11_209] : memref<273xf32, #tpu.memory_space<smem>>
    %648 = vector.broadcast %647 : f32 to vector<16x16xf32>
    %649 = arith.mulf %648, %646 : vector<16x16xf32>
    %650 = arith.addf %635, %649 : vector<16x16xf32>
    %c101 = arith.constant 101 : index
    %651 = memref.load %arg2[%c101] : memref<273xf32, #tpu.memory_space<smem>>
    %652 = vector.broadcast %651 : f32 to vector<16x16xf32>
    %653 = arith.mulf %652, %646 : vector<16x16xf32>
    %654 = arith.addf %639, %653 : vector<16x16xf32>
    %c191 = arith.constant 191 : index
    %655 = memref.load %arg2[%c191] : memref<273xf32, #tpu.memory_space<smem>>
    %656 = vector.broadcast %655 : f32 to vector<16x16xf32>
    %657 = arith.mulf %656, %646 : vector<16x16xf32>
    %658 = arith.addf %643, %657 : vector<16x16xf32>
    %c12_210 = arith.constant 12 : index
    %659 = memref.load %arg2[%c12_210] : memref<273xf32, #tpu.memory_space<smem>>
    %660 = vector.broadcast %659 : f32 to vector<16x16xf32>
    %661 = arith.mulf %660, %610 : vector<16x16xf32>
    %662 = arith.addf %650, %661 : vector<16x16xf32>
    %c102 = arith.constant 102 : index
    %663 = memref.load %arg2[%c102] : memref<273xf32, #tpu.memory_space<smem>>
    %664 = vector.broadcast %663 : f32 to vector<16x16xf32>
    %665 = arith.mulf %664, %610 : vector<16x16xf32>
    %666 = arith.addf %654, %665 : vector<16x16xf32>
    %c192 = arith.constant 192 : index
    %667 = memref.load %arg2[%c192] : memref<273xf32, #tpu.memory_space<smem>>
    %668 = vector.broadcast %667 : f32 to vector<16x16xf32>
    %669 = arith.mulf %668, %610 : vector<16x16xf32>
    %670 = arith.addf %658, %669 : vector<16x16xf32>
    %c13_211 = arith.constant 13 : index
    %671 = memref.load %arg2[%c13_211] : memref<273xf32, #tpu.memory_space<smem>>
    %672 = vector.broadcast %671 : f32 to vector<16x16xf32>
    %673 = arith.mulf %672, %13 : vector<16x16xf32>
    %674 = arith.addf %662, %673 : vector<16x16xf32>
    %c103 = arith.constant 103 : index
    %675 = memref.load %arg2[%c103] : memref<273xf32, #tpu.memory_space<smem>>
    %676 = vector.broadcast %675 : f32 to vector<16x16xf32>
    %677 = arith.mulf %676, %13 : vector<16x16xf32>
    %678 = arith.addf %666, %677 : vector<16x16xf32>
    %c193 = arith.constant 193 : index
    %679 = memref.load %arg2[%c193] : memref<273xf32, #tpu.memory_space<smem>>
    %680 = vector.broadcast %679 : f32 to vector<16x16xf32>
    %681 = arith.mulf %680, %13 : vector<16x16xf32>
    %682 = arith.addf %670, %681 : vector<16x16xf32>
    %c14_212 = arith.constant 14 : index
    %683 = memref.load %arg2[%c14_212] : memref<273xf32, #tpu.memory_space<smem>>
    %684 = vector.broadcast %683 : f32 to vector<16x16xf32>
    %685 = arith.mulf %684, %613 : vector<16x16xf32>
    %686 = arith.addf %674, %685 : vector<16x16xf32>
    %c104 = arith.constant 104 : index
    %687 = memref.load %arg2[%c104] : memref<273xf32, #tpu.memory_space<smem>>
    %688 = vector.broadcast %687 : f32 to vector<16x16xf32>
    %689 = arith.mulf %688, %613 : vector<16x16xf32>
    %690 = arith.addf %678, %689 : vector<16x16xf32>
    %c194 = arith.constant 194 : index
    %691 = memref.load %arg2[%c194] : memref<273xf32, #tpu.memory_space<smem>>
    %692 = vector.broadcast %691 : f32 to vector<16x16xf32>
    %693 = arith.mulf %692, %613 : vector<16x16xf32>
    %694 = arith.addf %682, %693 : vector<16x16xf32>
    %c15_i32_213 = arith.constant 15 : i32
    %695 = tpu.dynamic_rotate %610 by %c15_i32_213 dim 0 : vector<16x16xf32>, i32 -> vector<16x16xf32>
    %cst_214 = arith.constant 0.000000e+00 : f32
    %696 = vector.broadcast %cst_214 : f32 to vector<16x16xf32>
    %697 = arith.select %7, %695, %696 : vector<16x16xi1>, vector<16x16xf32>
    %c15_215 = arith.constant 15 : index
    %698 = memref.load %arg2[%c15_215] : memref<273xf32, #tpu.memory_space<smem>>
    %699 = vector.broadcast %698 : f32 to vector<16x16xf32>
    %700 = arith.mulf %699, %697 : vector<16x16xf32>
    %701 = arith.addf %686, %700 : vector<16x16xf32>
    %c105 = arith.constant 105 : index
    %702 = memref.load %arg2[%c105] : memref<273xf32, #tpu.memory_space<smem>>
    %703 = vector.broadcast %702 : f32 to vector<16x16xf32>
    %704 = arith.mulf %703, %697 : vector<16x16xf32>
    %705 = arith.addf %690, %704 : vector<16x16xf32>
    %c195 = arith.constant 195 : index
    %706 = memref.load %arg2[%c195] : memref<273xf32, #tpu.memory_space<smem>>
    %707 = vector.broadcast %706 : f32 to vector<16x16xf32>
    %708 = arith.mulf %707, %697 : vector<16x16xf32>
    %709 = arith.addf %694, %708 : vector<16x16xf32>
    %c15_i32_216 = arith.constant 15 : i32
    %710 = tpu.dynamic_rotate %13 by %c15_i32_216 dim 0 : vector<16x16xf32>, i32 -> vector<16x16xf32>
    %cst_217 = arith.constant 0.000000e+00 : f32
    %711 = vector.broadcast %cst_217 : f32 to vector<16x16xf32>
    %712 = arith.select %7, %710, %711 : vector<16x16xi1>, vector<16x16xf32>
    %c16_218 = arith.constant 16 : index
    %713 = memref.load %arg2[%c16_218] : memref<273xf32, #tpu.memory_space<smem>>
    %714 = vector.broadcast %713 : f32 to vector<16x16xf32>
    %715 = arith.mulf %714, %712 : vector<16x16xf32>
    %716 = arith.addf %701, %715 : vector<16x16xf32>
    %c106 = arith.constant 106 : index
    %717 = memref.load %arg2[%c106] : memref<273xf32, #tpu.memory_space<smem>>
    %718 = vector.broadcast %717 : f32 to vector<16x16xf32>
    %719 = arith.mulf %718, %712 : vector<16x16xf32>
    %720 = arith.addf %705, %719 : vector<16x16xf32>
    %c196 = arith.constant 196 : index
    %721 = memref.load %arg2[%c196] : memref<273xf32, #tpu.memory_space<smem>>
    %722 = vector.broadcast %721 : f32 to vector<16x16xf32>
    %723 = arith.mulf %722, %712 : vector<16x16xf32>
    %724 = arith.addf %709, %723 : vector<16x16xf32>
    %c15_i32_219 = arith.constant 15 : i32
    %725 = tpu.dynamic_rotate %613 by %c15_i32_219 dim 0 : vector<16x16xf32>, i32 -> vector<16x16xf32>
    %cst_220 = arith.constant 0.000000e+00 : f32
    %726 = vector.broadcast %cst_220 : f32 to vector<16x16xf32>
    %727 = arith.select %7, %725, %726 : vector<16x16xi1>, vector<16x16xf32>
    %c17_221 = arith.constant 17 : index
    %728 = memref.load %arg2[%c17_221] : memref<273xf32, #tpu.memory_space<smem>>
    %729 = vector.broadcast %728 : f32 to vector<16x16xf32>
    %730 = arith.mulf %729, %727 : vector<16x16xf32>
    %731 = arith.addf %716, %730 : vector<16x16xf32>
    %c107 = arith.constant 107 : index
    %732 = memref.load %arg2[%c107] : memref<273xf32, #tpu.memory_space<smem>>
    %733 = vector.broadcast %732 : f32 to vector<16x16xf32>
    %734 = arith.mulf %733, %727 : vector<16x16xf32>
    %735 = arith.addf %720, %734 : vector<16x16xf32>
    %c197 = arith.constant 197 : index
    %736 = memref.load %arg2[%c197] : memref<273xf32, #tpu.memory_space<smem>>
    %737 = vector.broadcast %736 : f32 to vector<16x16xf32>
    %738 = arith.mulf %737, %727 : vector<16x16xf32>
    %739 = arith.addf %724, %738 : vector<16x16xf32>
    %c1_i32_222 = arith.constant 1 : i32
    %740 = tpu.dynamic_rotate %15 by %c1_i32_222 dim 1 : vector<16x16xf32>, i32 -> vector<16x16xf32>
    %cst_223 = arith.constant 0.000000e+00 : f32
    %741 = vector.broadcast %cst_223 : f32 to vector<16x16xf32>
    %742 = arith.select %5, %740, %741 : vector<16x16xi1>, vector<16x16xf32>
    %c15_i32_224 = arith.constant 15 : i32
    %743 = tpu.dynamic_rotate %15 by %c15_i32_224 dim 1 : vector<16x16xf32>, i32 -> vector<16x16xf32>
    %cst_225 = arith.constant 0.000000e+00 : f32
    %744 = vector.broadcast %cst_225 : f32 to vector<16x16xf32>
    %745 = arith.select %3, %743, %744 : vector<16x16xi1>, vector<16x16xf32>
    %c1_i32_226 = arith.constant 1 : i32
    %746 = tpu.dynamic_rotate %742 by %c1_i32_226 dim 0 : vector<16x16xf32>, i32 -> vector<16x16xf32>
    %cst_227 = arith.constant 0.000000e+00 : f32
    %747 = vector.broadcast %cst_227 : f32 to vector<16x16xf32>
    %748 = arith.select %9, %746, %747 : vector<16x16xi1>, vector<16x16xf32>
    %c18_228 = arith.constant 18 : index
    %749 = memref.load %arg2[%c18_228] : memref<273xf32, #tpu.memory_space<smem>>
    %750 = vector.broadcast %749 : f32 to vector<16x16xf32>
    %751 = arith.mulf %750, %748 : vector<16x16xf32>
    %752 = arith.addf %731, %751 : vector<16x16xf32>
    %c108 = arith.constant 108 : index
    %753 = memref.load %arg2[%c108] : memref<273xf32, #tpu.memory_space<smem>>
    %754 = vector.broadcast %753 : f32 to vector<16x16xf32>
    %755 = arith.mulf %754, %748 : vector<16x16xf32>
    %756 = arith.addf %735, %755 : vector<16x16xf32>
    %c198 = arith.constant 198 : index
    %757 = memref.load %arg2[%c198] : memref<273xf32, #tpu.memory_space<smem>>
    %758 = vector.broadcast %757 : f32 to vector<16x16xf32>
    %759 = arith.mulf %758, %748 : vector<16x16xf32>
    %760 = arith.addf %739, %759 : vector<16x16xf32>
    %c1_i32_229 = arith.constant 1 : i32
    %761 = tpu.dynamic_rotate %15 by %c1_i32_229 dim 0 : vector<16x16xf32>, i32 -> vector<16x16xf32>
    %cst_230 = arith.constant 0.000000e+00 : f32
    %762 = vector.broadcast %cst_230 : f32 to vector<16x16xf32>
    %763 = arith.select %9, %761, %762 : vector<16x16xi1>, vector<16x16xf32>
    %c19_231 = arith.constant 19 : index
    %764 = memref.load %arg2[%c19_231] : memref<273xf32, #tpu.memory_space<smem>>
    %765 = vector.broadcast %764 : f32 to vector<16x16xf32>
    %766 = arith.mulf %765, %763 : vector<16x16xf32>
    %767 = arith.addf %752, %766 : vector<16x16xf32>
    %c109 = arith.constant 109 : index
    %768 = memref.load %arg2[%c109] : memref<273xf32, #tpu.memory_space<smem>>
    %769 = vector.broadcast %768 : f32 to vector<16x16xf32>
    %770 = arith.mulf %769, %763 : vector<16x16xf32>
    %771 = arith.addf %756, %770 : vector<16x16xf32>
    %c199 = arith.constant 199 : index
    %772 = memref.load %arg2[%c199] : memref<273xf32, #tpu.memory_space<smem>>
    %773 = vector.broadcast %772 : f32 to vector<16x16xf32>
    %774 = arith.mulf %773, %763 : vector<16x16xf32>
    %775 = arith.addf %760, %774 : vector<16x16xf32>
    %c1_i32_232 = arith.constant 1 : i32
    %776 = tpu.dynamic_rotate %745 by %c1_i32_232 dim 0 : vector<16x16xf32>, i32 -> vector<16x16xf32>
    %cst_233 = arith.constant 0.000000e+00 : f32
    %777 = vector.broadcast %cst_233 : f32 to vector<16x16xf32>
    %778 = arith.select %9, %776, %777 : vector<16x16xi1>, vector<16x16xf32>
    %c20_234 = arith.constant 20 : index
    %779 = memref.load %arg2[%c20_234] : memref<273xf32, #tpu.memory_space<smem>>
    %780 = vector.broadcast %779 : f32 to vector<16x16xf32>
    %781 = arith.mulf %780, %778 : vector<16x16xf32>
    %782 = arith.addf %767, %781 : vector<16x16xf32>
    %c110 = arith.constant 110 : index
    %783 = memref.load %arg2[%c110] : memref<273xf32, #tpu.memory_space<smem>>
    %784 = vector.broadcast %783 : f32 to vector<16x16xf32>
    %785 = arith.mulf %784, %778 : vector<16x16xf32>
    %786 = arith.addf %771, %785 : vector<16x16xf32>
    %c200 = arith.constant 200 : index
    %787 = memref.load %arg2[%c200] : memref<273xf32, #tpu.memory_space<smem>>
    %788 = vector.broadcast %787 : f32 to vector<16x16xf32>
    %789 = arith.mulf %788, %778 : vector<16x16xf32>
    %790 = arith.addf %775, %789 : vector<16x16xf32>
    %c21_235 = arith.constant 21 : index
    %791 = memref.load %arg2[%c21_235] : memref<273xf32, #tpu.memory_space<smem>>
    %792 = vector.broadcast %791 : f32 to vector<16x16xf32>
    %793 = arith.mulf %792, %742 : vector<16x16xf32>
    %794 = arith.addf %782, %793 : vector<16x16xf32>
    %c111 = arith.constant 111 : index
    %795 = memref.load %arg2[%c111] : memref<273xf32, #tpu.memory_space<smem>>
    %796 = vector.broadcast %795 : f32 to vector<16x16xf32>
    %797 = arith.mulf %796, %742 : vector<16x16xf32>
    %798 = arith.addf %786, %797 : vector<16x16xf32>
    %c201 = arith.constant 201 : index
    %799 = memref.load %arg2[%c201] : memref<273xf32, #tpu.memory_space<smem>>
    %800 = vector.broadcast %799 : f32 to vector<16x16xf32>
    %801 = arith.mulf %800, %742 : vector<16x16xf32>
    %802 = arith.addf %790, %801 : vector<16x16xf32>
    %c22_236 = arith.constant 22 : index
    %803 = memref.load %arg2[%c22_236] : memref<273xf32, #tpu.memory_space<smem>>
    %804 = vector.broadcast %803 : f32 to vector<16x16xf32>
    %805 = arith.mulf %804, %15 : vector<16x16xf32>
    %806 = arith.addf %794, %805 : vector<16x16xf32>
    %c112 = arith.constant 112 : index
    %807 = memref.load %arg2[%c112] : memref<273xf32, #tpu.memory_space<smem>>
    %808 = vector.broadcast %807 : f32 to vector<16x16xf32>
    %809 = arith.mulf %808, %15 : vector<16x16xf32>
    %810 = arith.addf %798, %809 : vector<16x16xf32>
    %c202 = arith.constant 202 : index
    %811 = memref.load %arg2[%c202] : memref<273xf32, #tpu.memory_space<smem>>
    %812 = vector.broadcast %811 : f32 to vector<16x16xf32>
    %813 = arith.mulf %812, %15 : vector<16x16xf32>
    %814 = arith.addf %802, %813 : vector<16x16xf32>
    %c23_237 = arith.constant 23 : index
    %815 = memref.load %arg2[%c23_237] : memref<273xf32, #tpu.memory_space<smem>>
    %816 = vector.broadcast %815 : f32 to vector<16x16xf32>
    %817 = arith.mulf %816, %745 : vector<16x16xf32>
    %818 = arith.addf %806, %817 : vector<16x16xf32>
    %c113 = arith.constant 113 : index
    %819 = memref.load %arg2[%c113] : memref<273xf32, #tpu.memory_space<smem>>
    %820 = vector.broadcast %819 : f32 to vector<16x16xf32>
    %821 = arith.mulf %820, %745 : vector<16x16xf32>
    %822 = arith.addf %810, %821 : vector<16x16xf32>
    %c203 = arith.constant 203 : index
    %823 = memref.load %arg2[%c203] : memref<273xf32, #tpu.memory_space<smem>>
    %824 = vector.broadcast %823 : f32 to vector<16x16xf32>
    %825 = arith.mulf %824, %745 : vector<16x16xf32>
    %826 = arith.addf %814, %825 : vector<16x16xf32>
    %c15_i32_238 = arith.constant 15 : i32
    %827 = tpu.dynamic_rotate %742 by %c15_i32_238 dim 0 : vector<16x16xf32>, i32 -> vector<16x16xf32>
    %cst_239 = arith.constant 0.000000e+00 : f32
    %828 = vector.broadcast %cst_239 : f32 to vector<16x16xf32>
    %829 = arith.select %7, %827, %828 : vector<16x16xi1>, vector<16x16xf32>
    %c24_240 = arith.constant 24 : index
    %830 = memref.load %arg2[%c24_240] : memref<273xf32, #tpu.memory_space<smem>>
    %831 = vector.broadcast %830 : f32 to vector<16x16xf32>
    %832 = arith.mulf %831, %829 : vector<16x16xf32>
    %833 = arith.addf %818, %832 : vector<16x16xf32>
    %c114 = arith.constant 114 : index
    %834 = memref.load %arg2[%c114] : memref<273xf32, #tpu.memory_space<smem>>
    %835 = vector.broadcast %834 : f32 to vector<16x16xf32>
    %836 = arith.mulf %835, %829 : vector<16x16xf32>
    %837 = arith.addf %822, %836 : vector<16x16xf32>
    %c204 = arith.constant 204 : index
    %838 = memref.load %arg2[%c204] : memref<273xf32, #tpu.memory_space<smem>>
    %839 = vector.broadcast %838 : f32 to vector<16x16xf32>
    %840 = arith.mulf %839, %829 : vector<16x16xf32>
    %841 = arith.addf %826, %840 : vector<16x16xf32>
    %c15_i32_241 = arith.constant 15 : i32
    %842 = tpu.dynamic_rotate %15 by %c15_i32_241 dim 0 : vector<16x16xf32>, i32 -> vector<16x16xf32>
    %cst_242 = arith.constant 0.000000e+00 : f32
    %843 = vector.broadcast %cst_242 : f32 to vector<16x16xf32>
    %844 = arith.select %7, %842, %843 : vector<16x16xi1>, vector<16x16xf32>
    %c25_243 = arith.constant 25 : index
    %845 = memref.load %arg2[%c25_243] : memref<273xf32, #tpu.memory_space<smem>>
    %846 = vector.broadcast %845 : f32 to vector<16x16xf32>
    %847 = arith.mulf %846, %844 : vector<16x16xf32>
    %848 = arith.addf %833, %847 : vector<16x16xf32>
    %c115 = arith.constant 115 : index
    %849 = memref.load %arg2[%c115] : memref<273xf32, #tpu.memory_space<smem>>
    %850 = vector.broadcast %849 : f32 to vector<16x16xf32>
    %851 = arith.mulf %850, %844 : vector<16x16xf32>
    %852 = arith.addf %837, %851 : vector<16x16xf32>
    %c205 = arith.constant 205 : index
    %853 = memref.load %arg2[%c205] : memref<273xf32, #tpu.memory_space<smem>>
    %854 = vector.broadcast %853 : f32 to vector<16x16xf32>
    %855 = arith.mulf %854, %844 : vector<16x16xf32>
    %856 = arith.addf %841, %855 : vector<16x16xf32>
    %c15_i32_244 = arith.constant 15 : i32
    %857 = tpu.dynamic_rotate %745 by %c15_i32_244 dim 0 : vector<16x16xf32>, i32 -> vector<16x16xf32>
    %cst_245 = arith.constant 0.000000e+00 : f32
    %858 = vector.broadcast %cst_245 : f32 to vector<16x16xf32>
    %859 = arith.select %7, %857, %858 : vector<16x16xi1>, vector<16x16xf32>
    %c26_246 = arith.constant 26 : index
    %860 = memref.load %arg2[%c26_246] : memref<273xf32, #tpu.memory_space<smem>>
    %861 = vector.broadcast %860 : f32 to vector<16x16xf32>
    %862 = arith.mulf %861, %859 : vector<16x16xf32>
    %863 = arith.addf %848, %862 : vector<16x16xf32>
    %c116 = arith.constant 116 : index
    %864 = memref.load %arg2[%c116] : memref<273xf32, #tpu.memory_space<smem>>
    %865 = vector.broadcast %864 : f32 to vector<16x16xf32>
    %866 = arith.mulf %865, %859 : vector<16x16xf32>
    %867 = arith.addf %852, %866 : vector<16x16xf32>
    %c206 = arith.constant 206 : index
    %868 = memref.load %arg2[%c206] : memref<273xf32, #tpu.memory_space<smem>>
    %869 = vector.broadcast %868 : f32 to vector<16x16xf32>
    %870 = arith.mulf %869, %859 : vector<16x16xf32>
    %871 = arith.addf %856, %870 : vector<16x16xf32>
    %c1_i32_247 = arith.constant 1 : i32
    %872 = tpu.dynamic_rotate %17 by %c1_i32_247 dim 1 : vector<16x16xf32>, i32 -> vector<16x16xf32>
    %cst_248 = arith.constant 0.000000e+00 : f32
    %873 = vector.broadcast %cst_248 : f32 to vector<16x16xf32>
    %874 = arith.select %5, %872, %873 : vector<16x16xi1>, vector<16x16xf32>
    %c15_i32_249 = arith.constant 15 : i32
    %875 = tpu.dynamic_rotate %17 by %c15_i32_249 dim 1 : vector<16x16xf32>, i32 -> vector<16x16xf32>
    %cst_250 = arith.constant 0.000000e+00 : f32
    %876 = vector.broadcast %cst_250 : f32 to vector<16x16xf32>
    %877 = arith.select %3, %875, %876 : vector<16x16xi1>, vector<16x16xf32>
    %c1_i32_251 = arith.constant 1 : i32
    %878 = tpu.dynamic_rotate %874 by %c1_i32_251 dim 0 : vector<16x16xf32>, i32 -> vector<16x16xf32>
    %cst_252 = arith.constant 0.000000e+00 : f32
    %879 = vector.broadcast %cst_252 : f32 to vector<16x16xf32>
    %880 = arith.select %9, %878, %879 : vector<16x16xi1>, vector<16x16xf32>
    %c27_253 = arith.constant 27 : index
    %881 = memref.load %arg2[%c27_253] : memref<273xf32, #tpu.memory_space<smem>>
    %882 = vector.broadcast %881 : f32 to vector<16x16xf32>
    %883 = arith.mulf %882, %880 : vector<16x16xf32>
    %884 = arith.addf %863, %883 : vector<16x16xf32>
    %c117 = arith.constant 117 : index
    %885 = memref.load %arg2[%c117] : memref<273xf32, #tpu.memory_space<smem>>
    %886 = vector.broadcast %885 : f32 to vector<16x16xf32>
    %887 = arith.mulf %886, %880 : vector<16x16xf32>
    %888 = arith.addf %867, %887 : vector<16x16xf32>
    %c207 = arith.constant 207 : index
    %889 = memref.load %arg2[%c207] : memref<273xf32, #tpu.memory_space<smem>>
    %890 = vector.broadcast %889 : f32 to vector<16x16xf32>
    %891 = arith.mulf %890, %880 : vector<16x16xf32>
    %892 = arith.addf %871, %891 : vector<16x16xf32>
    %c1_i32_254 = arith.constant 1 : i32
    %893 = tpu.dynamic_rotate %17 by %c1_i32_254 dim 0 : vector<16x16xf32>, i32 -> vector<16x16xf32>
    %cst_255 = arith.constant 0.000000e+00 : f32
    %894 = vector.broadcast %cst_255 : f32 to vector<16x16xf32>
    %895 = arith.select %9, %893, %894 : vector<16x16xi1>, vector<16x16xf32>
    %c28_256 = arith.constant 28 : index
    %896 = memref.load %arg2[%c28_256] : memref<273xf32, #tpu.memory_space<smem>>
    %897 = vector.broadcast %896 : f32 to vector<16x16xf32>
    %898 = arith.mulf %897, %895 : vector<16x16xf32>
    %899 = arith.addf %884, %898 : vector<16x16xf32>
    %c118 = arith.constant 118 : index
    %900 = memref.load %arg2[%c118] : memref<273xf32, #tpu.memory_space<smem>>
    %901 = vector.broadcast %900 : f32 to vector<16x16xf32>
    %902 = arith.mulf %901, %895 : vector<16x16xf32>
    %903 = arith.addf %888, %902 : vector<16x16xf32>
    %c208 = arith.constant 208 : index
    %904 = memref.load %arg2[%c208] : memref<273xf32, #tpu.memory_space<smem>>
    %905 = vector.broadcast %904 : f32 to vector<16x16xf32>
    %906 = arith.mulf %905, %895 : vector<16x16xf32>
    %907 = arith.addf %892, %906 : vector<16x16xf32>
    %c1_i32_257 = arith.constant 1 : i32
    %908 = tpu.dynamic_rotate %877 by %c1_i32_257 dim 0 : vector<16x16xf32>, i32 -> vector<16x16xf32>
    %cst_258 = arith.constant 0.000000e+00 : f32
    %909 = vector.broadcast %cst_258 : f32 to vector<16x16xf32>
    %910 = arith.select %9, %908, %909 : vector<16x16xi1>, vector<16x16xf32>
    %c29_259 = arith.constant 29 : index
    %911 = memref.load %arg2[%c29_259] : memref<273xf32, #tpu.memory_space<smem>>
    %912 = vector.broadcast %911 : f32 to vector<16x16xf32>
    %913 = arith.mulf %912, %910 : vector<16x16xf32>
    %914 = arith.addf %899, %913 : vector<16x16xf32>
    %c119 = arith.constant 119 : index
    %915 = memref.load %arg2[%c119] : memref<273xf32, #tpu.memory_space<smem>>
    %916 = vector.broadcast %915 : f32 to vector<16x16xf32>
    %917 = arith.mulf %916, %910 : vector<16x16xf32>
    %918 = arith.addf %903, %917 : vector<16x16xf32>
    %c209 = arith.constant 209 : index
    %919 = memref.load %arg2[%c209] : memref<273xf32, #tpu.memory_space<smem>>
    %920 = vector.broadcast %919 : f32 to vector<16x16xf32>
    %921 = arith.mulf %920, %910 : vector<16x16xf32>
    %922 = arith.addf %907, %921 : vector<16x16xf32>
    %c30_260 = arith.constant 30 : index
    %923 = memref.load %arg2[%c30_260] : memref<273xf32, #tpu.memory_space<smem>>
    %924 = vector.broadcast %923 : f32 to vector<16x16xf32>
    %925 = arith.mulf %924, %874 : vector<16x16xf32>
    %926 = arith.addf %914, %925 : vector<16x16xf32>
    %c120 = arith.constant 120 : index
    %927 = memref.load %arg2[%c120] : memref<273xf32, #tpu.memory_space<smem>>
    %928 = vector.broadcast %927 : f32 to vector<16x16xf32>
    %929 = arith.mulf %928, %874 : vector<16x16xf32>
    %930 = arith.addf %918, %929 : vector<16x16xf32>
    %c210 = arith.constant 210 : index
    %931 = memref.load %arg2[%c210] : memref<273xf32, #tpu.memory_space<smem>>
    %932 = vector.broadcast %931 : f32 to vector<16x16xf32>
    %933 = arith.mulf %932, %874 : vector<16x16xf32>
    %934 = arith.addf %922, %933 : vector<16x16xf32>
    %c31_261 = arith.constant 31 : index
    %935 = memref.load %arg2[%c31_261] : memref<273xf32, #tpu.memory_space<smem>>
    %936 = vector.broadcast %935 : f32 to vector<16x16xf32>
    %937 = arith.mulf %936, %17 : vector<16x16xf32>
    %938 = arith.addf %926, %937 : vector<16x16xf32>
    %c121 = arith.constant 121 : index
    %939 = memref.load %arg2[%c121] : memref<273xf32, #tpu.memory_space<smem>>
    %940 = vector.broadcast %939 : f32 to vector<16x16xf32>
    %941 = arith.mulf %940, %17 : vector<16x16xf32>
    %942 = arith.addf %930, %941 : vector<16x16xf32>
    %c211 = arith.constant 211 : index
    %943 = memref.load %arg2[%c211] : memref<273xf32, #tpu.memory_space<smem>>
    %944 = vector.broadcast %943 : f32 to vector<16x16xf32>
    %945 = arith.mulf %944, %17 : vector<16x16xf32>
    %946 = arith.addf %934, %945 : vector<16x16xf32>
    %c32_262 = arith.constant 32 : index
    %947 = memref.load %arg2[%c32_262] : memref<273xf32, #tpu.memory_space<smem>>
    %948 = vector.broadcast %947 : f32 to vector<16x16xf32>
    %949 = arith.mulf %948, %877 : vector<16x16xf32>
    %950 = arith.addf %938, %949 : vector<16x16xf32>
    %c122 = arith.constant 122 : index
    %951 = memref.load %arg2[%c122] : memref<273xf32, #tpu.memory_space<smem>>
    %952 = vector.broadcast %951 : f32 to vector<16x16xf32>
    %953 = arith.mulf %952, %877 : vector<16x16xf32>
    %954 = arith.addf %942, %953 : vector<16x16xf32>
    %c212 = arith.constant 212 : index
    %955 = memref.load %arg2[%c212] : memref<273xf32, #tpu.memory_space<smem>>
    %956 = vector.broadcast %955 : f32 to vector<16x16xf32>
    %957 = arith.mulf %956, %877 : vector<16x16xf32>
    %958 = arith.addf %946, %957 : vector<16x16xf32>
    %c15_i32_263 = arith.constant 15 : i32
    %959 = tpu.dynamic_rotate %874 by %c15_i32_263 dim 0 : vector<16x16xf32>, i32 -> vector<16x16xf32>
    %cst_264 = arith.constant 0.000000e+00 : f32
    %960 = vector.broadcast %cst_264 : f32 to vector<16x16xf32>
    %961 = arith.select %7, %959, %960 : vector<16x16xi1>, vector<16x16xf32>
    %c33_265 = arith.constant 33 : index
    %962 = memref.load %arg2[%c33_265] : memref<273xf32, #tpu.memory_space<smem>>
    %963 = vector.broadcast %962 : f32 to vector<16x16xf32>
    %964 = arith.mulf %963, %961 : vector<16x16xf32>
    %965 = arith.addf %950, %964 : vector<16x16xf32>
    %c123 = arith.constant 123 : index
    %966 = memref.load %arg2[%c123] : memref<273xf32, #tpu.memory_space<smem>>
    %967 = vector.broadcast %966 : f32 to vector<16x16xf32>
    %968 = arith.mulf %967, %961 : vector<16x16xf32>
    %969 = arith.addf %954, %968 : vector<16x16xf32>
    %c213 = arith.constant 213 : index
    %970 = memref.load %arg2[%c213] : memref<273xf32, #tpu.memory_space<smem>>
    %971 = vector.broadcast %970 : f32 to vector<16x16xf32>
    %972 = arith.mulf %971, %961 : vector<16x16xf32>
    %973 = arith.addf %958, %972 : vector<16x16xf32>
    %c15_i32_266 = arith.constant 15 : i32
    %974 = tpu.dynamic_rotate %17 by %c15_i32_266 dim 0 : vector<16x16xf32>, i32 -> vector<16x16xf32>
    %cst_267 = arith.constant 0.000000e+00 : f32
    %975 = vector.broadcast %cst_267 : f32 to vector<16x16xf32>
    %976 = arith.select %7, %974, %975 : vector<16x16xi1>, vector<16x16xf32>
    %c34_268 = arith.constant 34 : index
    %977 = memref.load %arg2[%c34_268] : memref<273xf32, #tpu.memory_space<smem>>
    %978 = vector.broadcast %977 : f32 to vector<16x16xf32>
    %979 = arith.mulf %978, %976 : vector<16x16xf32>
    %980 = arith.addf %965, %979 : vector<16x16xf32>
    %c124 = arith.constant 124 : index
    %981 = memref.load %arg2[%c124] : memref<273xf32, #tpu.memory_space<smem>>
    %982 = vector.broadcast %981 : f32 to vector<16x16xf32>
    %983 = arith.mulf %982, %976 : vector<16x16xf32>
    %984 = arith.addf %969, %983 : vector<16x16xf32>
    %c214 = arith.constant 214 : index
    %985 = memref.load %arg2[%c214] : memref<273xf32, #tpu.memory_space<smem>>
    %986 = vector.broadcast %985 : f32 to vector<16x16xf32>
    %987 = arith.mulf %986, %976 : vector<16x16xf32>
    %988 = arith.addf %973, %987 : vector<16x16xf32>
    %c15_i32_269 = arith.constant 15 : i32
    %989 = tpu.dynamic_rotate %877 by %c15_i32_269 dim 0 : vector<16x16xf32>, i32 -> vector<16x16xf32>
    %cst_270 = arith.constant 0.000000e+00 : f32
    %990 = vector.broadcast %cst_270 : f32 to vector<16x16xf32>
    %991 = arith.select %7, %989, %990 : vector<16x16xi1>, vector<16x16xf32>
    %c35_271 = arith.constant 35 : index
    %992 = memref.load %arg2[%c35_271] : memref<273xf32, #tpu.memory_space<smem>>
    %993 = vector.broadcast %992 : f32 to vector<16x16xf32>
    %994 = arith.mulf %993, %991 : vector<16x16xf32>
    %995 = arith.addf %980, %994 : vector<16x16xf32>
    %c125 = arith.constant 125 : index
    %996 = memref.load %arg2[%c125] : memref<273xf32, #tpu.memory_space<smem>>
    %997 = vector.broadcast %996 : f32 to vector<16x16xf32>
    %998 = arith.mulf %997, %991 : vector<16x16xf32>
    %999 = arith.addf %984, %998 : vector<16x16xf32>
    %c215 = arith.constant 215 : index
    %1000 = memref.load %arg2[%c215] : memref<273xf32, #tpu.memory_space<smem>>
    %1001 = vector.broadcast %1000 : f32 to vector<16x16xf32>
    %1002 = arith.mulf %1001, %991 : vector<16x16xf32>
    %1003 = arith.addf %988, %1002 : vector<16x16xf32>
    %c1_i32_272 = arith.constant 1 : i32
    %1004 = tpu.dynamic_rotate %19 by %c1_i32_272 dim 1 : vector<16x16xf32>, i32 -> vector<16x16xf32>
    %cst_273 = arith.constant 0.000000e+00 : f32
    %1005 = vector.broadcast %cst_273 : f32 to vector<16x16xf32>
    %1006 = arith.select %5, %1004, %1005 : vector<16x16xi1>, vector<16x16xf32>
    %c15_i32_274 = arith.constant 15 : i32
    %1007 = tpu.dynamic_rotate %19 by %c15_i32_274 dim 1 : vector<16x16xf32>, i32 -> vector<16x16xf32>
    %cst_275 = arith.constant 0.000000e+00 : f32
    %1008 = vector.broadcast %cst_275 : f32 to vector<16x16xf32>
    %1009 = arith.select %3, %1007, %1008 : vector<16x16xi1>, vector<16x16xf32>
    %c1_i32_276 = arith.constant 1 : i32
    %1010 = tpu.dynamic_rotate %1006 by %c1_i32_276 dim 0 : vector<16x16xf32>, i32 -> vector<16x16xf32>
    %cst_277 = arith.constant 0.000000e+00 : f32
    %1011 = vector.broadcast %cst_277 : f32 to vector<16x16xf32>
    %1012 = arith.select %9, %1010, %1011 : vector<16x16xi1>, vector<16x16xf32>
    %c36_278 = arith.constant 36 : index
    %1013 = memref.load %arg2[%c36_278] : memref<273xf32, #tpu.memory_space<smem>>
    %1014 = vector.broadcast %1013 : f32 to vector<16x16xf32>
    %1015 = arith.mulf %1014, %1012 : vector<16x16xf32>
    %1016 = arith.addf %995, %1015 : vector<16x16xf32>
    %c126 = arith.constant 126 : index
    %1017 = memref.load %arg2[%c126] : memref<273xf32, #tpu.memory_space<smem>>
    %1018 = vector.broadcast %1017 : f32 to vector<16x16xf32>
    %1019 = arith.mulf %1018, %1012 : vector<16x16xf32>
    %1020 = arith.addf %999, %1019 : vector<16x16xf32>
    %c216 = arith.constant 216 : index
    %1021 = memref.load %arg2[%c216] : memref<273xf32, #tpu.memory_space<smem>>
    %1022 = vector.broadcast %1021 : f32 to vector<16x16xf32>
    %1023 = arith.mulf %1022, %1012 : vector<16x16xf32>
    %1024 = arith.addf %1003, %1023 : vector<16x16xf32>
    %c1_i32_279 = arith.constant 1 : i32
    %1025 = tpu.dynamic_rotate %19 by %c1_i32_279 dim 0 : vector<16x16xf32>, i32 -> vector<16x16xf32>
    %cst_280 = arith.constant 0.000000e+00 : f32
    %1026 = vector.broadcast %cst_280 : f32 to vector<16x16xf32>
    %1027 = arith.select %9, %1025, %1026 : vector<16x16xi1>, vector<16x16xf32>
    %c37_281 = arith.constant 37 : index
    %1028 = memref.load %arg2[%c37_281] : memref<273xf32, #tpu.memory_space<smem>>
    %1029 = vector.broadcast %1028 : f32 to vector<16x16xf32>
    %1030 = arith.mulf %1029, %1027 : vector<16x16xf32>
    %1031 = arith.addf %1016, %1030 : vector<16x16xf32>
    %c127 = arith.constant 127 : index
    %1032 = memref.load %arg2[%c127] : memref<273xf32, #tpu.memory_space<smem>>
    %1033 = vector.broadcast %1032 : f32 to vector<16x16xf32>
    %1034 = arith.mulf %1033, %1027 : vector<16x16xf32>
    %1035 = arith.addf %1020, %1034 : vector<16x16xf32>
    %c217 = arith.constant 217 : index
    %1036 = memref.load %arg2[%c217] : memref<273xf32, #tpu.memory_space<smem>>
    %1037 = vector.broadcast %1036 : f32 to vector<16x16xf32>
    %1038 = arith.mulf %1037, %1027 : vector<16x16xf32>
    %1039 = arith.addf %1024, %1038 : vector<16x16xf32>
    %c1_i32_282 = arith.constant 1 : i32
    %1040 = tpu.dynamic_rotate %1009 by %c1_i32_282 dim 0 : vector<16x16xf32>, i32 -> vector<16x16xf32>
    %cst_283 = arith.constant 0.000000e+00 : f32
    %1041 = vector.broadcast %cst_283 : f32 to vector<16x16xf32>
    %1042 = arith.select %9, %1040, %1041 : vector<16x16xi1>, vector<16x16xf32>
    %c38_284 = arith.constant 38 : index
    %1043 = memref.load %arg2[%c38_284] : memref<273xf32, #tpu.memory_space<smem>>
    %1044 = vector.broadcast %1043 : f32 to vector<16x16xf32>
    %1045 = arith.mulf %1044, %1042 : vector<16x16xf32>
    %1046 = arith.addf %1031, %1045 : vector<16x16xf32>
    %c128 = arith.constant 128 : index
    %1047 = memref.load %arg2[%c128] : memref<273xf32, #tpu.memory_space<smem>>
    %1048 = vector.broadcast %1047 : f32 to vector<16x16xf32>
    %1049 = arith.mulf %1048, %1042 : vector<16x16xf32>
    %1050 = arith.addf %1035, %1049 : vector<16x16xf32>
    %c218 = arith.constant 218 : index
    %1051 = memref.load %arg2[%c218] : memref<273xf32, #tpu.memory_space<smem>>
    %1052 = vector.broadcast %1051 : f32 to vector<16x16xf32>
    %1053 = arith.mulf %1052, %1042 : vector<16x16xf32>
    %1054 = arith.addf %1039, %1053 : vector<16x16xf32>
    %c39_285 = arith.constant 39 : index
    %1055 = memref.load %arg2[%c39_285] : memref<273xf32, #tpu.memory_space<smem>>
    %1056 = vector.broadcast %1055 : f32 to vector<16x16xf32>
    %1057 = arith.mulf %1056, %1006 : vector<16x16xf32>
    %1058 = arith.addf %1046, %1057 : vector<16x16xf32>
    %c129 = arith.constant 129 : index
    %1059 = memref.load %arg2[%c129] : memref<273xf32, #tpu.memory_space<smem>>
    %1060 = vector.broadcast %1059 : f32 to vector<16x16xf32>
    %1061 = arith.mulf %1060, %1006 : vector<16x16xf32>
    %1062 = arith.addf %1050, %1061 : vector<16x16xf32>
    %c219 = arith.constant 219 : index
    %1063 = memref.load %arg2[%c219] : memref<273xf32, #tpu.memory_space<smem>>
    %1064 = vector.broadcast %1063 : f32 to vector<16x16xf32>
    %1065 = arith.mulf %1064, %1006 : vector<16x16xf32>
    %1066 = arith.addf %1054, %1065 : vector<16x16xf32>
    %c40_286 = arith.constant 40 : index
    %1067 = memref.load %arg2[%c40_286] : memref<273xf32, #tpu.memory_space<smem>>
    %1068 = vector.broadcast %1067 : f32 to vector<16x16xf32>
    %1069 = arith.mulf %1068, %19 : vector<16x16xf32>
    %1070 = arith.addf %1058, %1069 : vector<16x16xf32>
    %c130 = arith.constant 130 : index
    %1071 = memref.load %arg2[%c130] : memref<273xf32, #tpu.memory_space<smem>>
    %1072 = vector.broadcast %1071 : f32 to vector<16x16xf32>
    %1073 = arith.mulf %1072, %19 : vector<16x16xf32>
    %1074 = arith.addf %1062, %1073 : vector<16x16xf32>
    %c220 = arith.constant 220 : index
    %1075 = memref.load %arg2[%c220] : memref<273xf32, #tpu.memory_space<smem>>
    %1076 = vector.broadcast %1075 : f32 to vector<16x16xf32>
    %1077 = arith.mulf %1076, %19 : vector<16x16xf32>
    %1078 = arith.addf %1066, %1077 : vector<16x16xf32>
    %c41_287 = arith.constant 41 : index
    %1079 = memref.load %arg2[%c41_287] : memref<273xf32, #tpu.memory_space<smem>>
    %1080 = vector.broadcast %1079 : f32 to vector<16x16xf32>
    %1081 = arith.mulf %1080, %1009 : vector<16x16xf32>
    %1082 = arith.addf %1070, %1081 : vector<16x16xf32>
    %c131 = arith.constant 131 : index
    %1083 = memref.load %arg2[%c131] : memref<273xf32, #tpu.memory_space<smem>>
    %1084 = vector.broadcast %1083 : f32 to vector<16x16xf32>
    %1085 = arith.mulf %1084, %1009 : vector<16x16xf32>
    %1086 = arith.addf %1074, %1085 : vector<16x16xf32>
    %c221 = arith.constant 221 : index
    %1087 = memref.load %arg2[%c221] : memref<273xf32, #tpu.memory_space<smem>>
    %1088 = vector.broadcast %1087 : f32 to vector<16x16xf32>
    %1089 = arith.mulf %1088, %1009 : vector<16x16xf32>
    %1090 = arith.addf %1078, %1089 : vector<16x16xf32>
    %c15_i32_288 = arith.constant 15 : i32
    %1091 = tpu.dynamic_rotate %1006 by %c15_i32_288 dim 0 : vector<16x16xf32>, i32 -> vector<16x16xf32>
    %cst_289 = arith.constant 0.000000e+00 : f32
    %1092 = vector.broadcast %cst_289 : f32 to vector<16x16xf32>
    %1093 = arith.select %7, %1091, %1092 : vector<16x16xi1>, vector<16x16xf32>
    %c42_290 = arith.constant 42 : index
    %1094 = memref.load %arg2[%c42_290] : memref<273xf32, #tpu.memory_space<smem>>
    %1095 = vector.broadcast %1094 : f32 to vector<16x16xf32>
    %1096 = arith.mulf %1095, %1093 : vector<16x16xf32>
    %1097 = arith.addf %1082, %1096 : vector<16x16xf32>
    %c132 = arith.constant 132 : index
    %1098 = memref.load %arg2[%c132] : memref<273xf32, #tpu.memory_space<smem>>
    %1099 = vector.broadcast %1098 : f32 to vector<16x16xf32>
    %1100 = arith.mulf %1099, %1093 : vector<16x16xf32>
    %1101 = arith.addf %1086, %1100 : vector<16x16xf32>
    %c222 = arith.constant 222 : index
    %1102 = memref.load %arg2[%c222] : memref<273xf32, #tpu.memory_space<smem>>
    %1103 = vector.broadcast %1102 : f32 to vector<16x16xf32>
    %1104 = arith.mulf %1103, %1093 : vector<16x16xf32>
    %1105 = arith.addf %1090, %1104 : vector<16x16xf32>
    %c15_i32_291 = arith.constant 15 : i32
    %1106 = tpu.dynamic_rotate %19 by %c15_i32_291 dim 0 : vector<16x16xf32>, i32 -> vector<16x16xf32>
    %cst_292 = arith.constant 0.000000e+00 : f32
    %1107 = vector.broadcast %cst_292 : f32 to vector<16x16xf32>
    %1108 = arith.select %7, %1106, %1107 : vector<16x16xi1>, vector<16x16xf32>
    %c43_293 = arith.constant 43 : index
    %1109 = memref.load %arg2[%c43_293] : memref<273xf32, #tpu.memory_space<smem>>
    %1110 = vector.broadcast %1109 : f32 to vector<16x16xf32>
    %1111 = arith.mulf %1110, %1108 : vector<16x16xf32>
    %1112 = arith.addf %1097, %1111 : vector<16x16xf32>
    %c133 = arith.constant 133 : index
    %1113 = memref.load %arg2[%c133] : memref<273xf32, #tpu.memory_space<smem>>
    %1114 = vector.broadcast %1113 : f32 to vector<16x16xf32>
    %1115 = arith.mulf %1114, %1108 : vector<16x16xf32>
    %1116 = arith.addf %1101, %1115 : vector<16x16xf32>
    %c223 = arith.constant 223 : index
    %1117 = memref.load %arg2[%c223] : memref<273xf32, #tpu.memory_space<smem>>
    %1118 = vector.broadcast %1117 : f32 to vector<16x16xf32>
    %1119 = arith.mulf %1118, %1108 : vector<16x16xf32>
    %1120 = arith.addf %1105, %1119 : vector<16x16xf32>
    %c15_i32_294 = arith.constant 15 : i32
    %1121 = tpu.dynamic_rotate %1009 by %c15_i32_294 dim 0 : vector<16x16xf32>, i32 -> vector<16x16xf32>
    %cst_295 = arith.constant 0.000000e+00 : f32
    %1122 = vector.broadcast %cst_295 : f32 to vector<16x16xf32>
    %1123 = arith.select %7, %1121, %1122 : vector<16x16xi1>, vector<16x16xf32>
    %c44_296 = arith.constant 44 : index
    %1124 = memref.load %arg2[%c44_296] : memref<273xf32, #tpu.memory_space<smem>>
    %1125 = vector.broadcast %1124 : f32 to vector<16x16xf32>
    %1126 = arith.mulf %1125, %1123 : vector<16x16xf32>
    %1127 = arith.addf %1112, %1126 : vector<16x16xf32>
    %c134 = arith.constant 134 : index
    %1128 = memref.load %arg2[%c134] : memref<273xf32, #tpu.memory_space<smem>>
    %1129 = vector.broadcast %1128 : f32 to vector<16x16xf32>
    %1130 = arith.mulf %1129, %1123 : vector<16x16xf32>
    %1131 = arith.addf %1116, %1130 : vector<16x16xf32>
    %c224 = arith.constant 224 : index
    %1132 = memref.load %arg2[%c224] : memref<273xf32, #tpu.memory_space<smem>>
    %1133 = vector.broadcast %1132 : f32 to vector<16x16xf32>
    %1134 = arith.mulf %1133, %1123 : vector<16x16xf32>
    %1135 = arith.addf %1120, %1134 : vector<16x16xf32>
    %c1_i32_297 = arith.constant 1 : i32
    %1136 = tpu.dynamic_rotate %21 by %c1_i32_297 dim 1 : vector<16x16xf32>, i32 -> vector<16x16xf32>
    %cst_298 = arith.constant 0.000000e+00 : f32
    %1137 = vector.broadcast %cst_298 : f32 to vector<16x16xf32>
    %1138 = arith.select %5, %1136, %1137 : vector<16x16xi1>, vector<16x16xf32>
    %c15_i32_299 = arith.constant 15 : i32
    %1139 = tpu.dynamic_rotate %21 by %c15_i32_299 dim 1 : vector<16x16xf32>, i32 -> vector<16x16xf32>
    %cst_300 = arith.constant 0.000000e+00 : f32
    %1140 = vector.broadcast %cst_300 : f32 to vector<16x16xf32>
    %1141 = arith.select %3, %1139, %1140 : vector<16x16xi1>, vector<16x16xf32>
    %c1_i32_301 = arith.constant 1 : i32
    %1142 = tpu.dynamic_rotate %1138 by %c1_i32_301 dim 0 : vector<16x16xf32>, i32 -> vector<16x16xf32>
    %cst_302 = arith.constant 0.000000e+00 : f32
    %1143 = vector.broadcast %cst_302 : f32 to vector<16x16xf32>
    %1144 = arith.select %9, %1142, %1143 : vector<16x16xi1>, vector<16x16xf32>
    %c45_303 = arith.constant 45 : index
    %1145 = memref.load %arg2[%c45_303] : memref<273xf32, #tpu.memory_space<smem>>
    %1146 = vector.broadcast %1145 : f32 to vector<16x16xf32>
    %1147 = arith.mulf %1146, %1144 : vector<16x16xf32>
    %1148 = arith.addf %1127, %1147 : vector<16x16xf32>
    %c135 = arith.constant 135 : index
    %1149 = memref.load %arg2[%c135] : memref<273xf32, #tpu.memory_space<smem>>
    %1150 = vector.broadcast %1149 : f32 to vector<16x16xf32>
    %1151 = arith.mulf %1150, %1144 : vector<16x16xf32>
    %1152 = arith.addf %1131, %1151 : vector<16x16xf32>
    %c225 = arith.constant 225 : index
    %1153 = memref.load %arg2[%c225] : memref<273xf32, #tpu.memory_space<smem>>
    %1154 = vector.broadcast %1153 : f32 to vector<16x16xf32>
    %1155 = arith.mulf %1154, %1144 : vector<16x16xf32>
    %1156 = arith.addf %1135, %1155 : vector<16x16xf32>
    %c1_i32_304 = arith.constant 1 : i32
    %1157 = tpu.dynamic_rotate %21 by %c1_i32_304 dim 0 : vector<16x16xf32>, i32 -> vector<16x16xf32>
    %cst_305 = arith.constant 0.000000e+00 : f32
    %1158 = vector.broadcast %cst_305 : f32 to vector<16x16xf32>
    %1159 = arith.select %9, %1157, %1158 : vector<16x16xi1>, vector<16x16xf32>
    %c46_306 = arith.constant 46 : index
    %1160 = memref.load %arg2[%c46_306] : memref<273xf32, #tpu.memory_space<smem>>
    %1161 = vector.broadcast %1160 : f32 to vector<16x16xf32>
    %1162 = arith.mulf %1161, %1159 : vector<16x16xf32>
    %1163 = arith.addf %1148, %1162 : vector<16x16xf32>
    %c136 = arith.constant 136 : index
    %1164 = memref.load %arg2[%c136] : memref<273xf32, #tpu.memory_space<smem>>
    %1165 = vector.broadcast %1164 : f32 to vector<16x16xf32>
    %1166 = arith.mulf %1165, %1159 : vector<16x16xf32>
    %1167 = arith.addf %1152, %1166 : vector<16x16xf32>
    %c226 = arith.constant 226 : index
    %1168 = memref.load %arg2[%c226] : memref<273xf32, #tpu.memory_space<smem>>
    %1169 = vector.broadcast %1168 : f32 to vector<16x16xf32>
    %1170 = arith.mulf %1169, %1159 : vector<16x16xf32>
    %1171 = arith.addf %1156, %1170 : vector<16x16xf32>
    %c1_i32_307 = arith.constant 1 : i32
    %1172 = tpu.dynamic_rotate %1141 by %c1_i32_307 dim 0 : vector<16x16xf32>, i32 -> vector<16x16xf32>
    %cst_308 = arith.constant 0.000000e+00 : f32
    %1173 = vector.broadcast %cst_308 : f32 to vector<16x16xf32>
    %1174 = arith.select %9, %1172, %1173 : vector<16x16xi1>, vector<16x16xf32>
    %c47_309 = arith.constant 47 : index
    %1175 = memref.load %arg2[%c47_309] : memref<273xf32, #tpu.memory_space<smem>>
    %1176 = vector.broadcast %1175 : f32 to vector<16x16xf32>
    %1177 = arith.mulf %1176, %1174 : vector<16x16xf32>
    %1178 = arith.addf %1163, %1177 : vector<16x16xf32>
    %c137 = arith.constant 137 : index
    %1179 = memref.load %arg2[%c137] : memref<273xf32, #tpu.memory_space<smem>>
    %1180 = vector.broadcast %1179 : f32 to vector<16x16xf32>
    %1181 = arith.mulf %1180, %1174 : vector<16x16xf32>
    %1182 = arith.addf %1167, %1181 : vector<16x16xf32>
    %c227 = arith.constant 227 : index
    %1183 = memref.load %arg2[%c227] : memref<273xf32, #tpu.memory_space<smem>>
    %1184 = vector.broadcast %1183 : f32 to vector<16x16xf32>
    %1185 = arith.mulf %1184, %1174 : vector<16x16xf32>
    %1186 = arith.addf %1171, %1185 : vector<16x16xf32>
    %c48_310 = arith.constant 48 : index
    %1187 = memref.load %arg2[%c48_310] : memref<273xf32, #tpu.memory_space<smem>>
    %1188 = vector.broadcast %1187 : f32 to vector<16x16xf32>
    %1189 = arith.mulf %1188, %1138 : vector<16x16xf32>
    %1190 = arith.addf %1178, %1189 : vector<16x16xf32>
    %c138 = arith.constant 138 : index
    %1191 = memref.load %arg2[%c138] : memref<273xf32, #tpu.memory_space<smem>>
    %1192 = vector.broadcast %1191 : f32 to vector<16x16xf32>
    %1193 = arith.mulf %1192, %1138 : vector<16x16xf32>
    %1194 = arith.addf %1182, %1193 : vector<16x16xf32>
    %c228 = arith.constant 228 : index
    %1195 = memref.load %arg2[%c228] : memref<273xf32, #tpu.memory_space<smem>>
    %1196 = vector.broadcast %1195 : f32 to vector<16x16xf32>
    %1197 = arith.mulf %1196, %1138 : vector<16x16xf32>
    %1198 = arith.addf %1186, %1197 : vector<16x16xf32>
    %c49_311 = arith.constant 49 : index
    %1199 = memref.load %arg2[%c49_311] : memref<273xf32, #tpu.memory_space<smem>>
    %1200 = vector.broadcast %1199 : f32 to vector<16x16xf32>
    %1201 = arith.mulf %1200, %21 : vector<16x16xf32>
    %1202 = arith.addf %1190, %1201 : vector<16x16xf32>
    %c139 = arith.constant 139 : index
    %1203 = memref.load %arg2[%c139] : memref<273xf32, #tpu.memory_space<smem>>
    %1204 = vector.broadcast %1203 : f32 to vector<16x16xf32>
    %1205 = arith.mulf %1204, %21 : vector<16x16xf32>
    %1206 = arith.addf %1194, %1205 : vector<16x16xf32>
    %c229 = arith.constant 229 : index
    %1207 = memref.load %arg2[%c229] : memref<273xf32, #tpu.memory_space<smem>>
    %1208 = vector.broadcast %1207 : f32 to vector<16x16xf32>
    %1209 = arith.mulf %1208, %21 : vector<16x16xf32>
    %1210 = arith.addf %1198, %1209 : vector<16x16xf32>
    %c50_312 = arith.constant 50 : index
    %1211 = memref.load %arg2[%c50_312] : memref<273xf32, #tpu.memory_space<smem>>
    %1212 = vector.broadcast %1211 : f32 to vector<16x16xf32>
    %1213 = arith.mulf %1212, %1141 : vector<16x16xf32>
    %1214 = arith.addf %1202, %1213 : vector<16x16xf32>
    %c140 = arith.constant 140 : index
    %1215 = memref.load %arg2[%c140] : memref<273xf32, #tpu.memory_space<smem>>
    %1216 = vector.broadcast %1215 : f32 to vector<16x16xf32>
    %1217 = arith.mulf %1216, %1141 : vector<16x16xf32>
    %1218 = arith.addf %1206, %1217 : vector<16x16xf32>
    %c230 = arith.constant 230 : index
    %1219 = memref.load %arg2[%c230] : memref<273xf32, #tpu.memory_space<smem>>
    %1220 = vector.broadcast %1219 : f32 to vector<16x16xf32>
    %1221 = arith.mulf %1220, %1141 : vector<16x16xf32>
    %1222 = arith.addf %1210, %1221 : vector<16x16xf32>
    %c15_i32_313 = arith.constant 15 : i32
    %1223 = tpu.dynamic_rotate %1138 by %c15_i32_313 dim 0 : vector<16x16xf32>, i32 -> vector<16x16xf32>
    %cst_314 = arith.constant 0.000000e+00 : f32
    %1224 = vector.broadcast %cst_314 : f32 to vector<16x16xf32>
    %1225 = arith.select %7, %1223, %1224 : vector<16x16xi1>, vector<16x16xf32>
    %c51_315 = arith.constant 51 : index
    %1226 = memref.load %arg2[%c51_315] : memref<273xf32, #tpu.memory_space<smem>>
    %1227 = vector.broadcast %1226 : f32 to vector<16x16xf32>
    %1228 = arith.mulf %1227, %1225 : vector<16x16xf32>
    %1229 = arith.addf %1214, %1228 : vector<16x16xf32>
    %c141 = arith.constant 141 : index
    %1230 = memref.load %arg2[%c141] : memref<273xf32, #tpu.memory_space<smem>>
    %1231 = vector.broadcast %1230 : f32 to vector<16x16xf32>
    %1232 = arith.mulf %1231, %1225 : vector<16x16xf32>
    %1233 = arith.addf %1218, %1232 : vector<16x16xf32>
    %c231 = arith.constant 231 : index
    %1234 = memref.load %arg2[%c231] : memref<273xf32, #tpu.memory_space<smem>>
    %1235 = vector.broadcast %1234 : f32 to vector<16x16xf32>
    %1236 = arith.mulf %1235, %1225 : vector<16x16xf32>
    %1237 = arith.addf %1222, %1236 : vector<16x16xf32>
    %c15_i32_316 = arith.constant 15 : i32
    %1238 = tpu.dynamic_rotate %21 by %c15_i32_316 dim 0 : vector<16x16xf32>, i32 -> vector<16x16xf32>
    %cst_317 = arith.constant 0.000000e+00 : f32
    %1239 = vector.broadcast %cst_317 : f32 to vector<16x16xf32>
    %1240 = arith.select %7, %1238, %1239 : vector<16x16xi1>, vector<16x16xf32>
    %c52_318 = arith.constant 52 : index
    %1241 = memref.load %arg2[%c52_318] : memref<273xf32, #tpu.memory_space<smem>>
    %1242 = vector.broadcast %1241 : f32 to vector<16x16xf32>
    %1243 = arith.mulf %1242, %1240 : vector<16x16xf32>
    %1244 = arith.addf %1229, %1243 : vector<16x16xf32>
    %c142 = arith.constant 142 : index
    %1245 = memref.load %arg2[%c142] : memref<273xf32, #tpu.memory_space<smem>>
    %1246 = vector.broadcast %1245 : f32 to vector<16x16xf32>
    %1247 = arith.mulf %1246, %1240 : vector<16x16xf32>
    %1248 = arith.addf %1233, %1247 : vector<16x16xf32>
    %c232 = arith.constant 232 : index
    %1249 = memref.load %arg2[%c232] : memref<273xf32, #tpu.memory_space<smem>>
    %1250 = vector.broadcast %1249 : f32 to vector<16x16xf32>
    %1251 = arith.mulf %1250, %1240 : vector<16x16xf32>
    %1252 = arith.addf %1237, %1251 : vector<16x16xf32>
    %c15_i32_319 = arith.constant 15 : i32
    %1253 = tpu.dynamic_rotate %1141 by %c15_i32_319 dim 0 : vector<16x16xf32>, i32 -> vector<16x16xf32>
    %cst_320 = arith.constant 0.000000e+00 : f32
    %1254 = vector.broadcast %cst_320 : f32 to vector<16x16xf32>
    %1255 = arith.select %7, %1253, %1254 : vector<16x16xi1>, vector<16x16xf32>
    %c53_321 = arith.constant 53 : index
    %1256 = memref.load %arg2[%c53_321] : memref<273xf32, #tpu.memory_space<smem>>
    %1257 = vector.broadcast %1256 : f32 to vector<16x16xf32>
    %1258 = arith.mulf %1257, %1255 : vector<16x16xf32>
    %1259 = arith.addf %1244, %1258 : vector<16x16xf32>
    %c143 = arith.constant 143 : index
    %1260 = memref.load %arg2[%c143] : memref<273xf32, #tpu.memory_space<smem>>
    %1261 = vector.broadcast %1260 : f32 to vector<16x16xf32>
    %1262 = arith.mulf %1261, %1255 : vector<16x16xf32>
    %1263 = arith.addf %1248, %1262 : vector<16x16xf32>
    %c233 = arith.constant 233 : index
    %1264 = memref.load %arg2[%c233] : memref<273xf32, #tpu.memory_space<smem>>
    %1265 = vector.broadcast %1264 : f32 to vector<16x16xf32>
    %1266 = arith.mulf %1265, %1255 : vector<16x16xf32>
    %1267 = arith.addf %1252, %1266 : vector<16x16xf32>
    %c1_i32_322 = arith.constant 1 : i32
    %1268 = tpu.dynamic_rotate %430 by %c1_i32_322 dim 1 : vector<16x16xf32>, i32 -> vector<16x16xf32>
    %cst_323 = arith.constant 0.000000e+00 : f32
    %1269 = vector.broadcast %cst_323 : f32 to vector<16x16xf32>
    %1270 = arith.select %5, %1268, %1269 : vector<16x16xi1>, vector<16x16xf32>
    %c15_i32_324 = arith.constant 15 : i32
    %1271 = tpu.dynamic_rotate %430 by %c15_i32_324 dim 1 : vector<16x16xf32>, i32 -> vector<16x16xf32>
    %cst_325 = arith.constant 0.000000e+00 : f32
    %1272 = vector.broadcast %cst_325 : f32 to vector<16x16xf32>
    %1273 = arith.select %3, %1271, %1272 : vector<16x16xi1>, vector<16x16xf32>
    %c1_i32_326 = arith.constant 1 : i32
    %1274 = tpu.dynamic_rotate %1270 by %c1_i32_326 dim 0 : vector<16x16xf32>, i32 -> vector<16x16xf32>
    %cst_327 = arith.constant 0.000000e+00 : f32
    %1275 = vector.broadcast %cst_327 : f32 to vector<16x16xf32>
    %1276 = arith.select %9, %1274, %1275 : vector<16x16xi1>, vector<16x16xf32>
    %c54_328 = arith.constant 54 : index
    %1277 = memref.load %arg2[%c54_328] : memref<273xf32, #tpu.memory_space<smem>>
    %1278 = vector.broadcast %1277 : f32 to vector<16x16xf32>
    %1279 = arith.mulf %1278, %1276 : vector<16x16xf32>
    %1280 = arith.addf %1259, %1279 : vector<16x16xf32>
    %c144 = arith.constant 144 : index
    %1281 = memref.load %arg2[%c144] : memref<273xf32, #tpu.memory_space<smem>>
    %1282 = vector.broadcast %1281 : f32 to vector<16x16xf32>
    %1283 = arith.mulf %1282, %1276 : vector<16x16xf32>
    %1284 = arith.addf %1263, %1283 : vector<16x16xf32>
    %c234 = arith.constant 234 : index
    %1285 = memref.load %arg2[%c234] : memref<273xf32, #tpu.memory_space<smem>>
    %1286 = vector.broadcast %1285 : f32 to vector<16x16xf32>
    %1287 = arith.mulf %1286, %1276 : vector<16x16xf32>
    %1288 = arith.addf %1267, %1287 : vector<16x16xf32>
    %c1_i32_329 = arith.constant 1 : i32
    %1289 = tpu.dynamic_rotate %430 by %c1_i32_329 dim 0 : vector<16x16xf32>, i32 -> vector<16x16xf32>
    %cst_330 = arith.constant 0.000000e+00 : f32
    %1290 = vector.broadcast %cst_330 : f32 to vector<16x16xf32>
    %1291 = arith.select %9, %1289, %1290 : vector<16x16xi1>, vector<16x16xf32>
    %c55 = arith.constant 55 : index
    %1292 = memref.load %arg2[%c55] : memref<273xf32, #tpu.memory_space<smem>>
    %1293 = vector.broadcast %1292 : f32 to vector<16x16xf32>
    %1294 = arith.mulf %1293, %1291 : vector<16x16xf32>
    %1295 = arith.addf %1280, %1294 : vector<16x16xf32>
    %c145 = arith.constant 145 : index
    %1296 = memref.load %arg2[%c145] : memref<273xf32, #tpu.memory_space<smem>>
    %1297 = vector.broadcast %1296 : f32 to vector<16x16xf32>
    %1298 = arith.mulf %1297, %1291 : vector<16x16xf32>
    %1299 = arith.addf %1284, %1298 : vector<16x16xf32>
    %c235 = arith.constant 235 : index
    %1300 = memref.load %arg2[%c235] : memref<273xf32, #tpu.memory_space<smem>>
    %1301 = vector.broadcast %1300 : f32 to vector<16x16xf32>
    %1302 = arith.mulf %1301, %1291 : vector<16x16xf32>
    %1303 = arith.addf %1288, %1302 : vector<16x16xf32>
    %c1_i32_331 = arith.constant 1 : i32
    %1304 = tpu.dynamic_rotate %1273 by %c1_i32_331 dim 0 : vector<16x16xf32>, i32 -> vector<16x16xf32>
    %cst_332 = arith.constant 0.000000e+00 : f32
    %1305 = vector.broadcast %cst_332 : f32 to vector<16x16xf32>
    %1306 = arith.select %9, %1304, %1305 : vector<16x16xi1>, vector<16x16xf32>
    %c56 = arith.constant 56 : index
    %1307 = memref.load %arg2[%c56] : memref<273xf32, #tpu.memory_space<smem>>
    %1308 = vector.broadcast %1307 : f32 to vector<16x16xf32>
    %1309 = arith.mulf %1308, %1306 : vector<16x16xf32>
    %1310 = arith.addf %1295, %1309 : vector<16x16xf32>
    %c146 = arith.constant 146 : index
    %1311 = memref.load %arg2[%c146] : memref<273xf32, #tpu.memory_space<smem>>
    %1312 = vector.broadcast %1311 : f32 to vector<16x16xf32>
    %1313 = arith.mulf %1312, %1306 : vector<16x16xf32>
    %1314 = arith.addf %1299, %1313 : vector<16x16xf32>
    %c236 = arith.constant 236 : index
    %1315 = memref.load %arg2[%c236] : memref<273xf32, #tpu.memory_space<smem>>
    %1316 = vector.broadcast %1315 : f32 to vector<16x16xf32>
    %1317 = arith.mulf %1316, %1306 : vector<16x16xf32>
    %1318 = arith.addf %1303, %1317 : vector<16x16xf32>
    %c57 = arith.constant 57 : index
    %1319 = memref.load %arg2[%c57] : memref<273xf32, #tpu.memory_space<smem>>
    %1320 = vector.broadcast %1319 : f32 to vector<16x16xf32>
    %1321 = arith.mulf %1320, %1270 : vector<16x16xf32>
    %1322 = arith.addf %1310, %1321 : vector<16x16xf32>
    %c147 = arith.constant 147 : index
    %1323 = memref.load %arg2[%c147] : memref<273xf32, #tpu.memory_space<smem>>
    %1324 = vector.broadcast %1323 : f32 to vector<16x16xf32>
    %1325 = arith.mulf %1324, %1270 : vector<16x16xf32>
    %1326 = arith.addf %1314, %1325 : vector<16x16xf32>
    %c237 = arith.constant 237 : index
    %1327 = memref.load %arg2[%c237] : memref<273xf32, #tpu.memory_space<smem>>
    %1328 = vector.broadcast %1327 : f32 to vector<16x16xf32>
    %1329 = arith.mulf %1328, %1270 : vector<16x16xf32>
    %1330 = arith.addf %1318, %1329 : vector<16x16xf32>
    %c58 = arith.constant 58 : index
    %1331 = memref.load %arg2[%c58] : memref<273xf32, #tpu.memory_space<smem>>
    %1332 = vector.broadcast %1331 : f32 to vector<16x16xf32>
    %1333 = arith.mulf %1332, %430 : vector<16x16xf32>
    %1334 = arith.addf %1322, %1333 : vector<16x16xf32>
    %c148 = arith.constant 148 : index
    %1335 = memref.load %arg2[%c148] : memref<273xf32, #tpu.memory_space<smem>>
    %1336 = vector.broadcast %1335 : f32 to vector<16x16xf32>
    %1337 = arith.mulf %1336, %430 : vector<16x16xf32>
    %1338 = arith.addf %1326, %1337 : vector<16x16xf32>
    %c238 = arith.constant 238 : index
    %1339 = memref.load %arg2[%c238] : memref<273xf32, #tpu.memory_space<smem>>
    %1340 = vector.broadcast %1339 : f32 to vector<16x16xf32>
    %1341 = arith.mulf %1340, %430 : vector<16x16xf32>
    %1342 = arith.addf %1330, %1341 : vector<16x16xf32>
    %c59 = arith.constant 59 : index
    %1343 = memref.load %arg2[%c59] : memref<273xf32, #tpu.memory_space<smem>>
    %1344 = vector.broadcast %1343 : f32 to vector<16x16xf32>
    %1345 = arith.mulf %1344, %1273 : vector<16x16xf32>
    %1346 = arith.addf %1334, %1345 : vector<16x16xf32>
    %c149 = arith.constant 149 : index
    %1347 = memref.load %arg2[%c149] : memref<273xf32, #tpu.memory_space<smem>>
    %1348 = vector.broadcast %1347 : f32 to vector<16x16xf32>
    %1349 = arith.mulf %1348, %1273 : vector<16x16xf32>
    %1350 = arith.addf %1338, %1349 : vector<16x16xf32>
    %c239 = arith.constant 239 : index
    %1351 = memref.load %arg2[%c239] : memref<273xf32, #tpu.memory_space<smem>>
    %1352 = vector.broadcast %1351 : f32 to vector<16x16xf32>
    %1353 = arith.mulf %1352, %1273 : vector<16x16xf32>
    %1354 = arith.addf %1342, %1353 : vector<16x16xf32>
    %c15_i32_333 = arith.constant 15 : i32
    %1355 = tpu.dynamic_rotate %1270 by %c15_i32_333 dim 0 : vector<16x16xf32>, i32 -> vector<16x16xf32>
    %cst_334 = arith.constant 0.000000e+00 : f32
    %1356 = vector.broadcast %cst_334 : f32 to vector<16x16xf32>
    %1357 = arith.select %7, %1355, %1356 : vector<16x16xi1>, vector<16x16xf32>
    %c60 = arith.constant 60 : index
    %1358 = memref.load %arg2[%c60] : memref<273xf32, #tpu.memory_space<smem>>
    %1359 = vector.broadcast %1358 : f32 to vector<16x16xf32>
    %1360 = arith.mulf %1359, %1357 : vector<16x16xf32>
    %1361 = arith.addf %1346, %1360 : vector<16x16xf32>
    %c150 = arith.constant 150 : index
    %1362 = memref.load %arg2[%c150] : memref<273xf32, #tpu.memory_space<smem>>
    %1363 = vector.broadcast %1362 : f32 to vector<16x16xf32>
    %1364 = arith.mulf %1363, %1357 : vector<16x16xf32>
    %1365 = arith.addf %1350, %1364 : vector<16x16xf32>
    %c240 = arith.constant 240 : index
    %1366 = memref.load %arg2[%c240] : memref<273xf32, #tpu.memory_space<smem>>
    %1367 = vector.broadcast %1366 : f32 to vector<16x16xf32>
    %1368 = arith.mulf %1367, %1357 : vector<16x16xf32>
    %1369 = arith.addf %1354, %1368 : vector<16x16xf32>
    %c15_i32_335 = arith.constant 15 : i32
    %1370 = tpu.dynamic_rotate %430 by %c15_i32_335 dim 0 : vector<16x16xf32>, i32 -> vector<16x16xf32>
    %cst_336 = arith.constant 0.000000e+00 : f32
    %1371 = vector.broadcast %cst_336 : f32 to vector<16x16xf32>
    %1372 = arith.select %7, %1370, %1371 : vector<16x16xi1>, vector<16x16xf32>
    %c61 = arith.constant 61 : index
    %1373 = memref.load %arg2[%c61] : memref<273xf32, #tpu.memory_space<smem>>
    %1374 = vector.broadcast %1373 : f32 to vector<16x16xf32>
    %1375 = arith.mulf %1374, %1372 : vector<16x16xf32>
    %1376 = arith.addf %1361, %1375 : vector<16x16xf32>
    %c151 = arith.constant 151 : index
    %1377 = memref.load %arg2[%c151] : memref<273xf32, #tpu.memory_space<smem>>
    %1378 = vector.broadcast %1377 : f32 to vector<16x16xf32>
    %1379 = arith.mulf %1378, %1372 : vector<16x16xf32>
    %1380 = arith.addf %1365, %1379 : vector<16x16xf32>
    %c241 = arith.constant 241 : index
    %1381 = memref.load %arg2[%c241] : memref<273xf32, #tpu.memory_space<smem>>
    %1382 = vector.broadcast %1381 : f32 to vector<16x16xf32>
    %1383 = arith.mulf %1382, %1372 : vector<16x16xf32>
    %1384 = arith.addf %1369, %1383 : vector<16x16xf32>
    %c15_i32_337 = arith.constant 15 : i32
    %1385 = tpu.dynamic_rotate %1273 by %c15_i32_337 dim 0 : vector<16x16xf32>, i32 -> vector<16x16xf32>
    %cst_338 = arith.constant 0.000000e+00 : f32
    %1386 = vector.broadcast %cst_338 : f32 to vector<16x16xf32>
    %1387 = arith.select %7, %1385, %1386 : vector<16x16xi1>, vector<16x16xf32>
    %c62 = arith.constant 62 : index
    %1388 = memref.load %arg2[%c62] : memref<273xf32, #tpu.memory_space<smem>>
    %1389 = vector.broadcast %1388 : f32 to vector<16x16xf32>
    %1390 = arith.mulf %1389, %1387 : vector<16x16xf32>
    %1391 = arith.addf %1376, %1390 : vector<16x16xf32>
    %c152 = arith.constant 152 : index
    %1392 = memref.load %arg2[%c152] : memref<273xf32, #tpu.memory_space<smem>>
    %1393 = vector.broadcast %1392 : f32 to vector<16x16xf32>
    %1394 = arith.mulf %1393, %1387 : vector<16x16xf32>
    %1395 = arith.addf %1380, %1394 : vector<16x16xf32>
    %c242 = arith.constant 242 : index
    %1396 = memref.load %arg2[%c242] : memref<273xf32, #tpu.memory_space<smem>>
    %1397 = vector.broadcast %1396 : f32 to vector<16x16xf32>
    %1398 = arith.mulf %1397, %1387 : vector<16x16xf32>
    %1399 = arith.addf %1384, %1398 : vector<16x16xf32>
    %c1_i32_339 = arith.constant 1 : i32
    %1400 = tpu.dynamic_rotate %431 by %c1_i32_339 dim 1 : vector<16x16xf32>, i32 -> vector<16x16xf32>
    %cst_340 = arith.constant 0.000000e+00 : f32
    %1401 = vector.broadcast %cst_340 : f32 to vector<16x16xf32>
    %1402 = arith.select %5, %1400, %1401 : vector<16x16xi1>, vector<16x16xf32>
    %c15_i32_341 = arith.constant 15 : i32
    %1403 = tpu.dynamic_rotate %431 by %c15_i32_341 dim 1 : vector<16x16xf32>, i32 -> vector<16x16xf32>
    %cst_342 = arith.constant 0.000000e+00 : f32
    %1404 = vector.broadcast %cst_342 : f32 to vector<16x16xf32>
    %1405 = arith.select %3, %1403, %1404 : vector<16x16xi1>, vector<16x16xf32>
    %c1_i32_343 = arith.constant 1 : i32
    %1406 = tpu.dynamic_rotate %1402 by %c1_i32_343 dim 0 : vector<16x16xf32>, i32 -> vector<16x16xf32>
    %cst_344 = arith.constant 0.000000e+00 : f32
    %1407 = vector.broadcast %cst_344 : f32 to vector<16x16xf32>
    %1408 = arith.select %9, %1406, %1407 : vector<16x16xi1>, vector<16x16xf32>
    %c63 = arith.constant 63 : index
    %1409 = memref.load %arg2[%c63] : memref<273xf32, #tpu.memory_space<smem>>
    %1410 = vector.broadcast %1409 : f32 to vector<16x16xf32>
    %1411 = arith.mulf %1410, %1408 : vector<16x16xf32>
    %1412 = arith.addf %1391, %1411 : vector<16x16xf32>
    %c153 = arith.constant 153 : index
    %1413 = memref.load %arg2[%c153] : memref<273xf32, #tpu.memory_space<smem>>
    %1414 = vector.broadcast %1413 : f32 to vector<16x16xf32>
    %1415 = arith.mulf %1414, %1408 : vector<16x16xf32>
    %1416 = arith.addf %1395, %1415 : vector<16x16xf32>
    %c243 = arith.constant 243 : index
    %1417 = memref.load %arg2[%c243] : memref<273xf32, #tpu.memory_space<smem>>
    %1418 = vector.broadcast %1417 : f32 to vector<16x16xf32>
    %1419 = arith.mulf %1418, %1408 : vector<16x16xf32>
    %1420 = arith.addf %1399, %1419 : vector<16x16xf32>
    %c1_i32_345 = arith.constant 1 : i32
    %1421 = tpu.dynamic_rotate %431 by %c1_i32_345 dim 0 : vector<16x16xf32>, i32 -> vector<16x16xf32>
    %cst_346 = arith.constant 0.000000e+00 : f32
    %1422 = vector.broadcast %cst_346 : f32 to vector<16x16xf32>
    %1423 = arith.select %9, %1421, %1422 : vector<16x16xi1>, vector<16x16xf32>
    %c64 = arith.constant 64 : index
    %1424 = memref.load %arg2[%c64] : memref<273xf32, #tpu.memory_space<smem>>
    %1425 = vector.broadcast %1424 : f32 to vector<16x16xf32>
    %1426 = arith.mulf %1425, %1423 : vector<16x16xf32>
    %1427 = arith.addf %1412, %1426 : vector<16x16xf32>
    %c154 = arith.constant 154 : index
    %1428 = memref.load %arg2[%c154] : memref<273xf32, #tpu.memory_space<smem>>
    %1429 = vector.broadcast %1428 : f32 to vector<16x16xf32>
    %1430 = arith.mulf %1429, %1423 : vector<16x16xf32>
    %1431 = arith.addf %1416, %1430 : vector<16x16xf32>
    %c244 = arith.constant 244 : index
    %1432 = memref.load %arg2[%c244] : memref<273xf32, #tpu.memory_space<smem>>
    %1433 = vector.broadcast %1432 : f32 to vector<16x16xf32>
    %1434 = arith.mulf %1433, %1423 : vector<16x16xf32>
    %1435 = arith.addf %1420, %1434 : vector<16x16xf32>
    %c1_i32_347 = arith.constant 1 : i32
    %1436 = tpu.dynamic_rotate %1405 by %c1_i32_347 dim 0 : vector<16x16xf32>, i32 -> vector<16x16xf32>
    %cst_348 = arith.constant 0.000000e+00 : f32
    %1437 = vector.broadcast %cst_348 : f32 to vector<16x16xf32>
    %1438 = arith.select %9, %1436, %1437 : vector<16x16xi1>, vector<16x16xf32>
    %c65 = arith.constant 65 : index
    %1439 = memref.load %arg2[%c65] : memref<273xf32, #tpu.memory_space<smem>>
    %1440 = vector.broadcast %1439 : f32 to vector<16x16xf32>
    %1441 = arith.mulf %1440, %1438 : vector<16x16xf32>
    %1442 = arith.addf %1427, %1441 : vector<16x16xf32>
    %c155 = arith.constant 155 : index
    %1443 = memref.load %arg2[%c155] : memref<273xf32, #tpu.memory_space<smem>>
    %1444 = vector.broadcast %1443 : f32 to vector<16x16xf32>
    %1445 = arith.mulf %1444, %1438 : vector<16x16xf32>
    %1446 = arith.addf %1431, %1445 : vector<16x16xf32>
    %c245 = arith.constant 245 : index
    %1447 = memref.load %arg2[%c245] : memref<273xf32, #tpu.memory_space<smem>>
    %1448 = vector.broadcast %1447 : f32 to vector<16x16xf32>
    %1449 = arith.mulf %1448, %1438 : vector<16x16xf32>
    %1450 = arith.addf %1435, %1449 : vector<16x16xf32>
    %c66 = arith.constant 66 : index
    %1451 = memref.load %arg2[%c66] : memref<273xf32, #tpu.memory_space<smem>>
    %1452 = vector.broadcast %1451 : f32 to vector<16x16xf32>
    %1453 = arith.mulf %1452, %1402 : vector<16x16xf32>
    %1454 = arith.addf %1442, %1453 : vector<16x16xf32>
    %c156 = arith.constant 156 : index
    %1455 = memref.load %arg2[%c156] : memref<273xf32, #tpu.memory_space<smem>>
    %1456 = vector.broadcast %1455 : f32 to vector<16x16xf32>
    %1457 = arith.mulf %1456, %1402 : vector<16x16xf32>
    %1458 = arith.addf %1446, %1457 : vector<16x16xf32>
    %c246 = arith.constant 246 : index
    %1459 = memref.load %arg2[%c246] : memref<273xf32, #tpu.memory_space<smem>>
    %1460 = vector.broadcast %1459 : f32 to vector<16x16xf32>
    %1461 = arith.mulf %1460, %1402 : vector<16x16xf32>
    %1462 = arith.addf %1450, %1461 : vector<16x16xf32>
    %c67 = arith.constant 67 : index
    %1463 = memref.load %arg2[%c67] : memref<273xf32, #tpu.memory_space<smem>>
    %1464 = vector.broadcast %1463 : f32 to vector<16x16xf32>
    %1465 = arith.mulf %1464, %431 : vector<16x16xf32>
    %1466 = arith.addf %1454, %1465 : vector<16x16xf32>
    %c157 = arith.constant 157 : index
    %1467 = memref.load %arg2[%c157] : memref<273xf32, #tpu.memory_space<smem>>
    %1468 = vector.broadcast %1467 : f32 to vector<16x16xf32>
    %1469 = arith.mulf %1468, %431 : vector<16x16xf32>
    %1470 = arith.addf %1458, %1469 : vector<16x16xf32>
    %c247 = arith.constant 247 : index
    %1471 = memref.load %arg2[%c247] : memref<273xf32, #tpu.memory_space<smem>>
    %1472 = vector.broadcast %1471 : f32 to vector<16x16xf32>
    %1473 = arith.mulf %1472, %431 : vector<16x16xf32>
    %1474 = arith.addf %1462, %1473 : vector<16x16xf32>
    %c68 = arith.constant 68 : index
    %1475 = memref.load %arg2[%c68] : memref<273xf32, #tpu.memory_space<smem>>
    %1476 = vector.broadcast %1475 : f32 to vector<16x16xf32>
    %1477 = arith.mulf %1476, %1405 : vector<16x16xf32>
    %1478 = arith.addf %1466, %1477 : vector<16x16xf32>
    %c158 = arith.constant 158 : index
    %1479 = memref.load %arg2[%c158] : memref<273xf32, #tpu.memory_space<smem>>
    %1480 = vector.broadcast %1479 : f32 to vector<16x16xf32>
    %1481 = arith.mulf %1480, %1405 : vector<16x16xf32>
    %1482 = arith.addf %1470, %1481 : vector<16x16xf32>
    %c248 = arith.constant 248 : index
    %1483 = memref.load %arg2[%c248] : memref<273xf32, #tpu.memory_space<smem>>
    %1484 = vector.broadcast %1483 : f32 to vector<16x16xf32>
    %1485 = arith.mulf %1484, %1405 : vector<16x16xf32>
    %1486 = arith.addf %1474, %1485 : vector<16x16xf32>
    %c15_i32_349 = arith.constant 15 : i32
    %1487 = tpu.dynamic_rotate %1402 by %c15_i32_349 dim 0 : vector<16x16xf32>, i32 -> vector<16x16xf32>
    %cst_350 = arith.constant 0.000000e+00 : f32
    %1488 = vector.broadcast %cst_350 : f32 to vector<16x16xf32>
    %1489 = arith.select %7, %1487, %1488 : vector<16x16xi1>, vector<16x16xf32>
    %c69 = arith.constant 69 : index
    %1490 = memref.load %arg2[%c69] : memref<273xf32, #tpu.memory_space<smem>>
    %1491 = vector.broadcast %1490 : f32 to vector<16x16xf32>
    %1492 = arith.mulf %1491, %1489 : vector<16x16xf32>
    %1493 = arith.addf %1478, %1492 : vector<16x16xf32>
    %c159 = arith.constant 159 : index
    %1494 = memref.load %arg2[%c159] : memref<273xf32, #tpu.memory_space<smem>>
    %1495 = vector.broadcast %1494 : f32 to vector<16x16xf32>
    %1496 = arith.mulf %1495, %1489 : vector<16x16xf32>
    %1497 = arith.addf %1482, %1496 : vector<16x16xf32>
    %c249 = arith.constant 249 : index
    %1498 = memref.load %arg2[%c249] : memref<273xf32, #tpu.memory_space<smem>>
    %1499 = vector.broadcast %1498 : f32 to vector<16x16xf32>
    %1500 = arith.mulf %1499, %1489 : vector<16x16xf32>
    %1501 = arith.addf %1486, %1500 : vector<16x16xf32>
    %c15_i32_351 = arith.constant 15 : i32
    %1502 = tpu.dynamic_rotate %431 by %c15_i32_351 dim 0 : vector<16x16xf32>, i32 -> vector<16x16xf32>
    %cst_352 = arith.constant 0.000000e+00 : f32
    %1503 = vector.broadcast %cst_352 : f32 to vector<16x16xf32>
    %1504 = arith.select %7, %1502, %1503 : vector<16x16xi1>, vector<16x16xf32>
    %c70 = arith.constant 70 : index
    %1505 = memref.load %arg2[%c70] : memref<273xf32, #tpu.memory_space<smem>>
    %1506 = vector.broadcast %1505 : f32 to vector<16x16xf32>
    %1507 = arith.mulf %1506, %1504 : vector<16x16xf32>
    %1508 = arith.addf %1493, %1507 : vector<16x16xf32>
    %c160 = arith.constant 160 : index
    %1509 = memref.load %arg2[%c160] : memref<273xf32, #tpu.memory_space<smem>>
    %1510 = vector.broadcast %1509 : f32 to vector<16x16xf32>
    %1511 = arith.mulf %1510, %1504 : vector<16x16xf32>
    %1512 = arith.addf %1497, %1511 : vector<16x16xf32>
    %c250 = arith.constant 250 : index
    %1513 = memref.load %arg2[%c250] : memref<273xf32, #tpu.memory_space<smem>>
    %1514 = vector.broadcast %1513 : f32 to vector<16x16xf32>
    %1515 = arith.mulf %1514, %1504 : vector<16x16xf32>
    %1516 = arith.addf %1501, %1515 : vector<16x16xf32>
    %c15_i32_353 = arith.constant 15 : i32
    %1517 = tpu.dynamic_rotate %1405 by %c15_i32_353 dim 0 : vector<16x16xf32>, i32 -> vector<16x16xf32>
    %cst_354 = arith.constant 0.000000e+00 : f32
    %1518 = vector.broadcast %cst_354 : f32 to vector<16x16xf32>
    %1519 = arith.select %7, %1517, %1518 : vector<16x16xi1>, vector<16x16xf32>
    %c71 = arith.constant 71 : index
    %1520 = memref.load %arg2[%c71] : memref<273xf32, #tpu.memory_space<smem>>
    %1521 = vector.broadcast %1520 : f32 to vector<16x16xf32>
    %1522 = arith.mulf %1521, %1519 : vector<16x16xf32>
    %1523 = arith.addf %1508, %1522 : vector<16x16xf32>
    %c161 = arith.constant 161 : index
    %1524 = memref.load %arg2[%c161] : memref<273xf32, #tpu.memory_space<smem>>
    %1525 = vector.broadcast %1524 : f32 to vector<16x16xf32>
    %1526 = arith.mulf %1525, %1519 : vector<16x16xf32>
    %1527 = arith.addf %1512, %1526 : vector<16x16xf32>
    %c251 = arith.constant 251 : index
    %1528 = memref.load %arg2[%c251] : memref<273xf32, #tpu.memory_space<smem>>
    %1529 = vector.broadcast %1528 : f32 to vector<16x16xf32>
    %1530 = arith.mulf %1529, %1519 : vector<16x16xf32>
    %1531 = arith.addf %1516, %1530 : vector<16x16xf32>
    %c1_i32_355 = arith.constant 1 : i32
    %1532 = tpu.dynamic_rotate %432 by %c1_i32_355 dim 1 : vector<16x16xf32>, i32 -> vector<16x16xf32>
    %cst_356 = arith.constant 0.000000e+00 : f32
    %1533 = vector.broadcast %cst_356 : f32 to vector<16x16xf32>
    %1534 = arith.select %5, %1532, %1533 : vector<16x16xi1>, vector<16x16xf32>
    %c15_i32_357 = arith.constant 15 : i32
    %1535 = tpu.dynamic_rotate %432 by %c15_i32_357 dim 1 : vector<16x16xf32>, i32 -> vector<16x16xf32>
    %cst_358 = arith.constant 0.000000e+00 : f32
    %1536 = vector.broadcast %cst_358 : f32 to vector<16x16xf32>
    %1537 = arith.select %3, %1535, %1536 : vector<16x16xi1>, vector<16x16xf32>
    %c1_i32_359 = arith.constant 1 : i32
    %1538 = tpu.dynamic_rotate %1534 by %c1_i32_359 dim 0 : vector<16x16xf32>, i32 -> vector<16x16xf32>
    %cst_360 = arith.constant 0.000000e+00 : f32
    %1539 = vector.broadcast %cst_360 : f32 to vector<16x16xf32>
    %1540 = arith.select %9, %1538, %1539 : vector<16x16xi1>, vector<16x16xf32>
    %c72 = arith.constant 72 : index
    %1541 = memref.load %arg2[%c72] : memref<273xf32, #tpu.memory_space<smem>>
    %1542 = vector.broadcast %1541 : f32 to vector<16x16xf32>
    %1543 = arith.mulf %1542, %1540 : vector<16x16xf32>
    %1544 = arith.addf %1523, %1543 : vector<16x16xf32>
    %c162 = arith.constant 162 : index
    %1545 = memref.load %arg2[%c162] : memref<273xf32, #tpu.memory_space<smem>>
    %1546 = vector.broadcast %1545 : f32 to vector<16x16xf32>
    %1547 = arith.mulf %1546, %1540 : vector<16x16xf32>
    %1548 = arith.addf %1527, %1547 : vector<16x16xf32>
    %c252 = arith.constant 252 : index
    %1549 = memref.load %arg2[%c252] : memref<273xf32, #tpu.memory_space<smem>>
    %1550 = vector.broadcast %1549 : f32 to vector<16x16xf32>
    %1551 = arith.mulf %1550, %1540 : vector<16x16xf32>
    %1552 = arith.addf %1531, %1551 : vector<16x16xf32>
    %c1_i32_361 = arith.constant 1 : i32
    %1553 = tpu.dynamic_rotate %432 by %c1_i32_361 dim 0 : vector<16x16xf32>, i32 -> vector<16x16xf32>
    %cst_362 = arith.constant 0.000000e+00 : f32
    %1554 = vector.broadcast %cst_362 : f32 to vector<16x16xf32>
    %1555 = arith.select %9, %1553, %1554 : vector<16x16xi1>, vector<16x16xf32>
    %c73 = arith.constant 73 : index
    %1556 = memref.load %arg2[%c73] : memref<273xf32, #tpu.memory_space<smem>>
    %1557 = vector.broadcast %1556 : f32 to vector<16x16xf32>
    %1558 = arith.mulf %1557, %1555 : vector<16x16xf32>
    %1559 = arith.addf %1544, %1558 : vector<16x16xf32>
    %c163 = arith.constant 163 : index
    %1560 = memref.load %arg2[%c163] : memref<273xf32, #tpu.memory_space<smem>>
    %1561 = vector.broadcast %1560 : f32 to vector<16x16xf32>
    %1562 = arith.mulf %1561, %1555 : vector<16x16xf32>
    %1563 = arith.addf %1548, %1562 : vector<16x16xf32>
    %c253 = arith.constant 253 : index
    %1564 = memref.load %arg2[%c253] : memref<273xf32, #tpu.memory_space<smem>>
    %1565 = vector.broadcast %1564 : f32 to vector<16x16xf32>
    %1566 = arith.mulf %1565, %1555 : vector<16x16xf32>
    %1567 = arith.addf %1552, %1566 : vector<16x16xf32>
    %c1_i32_363 = arith.constant 1 : i32
    %1568 = tpu.dynamic_rotate %1537 by %c1_i32_363 dim 0 : vector<16x16xf32>, i32 -> vector<16x16xf32>
    %cst_364 = arith.constant 0.000000e+00 : f32
    %1569 = vector.broadcast %cst_364 : f32 to vector<16x16xf32>
    %1570 = arith.select %9, %1568, %1569 : vector<16x16xi1>, vector<16x16xf32>
    %c74 = arith.constant 74 : index
    %1571 = memref.load %arg2[%c74] : memref<273xf32, #tpu.memory_space<smem>>
    %1572 = vector.broadcast %1571 : f32 to vector<16x16xf32>
    %1573 = arith.mulf %1572, %1570 : vector<16x16xf32>
    %1574 = arith.addf %1559, %1573 : vector<16x16xf32>
    %c164 = arith.constant 164 : index
    %1575 = memref.load %arg2[%c164] : memref<273xf32, #tpu.memory_space<smem>>
    %1576 = vector.broadcast %1575 : f32 to vector<16x16xf32>
    %1577 = arith.mulf %1576, %1570 : vector<16x16xf32>
    %1578 = arith.addf %1563, %1577 : vector<16x16xf32>
    %c254 = arith.constant 254 : index
    %1579 = memref.load %arg2[%c254] : memref<273xf32, #tpu.memory_space<smem>>
    %1580 = vector.broadcast %1579 : f32 to vector<16x16xf32>
    %1581 = arith.mulf %1580, %1570 : vector<16x16xf32>
    %1582 = arith.addf %1567, %1581 : vector<16x16xf32>
    %c75 = arith.constant 75 : index
    %1583 = memref.load %arg2[%c75] : memref<273xf32, #tpu.memory_space<smem>>
    %1584 = vector.broadcast %1583 : f32 to vector<16x16xf32>
    %1585 = arith.mulf %1584, %1534 : vector<16x16xf32>
    %1586 = arith.addf %1574, %1585 : vector<16x16xf32>
    %c165 = arith.constant 165 : index
    %1587 = memref.load %arg2[%c165] : memref<273xf32, #tpu.memory_space<smem>>
    %1588 = vector.broadcast %1587 : f32 to vector<16x16xf32>
    %1589 = arith.mulf %1588, %1534 : vector<16x16xf32>
    %1590 = arith.addf %1578, %1589 : vector<16x16xf32>
    %c255 = arith.constant 255 : index
    %1591 = memref.load %arg2[%c255] : memref<273xf32, #tpu.memory_space<smem>>
    %1592 = vector.broadcast %1591 : f32 to vector<16x16xf32>
    %1593 = arith.mulf %1592, %1534 : vector<16x16xf32>
    %1594 = arith.addf %1582, %1593 : vector<16x16xf32>
    %c76 = arith.constant 76 : index
    %1595 = memref.load %arg2[%c76] : memref<273xf32, #tpu.memory_space<smem>>
    %1596 = vector.broadcast %1595 : f32 to vector<16x16xf32>
    %1597 = arith.mulf %1596, %432 : vector<16x16xf32>
    %1598 = arith.addf %1586, %1597 : vector<16x16xf32>
    %c166 = arith.constant 166 : index
    %1599 = memref.load %arg2[%c166] : memref<273xf32, #tpu.memory_space<smem>>
    %1600 = vector.broadcast %1599 : f32 to vector<16x16xf32>
    %1601 = arith.mulf %1600, %432 : vector<16x16xf32>
    %1602 = arith.addf %1590, %1601 : vector<16x16xf32>
    %c256 = arith.constant 256 : index
    %1603 = memref.load %arg2[%c256] : memref<273xf32, #tpu.memory_space<smem>>
    %1604 = vector.broadcast %1603 : f32 to vector<16x16xf32>
    %1605 = arith.mulf %1604, %432 : vector<16x16xf32>
    %1606 = arith.addf %1594, %1605 : vector<16x16xf32>
    %c77 = arith.constant 77 : index
    %1607 = memref.load %arg2[%c77] : memref<273xf32, #tpu.memory_space<smem>>
    %1608 = vector.broadcast %1607 : f32 to vector<16x16xf32>
    %1609 = arith.mulf %1608, %1537 : vector<16x16xf32>
    %1610 = arith.addf %1598, %1609 : vector<16x16xf32>
    %c167 = arith.constant 167 : index
    %1611 = memref.load %arg2[%c167] : memref<273xf32, #tpu.memory_space<smem>>
    %1612 = vector.broadcast %1611 : f32 to vector<16x16xf32>
    %1613 = arith.mulf %1612, %1537 : vector<16x16xf32>
    %1614 = arith.addf %1602, %1613 : vector<16x16xf32>
    %c257 = arith.constant 257 : index
    %1615 = memref.load %arg2[%c257] : memref<273xf32, #tpu.memory_space<smem>>
    %1616 = vector.broadcast %1615 : f32 to vector<16x16xf32>
    %1617 = arith.mulf %1616, %1537 : vector<16x16xf32>
    %1618 = arith.addf %1606, %1617 : vector<16x16xf32>
    %c15_i32_365 = arith.constant 15 : i32
    %1619 = tpu.dynamic_rotate %1534 by %c15_i32_365 dim 0 : vector<16x16xf32>, i32 -> vector<16x16xf32>
    %cst_366 = arith.constant 0.000000e+00 : f32
    %1620 = vector.broadcast %cst_366 : f32 to vector<16x16xf32>
    %1621 = arith.select %7, %1619, %1620 : vector<16x16xi1>, vector<16x16xf32>
    %c78 = arith.constant 78 : index
    %1622 = memref.load %arg2[%c78] : memref<273xf32, #tpu.memory_space<smem>>
    %1623 = vector.broadcast %1622 : f32 to vector<16x16xf32>
    %1624 = arith.mulf %1623, %1621 : vector<16x16xf32>
    %1625 = arith.addf %1610, %1624 : vector<16x16xf32>
    %c168 = arith.constant 168 : index
    %1626 = memref.load %arg2[%c168] : memref<273xf32, #tpu.memory_space<smem>>
    %1627 = vector.broadcast %1626 : f32 to vector<16x16xf32>
    %1628 = arith.mulf %1627, %1621 : vector<16x16xf32>
    %1629 = arith.addf %1614, %1628 : vector<16x16xf32>
    %c258 = arith.constant 258 : index
    %1630 = memref.load %arg2[%c258] : memref<273xf32, #tpu.memory_space<smem>>
    %1631 = vector.broadcast %1630 : f32 to vector<16x16xf32>
    %1632 = arith.mulf %1631, %1621 : vector<16x16xf32>
    %1633 = arith.addf %1618, %1632 : vector<16x16xf32>
    %c15_i32_367 = arith.constant 15 : i32
    %1634 = tpu.dynamic_rotate %432 by %c15_i32_367 dim 0 : vector<16x16xf32>, i32 -> vector<16x16xf32>
    %cst_368 = arith.constant 0.000000e+00 : f32
    %1635 = vector.broadcast %cst_368 : f32 to vector<16x16xf32>
    %1636 = arith.select %7, %1634, %1635 : vector<16x16xi1>, vector<16x16xf32>
    %c79 = arith.constant 79 : index
    %1637 = memref.load %arg2[%c79] : memref<273xf32, #tpu.memory_space<smem>>
    %1638 = vector.broadcast %1637 : f32 to vector<16x16xf32>
    %1639 = arith.mulf %1638, %1636 : vector<16x16xf32>
    %1640 = arith.addf %1625, %1639 : vector<16x16xf32>
    %c169 = arith.constant 169 : index
    %1641 = memref.load %arg2[%c169] : memref<273xf32, #tpu.memory_space<smem>>
    %1642 = vector.broadcast %1641 : f32 to vector<16x16xf32>
    %1643 = arith.mulf %1642, %1636 : vector<16x16xf32>
    %1644 = arith.addf %1629, %1643 : vector<16x16xf32>
    %c259 = arith.constant 259 : index
    %1645 = memref.load %arg2[%c259] : memref<273xf32, #tpu.memory_space<smem>>
    %1646 = vector.broadcast %1645 : f32 to vector<16x16xf32>
    %1647 = arith.mulf %1646, %1636 : vector<16x16xf32>
    %1648 = arith.addf %1633, %1647 : vector<16x16xf32>
    %c15_i32_369 = arith.constant 15 : i32
    %1649 = tpu.dynamic_rotate %1537 by %c15_i32_369 dim 0 : vector<16x16xf32>, i32 -> vector<16x16xf32>
    %cst_370 = arith.constant 0.000000e+00 : f32
    %1650 = vector.broadcast %cst_370 : f32 to vector<16x16xf32>
    %1651 = arith.select %7, %1649, %1650 : vector<16x16xi1>, vector<16x16xf32>
    %c80 = arith.constant 80 : index
    %1652 = memref.load %arg2[%c80] : memref<273xf32, #tpu.memory_space<smem>>
    %1653 = vector.broadcast %1652 : f32 to vector<16x16xf32>
    %1654 = arith.mulf %1653, %1651 : vector<16x16xf32>
    %1655 = arith.addf %1640, %1654 : vector<16x16xf32>
    %c170 = arith.constant 170 : index
    %1656 = memref.load %arg2[%c170] : memref<273xf32, #tpu.memory_space<smem>>
    %1657 = vector.broadcast %1656 : f32 to vector<16x16xf32>
    %1658 = arith.mulf %1657, %1651 : vector<16x16xf32>
    %1659 = arith.addf %1644, %1658 : vector<16x16xf32>
    %c260 = arith.constant 260 : index
    %1660 = memref.load %arg2[%c260] : memref<273xf32, #tpu.memory_space<smem>>
    %1661 = vector.broadcast %1660 : f32 to vector<16x16xf32>
    %1662 = arith.mulf %1661, %1651 : vector<16x16xf32>
    %1663 = arith.addf %1648, %1662 : vector<16x16xf32>
    %c1_i32_371 = arith.constant 1 : i32
    %1664 = tpu.dynamic_rotate %463 by %c1_i32_371 dim 1 : vector<16x16xf32>, i32 -> vector<16x16xf32>
    %cst_372 = arith.constant 0.000000e+00 : f32
    %1665 = vector.broadcast %cst_372 : f32 to vector<16x16xf32>
    %1666 = arith.select %5, %1664, %1665 : vector<16x16xi1>, vector<16x16xf32>
    %c15_i32_373 = arith.constant 15 : i32
    %1667 = tpu.dynamic_rotate %463 by %c15_i32_373 dim 1 : vector<16x16xf32>, i32 -> vector<16x16xf32>
    %cst_374 = arith.constant 0.000000e+00 : f32
    %1668 = vector.broadcast %cst_374 : f32 to vector<16x16xf32>
    %1669 = arith.select %3, %1667, %1668 : vector<16x16xi1>, vector<16x16xf32>
    %c1_i32_375 = arith.constant 1 : i32
    %1670 = tpu.dynamic_rotate %1666 by %c1_i32_375 dim 0 : vector<16x16xf32>, i32 -> vector<16x16xf32>
    %cst_376 = arith.constant 0.000000e+00 : f32
    %1671 = vector.broadcast %cst_376 : f32 to vector<16x16xf32>
    %1672 = arith.select %9, %1670, %1671 : vector<16x16xi1>, vector<16x16xf32>
    %c81 = arith.constant 81 : index
    %1673 = memref.load %arg2[%c81] : memref<273xf32, #tpu.memory_space<smem>>
    %1674 = vector.broadcast %1673 : f32 to vector<16x16xf32>
    %1675 = arith.mulf %1674, %1672 : vector<16x16xf32>
    %1676 = arith.addf %1655, %1675 : vector<16x16xf32>
    %c171 = arith.constant 171 : index
    %1677 = memref.load %arg2[%c171] : memref<273xf32, #tpu.memory_space<smem>>
    %1678 = vector.broadcast %1677 : f32 to vector<16x16xf32>
    %1679 = arith.mulf %1678, %1672 : vector<16x16xf32>
    %1680 = arith.addf %1659, %1679 : vector<16x16xf32>
    %c261 = arith.constant 261 : index
    %1681 = memref.load %arg2[%c261] : memref<273xf32, #tpu.memory_space<smem>>
    %1682 = vector.broadcast %1681 : f32 to vector<16x16xf32>
    %1683 = arith.mulf %1682, %1672 : vector<16x16xf32>
    %1684 = arith.addf %1663, %1683 : vector<16x16xf32>
    %c1_i32_377 = arith.constant 1 : i32
    %1685 = tpu.dynamic_rotate %463 by %c1_i32_377 dim 0 : vector<16x16xf32>, i32 -> vector<16x16xf32>
    %cst_378 = arith.constant 0.000000e+00 : f32
    %1686 = vector.broadcast %cst_378 : f32 to vector<16x16xf32>
    %1687 = arith.select %9, %1685, %1686 : vector<16x16xi1>, vector<16x16xf32>
    %c82 = arith.constant 82 : index
    %1688 = memref.load %arg2[%c82] : memref<273xf32, #tpu.memory_space<smem>>
    %1689 = vector.broadcast %1688 : f32 to vector<16x16xf32>
    %1690 = arith.mulf %1689, %1687 : vector<16x16xf32>
    %1691 = arith.addf %1676, %1690 : vector<16x16xf32>
    %c172 = arith.constant 172 : index
    %1692 = memref.load %arg2[%c172] : memref<273xf32, #tpu.memory_space<smem>>
    %1693 = vector.broadcast %1692 : f32 to vector<16x16xf32>
    %1694 = arith.mulf %1693, %1687 : vector<16x16xf32>
    %1695 = arith.addf %1680, %1694 : vector<16x16xf32>
    %c262 = arith.constant 262 : index
    %1696 = memref.load %arg2[%c262] : memref<273xf32, #tpu.memory_space<smem>>
    %1697 = vector.broadcast %1696 : f32 to vector<16x16xf32>
    %1698 = arith.mulf %1697, %1687 : vector<16x16xf32>
    %1699 = arith.addf %1684, %1698 : vector<16x16xf32>
    %c1_i32_379 = arith.constant 1 : i32
    %1700 = tpu.dynamic_rotate %1669 by %c1_i32_379 dim 0 : vector<16x16xf32>, i32 -> vector<16x16xf32>
    %cst_380 = arith.constant 0.000000e+00 : f32
    %1701 = vector.broadcast %cst_380 : f32 to vector<16x16xf32>
    %1702 = arith.select %9, %1700, %1701 : vector<16x16xi1>, vector<16x16xf32>
    %c83 = arith.constant 83 : index
    %1703 = memref.load %arg2[%c83] : memref<273xf32, #tpu.memory_space<smem>>
    %1704 = vector.broadcast %1703 : f32 to vector<16x16xf32>
    %1705 = arith.mulf %1704, %1702 : vector<16x16xf32>
    %1706 = arith.addf %1691, %1705 : vector<16x16xf32>
    %c173 = arith.constant 173 : index
    %1707 = memref.load %arg2[%c173] : memref<273xf32, #tpu.memory_space<smem>>
    %1708 = vector.broadcast %1707 : f32 to vector<16x16xf32>
    %1709 = arith.mulf %1708, %1702 : vector<16x16xf32>
    %1710 = arith.addf %1695, %1709 : vector<16x16xf32>
    %c263 = arith.constant 263 : index
    %1711 = memref.load %arg2[%c263] : memref<273xf32, #tpu.memory_space<smem>>
    %1712 = vector.broadcast %1711 : f32 to vector<16x16xf32>
    %1713 = arith.mulf %1712, %1702 : vector<16x16xf32>
    %1714 = arith.addf %1699, %1713 : vector<16x16xf32>
    %c84 = arith.constant 84 : index
    %1715 = memref.load %arg2[%c84] : memref<273xf32, #tpu.memory_space<smem>>
    %1716 = vector.broadcast %1715 : f32 to vector<16x16xf32>
    %1717 = arith.mulf %1716, %1666 : vector<16x16xf32>
    %1718 = arith.addf %1706, %1717 : vector<16x16xf32>
    %c174 = arith.constant 174 : index
    %1719 = memref.load %arg2[%c174] : memref<273xf32, #tpu.memory_space<smem>>
    %1720 = vector.broadcast %1719 : f32 to vector<16x16xf32>
    %1721 = arith.mulf %1720, %1666 : vector<16x16xf32>
    %1722 = arith.addf %1710, %1721 : vector<16x16xf32>
    %c264 = arith.constant 264 : index
    %1723 = memref.load %arg2[%c264] : memref<273xf32, #tpu.memory_space<smem>>
    %1724 = vector.broadcast %1723 : f32 to vector<16x16xf32>
    %1725 = arith.mulf %1724, %1666 : vector<16x16xf32>
    %1726 = arith.addf %1714, %1725 : vector<16x16xf32>
    %c85 = arith.constant 85 : index
    %1727 = memref.load %arg2[%c85] : memref<273xf32, #tpu.memory_space<smem>>
    %1728 = vector.broadcast %1727 : f32 to vector<16x16xf32>
    %1729 = arith.mulf %1728, %463 : vector<16x16xf32>
    %1730 = arith.addf %1718, %1729 : vector<16x16xf32>
    %c175 = arith.constant 175 : index
    %1731 = memref.load %arg2[%c175] : memref<273xf32, #tpu.memory_space<smem>>
    %1732 = vector.broadcast %1731 : f32 to vector<16x16xf32>
    %1733 = arith.mulf %1732, %463 : vector<16x16xf32>
    %1734 = arith.addf %1722, %1733 : vector<16x16xf32>
    %c265 = arith.constant 265 : index
    %1735 = memref.load %arg2[%c265] : memref<273xf32, #tpu.memory_space<smem>>
    %1736 = vector.broadcast %1735 : f32 to vector<16x16xf32>
    %1737 = arith.mulf %1736, %463 : vector<16x16xf32>
    %1738 = arith.addf %1726, %1737 : vector<16x16xf32>
    %c86 = arith.constant 86 : index
    %1739 = memref.load %arg2[%c86] : memref<273xf32, #tpu.memory_space<smem>>
    %1740 = vector.broadcast %1739 : f32 to vector<16x16xf32>
    %1741 = arith.mulf %1740, %1669 : vector<16x16xf32>
    %1742 = arith.addf %1730, %1741 : vector<16x16xf32>
    %c176 = arith.constant 176 : index
    %1743 = memref.load %arg2[%c176] : memref<273xf32, #tpu.memory_space<smem>>
    %1744 = vector.broadcast %1743 : f32 to vector<16x16xf32>
    %1745 = arith.mulf %1744, %1669 : vector<16x16xf32>
    %1746 = arith.addf %1734, %1745 : vector<16x16xf32>
    %c266 = arith.constant 266 : index
    %1747 = memref.load %arg2[%c266] : memref<273xf32, #tpu.memory_space<smem>>
    %1748 = vector.broadcast %1747 : f32 to vector<16x16xf32>
    %1749 = arith.mulf %1748, %1669 : vector<16x16xf32>
    %1750 = arith.addf %1738, %1749 : vector<16x16xf32>
    %c15_i32_381 = arith.constant 15 : i32
    %1751 = tpu.dynamic_rotate %1666 by %c15_i32_381 dim 0 : vector<16x16xf32>, i32 -> vector<16x16xf32>
    %cst_382 = arith.constant 0.000000e+00 : f32
    %1752 = vector.broadcast %cst_382 : f32 to vector<16x16xf32>
    %1753 = arith.select %7, %1751, %1752 : vector<16x16xi1>, vector<16x16xf32>
    %c87 = arith.constant 87 : index
    %1754 = memref.load %arg2[%c87] : memref<273xf32, #tpu.memory_space<smem>>
    %1755 = vector.broadcast %1754 : f32 to vector<16x16xf32>
    %1756 = arith.mulf %1755, %1753 : vector<16x16xf32>
    %1757 = arith.addf %1742, %1756 : vector<16x16xf32>
    %c177 = arith.constant 177 : index
    %1758 = memref.load %arg2[%c177] : memref<273xf32, #tpu.memory_space<smem>>
    %1759 = vector.broadcast %1758 : f32 to vector<16x16xf32>
    %1760 = arith.mulf %1759, %1753 : vector<16x16xf32>
    %1761 = arith.addf %1746, %1760 : vector<16x16xf32>
    %c267 = arith.constant 267 : index
    %1762 = memref.load %arg2[%c267] : memref<273xf32, #tpu.memory_space<smem>>
    %1763 = vector.broadcast %1762 : f32 to vector<16x16xf32>
    %1764 = arith.mulf %1763, %1753 : vector<16x16xf32>
    %1765 = arith.addf %1750, %1764 : vector<16x16xf32>
    %c15_i32_383 = arith.constant 15 : i32
    %1766 = tpu.dynamic_rotate %463 by %c15_i32_383 dim 0 : vector<16x16xf32>, i32 -> vector<16x16xf32>
    %cst_384 = arith.constant 0.000000e+00 : f32
    %1767 = vector.broadcast %cst_384 : f32 to vector<16x16xf32>
    %1768 = arith.select %7, %1766, %1767 : vector<16x16xi1>, vector<16x16xf32>
    %c88 = arith.constant 88 : index
    %1769 = memref.load %arg2[%c88] : memref<273xf32, #tpu.memory_space<smem>>
    %1770 = vector.broadcast %1769 : f32 to vector<16x16xf32>
    %1771 = arith.mulf %1770, %1768 : vector<16x16xf32>
    %1772 = arith.addf %1757, %1771 : vector<16x16xf32>
    %c178 = arith.constant 178 : index
    %1773 = memref.load %arg2[%c178] : memref<273xf32, #tpu.memory_space<smem>>
    %1774 = vector.broadcast %1773 : f32 to vector<16x16xf32>
    %1775 = arith.mulf %1774, %1768 : vector<16x16xf32>
    %1776 = arith.addf %1761, %1775 : vector<16x16xf32>
    %c268 = arith.constant 268 : index
    %1777 = memref.load %arg2[%c268] : memref<273xf32, #tpu.memory_space<smem>>
    %1778 = vector.broadcast %1777 : f32 to vector<16x16xf32>
    %1779 = arith.mulf %1778, %1768 : vector<16x16xf32>
    %1780 = arith.addf %1765, %1779 : vector<16x16xf32>
    %c15_i32_385 = arith.constant 15 : i32
    %1781 = tpu.dynamic_rotate %1669 by %c15_i32_385 dim 0 : vector<16x16xf32>, i32 -> vector<16x16xf32>
    %cst_386 = arith.constant 0.000000e+00 : f32
    %1782 = vector.broadcast %cst_386 : f32 to vector<16x16xf32>
    %1783 = arith.select %7, %1781, %1782 : vector<16x16xi1>, vector<16x16xf32>
    %c89 = arith.constant 89 : index
    %1784 = memref.load %arg2[%c89] : memref<273xf32, #tpu.memory_space<smem>>
    %1785 = vector.broadcast %1784 : f32 to vector<16x16xf32>
    %1786 = arith.mulf %1785, %1783 : vector<16x16xf32>
    %1787 = arith.addf %1772, %1786 : vector<16x16xf32>
    %c179 = arith.constant 179 : index
    %1788 = memref.load %arg2[%c179] : memref<273xf32, #tpu.memory_space<smem>>
    %1789 = vector.broadcast %1788 : f32 to vector<16x16xf32>
    %1790 = arith.mulf %1789, %1783 : vector<16x16xf32>
    %1791 = arith.addf %1776, %1790 : vector<16x16xf32>
    %c269 = arith.constant 269 : index
    %1792 = memref.load %arg2[%c269] : memref<273xf32, #tpu.memory_space<smem>>
    %1793 = vector.broadcast %1792 : f32 to vector<16x16xf32>
    %1794 = arith.mulf %1793, %1783 : vector<16x16xf32>
    %1795 = arith.addf %1780, %1794 : vector<16x16xf32>
    %1796 = arith.negf %1787 : vector<16x16xf32>
    %1797 = math.exp %1796 : vector<16x16xf32>
    %cst_387 = arith.constant 1.000000e+00 : f32
    %1798 = vector.broadcast %cst_387 : f32 to vector<16x16xf32>
    %1799 = arith.addf %1798, %1797 : vector<16x16xf32>
    %1800 = arith.divf %1798, %1799 : vector<16x16xf32>
    %c0_388 = arith.constant 0 : index
    %c0_389 = arith.constant 0 : index
    %c0_390 = arith.constant 0 : index
    %c0_391 = arith.constant 0 : index
    %1801 = vector.load %arg5[%c0_388, %c0_389, %c0_390, %c0_391] : memref<1x3x16x16xf32, #tpu.memory_space<vmem>>, vector<1x1x16x16xf32>
    %1802 = vector.shape_cast %1801 : vector<1x1x16x16xf32> to vector<16x16xf32>
    %1803 = vector.shape_cast %1800 : vector<16x16xf32> to vector<1x1x16x16xf32>
    tpu.vector_store %arg5[%c0_388, %c0_389, %c0_390, %c0_391], %1803 {strides = array<i32>} : memref<1x3x16x16xf32, #tpu.memory_space<vmem>>, vector<1x1x16x16xf32>,
    %1804 = arith.negf %1791 : vector<16x16xf32>
    %1805 = math.exp %1804 : vector<16x16xf32>
    %cst_392 = arith.constant 1.000000e+00 : f32
    %1806 = vector.broadcast %cst_392 : f32 to vector<16x16xf32>
    %1807 = arith.addf %1806, %1805 : vector<16x16xf32>
    %1808 = arith.divf %1806, %1807 : vector<16x16xf32>
    %c0_393 = arith.constant 0 : index
    %c1_394 = arith.constant 1 : index
    %c0_395 = arith.constant 0 : index
    %c0_396 = arith.constant 0 : index
    %1809 = vector.load %arg5[%c0_393, %c1_394, %c0_395, %c0_396] : memref<1x3x16x16xf32, #tpu.memory_space<vmem>>, vector<1x1x16x16xf32>
    %1810 = vector.shape_cast %1809 : vector<1x1x16x16xf32> to vector<16x16xf32>
    %1811 = vector.shape_cast %1808 : vector<16x16xf32> to vector<1x1x16x16xf32>
    tpu.vector_store %arg5[%c0_393, %c1_394, %c0_395, %c0_396], %1811 {strides = array<i32>} : memref<1x3x16x16xf32, #tpu.memory_space<vmem>>, vector<1x1x16x16xf32>,
    %1812 = arith.negf %1795 : vector<16x16xf32>
    %1813 = math.exp %1812 : vector<16x16xf32>
    %cst_397 = arith.constant 1.000000e+00 : f32
    %1814 = vector.broadcast %cst_397 : f32 to vector<16x16xf32>
    %1815 = arith.addf %1814, %1813 : vector<16x16xf32>
    %1816 = arith.divf %1814, %1815 : vector<16x16xf32>
    %c0_398 = arith.constant 0 : index
    %c2_399 = arith.constant 2 : index
    %c0_400 = arith.constant 0 : index
    %c0_401 = arith.constant 0 : index
    %1817 = vector.load %arg5[%c0_398, %c2_399, %c0_400, %c0_401] : memref<1x3x16x16xf32, #tpu.memory_space<vmem>>, vector<1x1x16x16xf32>
    %1818 = vector.shape_cast %1817 : vector<1x1x16x16xf32> to vector<16x16xf32>
    %1819 = vector.shape_cast %1816 : vector<16x16xf32> to vector<1x1x16x16xf32>
    tpu.vector_store %arg5[%c0_398, %c2_399, %c0_400, %c0_401], %1819 {strides = array<i32>} : memref<1x3x16x16xf32, #tpu.memory_space<vmem>>, vector<1x1x16x16xf32>,
    return
  }
  func.func @transform_0(%arg0: i32) -> i32 {
    %c0_i32 = arith.constant 0 : i32
    %c0_i32_0 = arith.constant 0 : i32
    return %c0_i32 : i32
  }
  func.func @transform_1(%arg0: i32) -> i32 {
    %c0_i32 = arith.constant 0 : i32
    %c0_i32_0 = arith.constant 0 : i32
    return %c0_i32 : i32
  }
  func.func @transform_2(%arg0: i32) -> (i32, i32, i32, i32) {
    %c0_i32 = arith.constant 0 : i32
    %c0_i32_0 = arith.constant 0 : i32
    %c0_i32_1 = arith.constant 0 : i32
    %c0_i32_2 = arith.constant 0 : i32
    return %arg0, %c0_i32, %c0_i32_0, %c0_i32_1 : i32, i32, i32, i32
  }
  func.func @transform_3(%arg0: i32) -> (i32, i32, i32, i32) {
    %c0_i32 = arith.constant 0 : i32
    %c0_i32_0 = arith.constant 0 : i32
    %c0_i32_1 = arith.constant 0 : i32
    %c0_i32_2 = arith.constant 0 : i32
    return %arg0, %c0_i32, %c0_i32_0, %c0_i32_1 : i32, i32, i32, i32
  }
  func.func @transform_4(%arg0: i32) -> (i32, i32, i32, i32) {
    %c0_i32 = arith.constant 0 : i32
    %c0_i32_0 = arith.constant 0 : i32
    %c0_i32_1 = arith.constant 0 : i32
    %c0_i32_2 = arith.constant 0 : i32
    return %arg0, %c0_i32, %c0_i32_0, %c0_i32_1 : i32, i32, i32, i32
  }
  func.func @transform_5(%arg0: i32) -> (i32, i32, i32, i32) {
    %c0_i32 = arith.constant 0 : i32
    %c0_i32_0 = arith.constant 0 : i32
    %c0_i32_1 = arith.constant 0 : i32
    %c0_i32_2 = arith.constant 0 : i32
    return %arg0, %c0_i32, %c0_i32_0, %c0_i32_1 : i32, i32, i32, i32
  }
  func.func @transform_6(%arg0: i32) -> (i32, i32, i32, i32) {
    %c0_i32 = arith.constant 0 : i32
    %c0_i32_0 = arith.constant 0 : i32
    %c0_i32_1 = arith.constant 0 : i32
    %c0_i32_2 = arith.constant 0 : i32
    return %arg0, %c0_i32, %c0_i32_0, %c0_i32_1 : i32, i32, i32, i32
  }
  func.func @transform_7(%arg0: i32) -> (i32, i32, i32, i32) {
    %c0_i32 = arith.constant 0 : i32
    %c0_i32_0 = arith.constant 0 : i32
    %c0_i32_1 = arith.constant 0 : i32
    %c0_i32_2 = arith.constant 0 : i32
    return %arg0, %c0_i32, %c0_i32_0, %c0_i32_1 : i32, i32, i32, i32
  }
  func.func @transform_8(%arg0: i32) -> (i32, i32, i32) {
    %c0_i32 = arith.constant 0 : i32
    %c0_i32_0 = arith.constant 0 : i32
    %c0_i32_1 = arith.constant 0 : i32
    return %arg0, %c0_i32, %c0_i32_0 : i32, i32, i32
  }
}

</mosaic_0001>

<llo_original>
// kernel: _lambda_.1
$region0: #{_lambda_.1}
  #allocation0 [shape = 'u32[]', space=smem, size = 0x4, offset = 0x4, fixed_abs, tag = 'smem constant byte address 0x4 - core index']
  #allocation1 [shape = 'u32[144,128]{1,0:T(1,128)}', space=vmem, size = 0x12000, scoped, tag = 'internal scratch']
  %s0 = inlined_call_operand.vmem [shape: f32[55], index: 0, kind: input, shape index: {}]
  %s1 = inlined_call_operand.vmem [shape: f32[273], index: 1, kind: input, shape index: {}]
  %s2 = inlined_call_operand.hbm [shape: f32[2,3,16,16], index: 2, kind: input, shape index: {}]
  %s3 = inlined_call_operand.hbm [shape: f32[2,3,16,16], index: 3, kind: input, shape index: {}]
  %s4 = inlined_call_operand.hbm [shape: f32[2,3,16,16], index: 4, kind: output, shape index: {0}]
  %s5 = inlined_call_operand.vmem [shape: f32[2,3,16,16], index: 5, kind: output, shape index: {1}]
  %s6 = inlined_call_operand.hbm [shape: f32[2,3,16,16], index: 6, kind: output, shape index: {2}]
  %s7 = inlined_call_operand.hbm [shape: f32[2,1,16,16], index: 7, kind: output, shape index: {3}]
  %s8 = inlined_call_operand.vmem [shape: f32[2,16,16], index: 8, kind: output, shape index: {4}]
  %9 = xla_tuple %s4, %s5, %s6, %s7, %s8
  %s10 = sld [smem:[#allocation0]]
  $region97: #{_lambda_.1} parent=0
    _
  %s12 = ssub.s32 1, %s10
  %s13 = scalar_select 0, %s12, %s10
  $region1: #{_lambda_.1} parent=0
    #allocation2 [shape = 'u8[512]{0}', space=smem, size = 0x200, scoped, tag = 'input window, operand 0, single buffered']
    #allocation3 [shape = 's32[2]{0}', space=sflag, size = 0x8, scoped, tag = 'scoped memory for _lambda_.1']
    #allocation4 [shape = 's32[2]{0}', space=sflag, size = 0x8, scoped, tag = 'scoped memory for _lambda_.1']
    #allocation5 [shape = 's32[2]{0}', space=sflag, size = 0x8, scoped, tag = 'scoped memory for _lambda_.1']
    #allocation6 [shape = 'u8[1536]{0}', space=smem, size = 0x600, scoped, tag = 'input window, operand 1, single buffered']
    #allocation7 [shape = 's32[1]{0}', space=sflag, size = 0x4, scoped, tag = 'scoped memory for _lambda_.1']
    #allocation8 [shape = 'u8[49152]{0}', space=vmem, size = 0xc000, scoped, tag = 'input window, operand 2']
    #allocation9 [shape = 'u8[49152]{0}', space=vmem, size = 0xc000, scoped, tag = 'input window, operand 3']
    #allocation10 [shape = 's32[2]{0}', space=sflag, size = 0x8, scoped, tag = 'scoped memory for _lambda_.1']
    #allocation11 [shape = 'u8[49152]{0}', space=vmem, size = 0xc000, scoped, tag = 'output window, operand 0']
    #allocation12 [shape = 'u8[49152]{0}', space=vmem, size = 0xc000, scoped, tag = 'output window, operand 2']
    #allocation13 [shape = 's32[2]{0}', space=sflag, size = 0x8, scoped, tag = 'scoped memory for _lambda_.1']
    #allocation14 [shape = 'u8[16384]{0}', space=vmem, size = 0x4000, scoped, tag = 'output window, operand 3']
    %14 = vsyncpa [#allocation5], 0
    %15 = vsyncpa [#allocation7], 0
    %16 = vsyncpa [#allocation3], 0
    %s17 = scalar_lea.sflag [#allocation3], 1
    %18 = vsyncpa %s17, 0
    %19 = vsyncpa [#allocation10], 0
    %s20 = scalar_lea.sflag [#allocation10], 1
    %21 = vsyncpa %s20, 0
    %22 = vsyncpa [#allocation4], 0
    %s23 = scalar_lea.sflag [#allocation4], 1
    %24 = vsyncpa %s23, 0
    %25 = vsyncpa [#allocation13], 0
    %s26 = scalar_lea.sflag [#allocation13], 1
    %27 = vsyncpa %s26, 0
    loop: start=0, step=1, limit=4
    $region2: #{_lambda_.1} parent=1 // loop_pre_header
      _
    $region3: #{_lambda_.1} parent=1 // loop_header
      %s29 = sphi 0, %s33
      %p30 = scmp.ge.s32.totalorder %s29, 4
      %s37 = sphi 0, %s37
      %s39 = sphi 0, %s37
      %s40 = sphi 0, %s39
      %s54 = sphi 0, %s40
      %s58 = sphi 0, %s58
      %s60 = sphi 0, %s58
      %s61 = sphi 0, %s60
      %s75 = sphi 0, %s61
      %s81 = sphi 0, %s83
      %s84 = sphi 0, %s81
      %s85 = sphi 0, %s84
      %s101 = sphi 0, %s85
      %s107 = sphi 0, %s109
      %s110 = sphi 0, %s107
      %s111 = sphi 0, %s110
      %s127 = sphi 0, %s111
      %s133 = sphi 0, %s135
      %s136 = sphi 0, %s133
      %s137 = sphi 0, %s136
      %s153 = sphi 0, %s137
      %s159 = sphi 0, %s161
      %s162 = sphi 0, %s159
      %s163 = sphi 0, %s162
      %s179 = sphi 0, %s163
      %s185 = sphi 0, %s187
      %s188 = sphi 0, %s185
      %s189 = sphi 0, %s188
      %s205 = sphi 0, %s189
      %s211 = sphi 0, %s213
      %s214 = sphi 0, %s211
      %s215 = sphi 0, %s214
      %s231 = sphi 0, %s215
      %s237 = sphi 0, %s239
      %s240 = sphi 0, %s237
      %s241 = sphi 0, %s240
      %s257 = sphi 0, %s241
    $region4: #{_lambda_.1} parent=1 // loop_header_branch
      %32 = sbr.rel (%p30) target = $region8
    $region5: #{_lambda_.1} parent=1 // loop_body
      %s34 = ssub.s32 %s29, 1
      %s35 = ssub.s32 %s29, 2
      %s36 = sadd.s32 %s29, 1
      %s38 = sadd.s32 %s37, 1
      %p41 = scmp.eq.s32.totalorder %s29, 1
      %p42 = scmp.ne.s32.totalorder %s37, %s39
      %p43 = scmp.eq.s32.totalorder %s29, 0
      %p44 = por %p42, %p43
      %p45 = scmp.ne.s32.totalorder %s37, %s39
      %p46 = scmp.eq.s32.totalorder %s34, 1
      %p47 = por %p45, %p46
      %p48 = scmp.ne.s32.totalorder %s39, %s40
      %p49 = scmp.eq.s32.totalorder %s34, 0
      %p50 = por %p48, %p49
      %p51 = scmp.ne.s32.totalorder %s39, %s40
      %p52 = scmp.eq.s32.totalorder %s35, 1
      %p53 = por %p51, %p52
      %p55 = scmp.ne.s32.totalorder %s40, %s54
      %p56 = scmp.eq.s32.totalorder %s35, 0
      %p57 = por %p55, %p56
      %s59 = sadd.s32 %s58, 1
      %p62 = scmp.eq.s32.totalorder %s29, 1
      %p63 = scmp.ne.s32.totalorder %s58, %s60
      %p64 = scmp.eq.s32.totalorder %s29, 0
      %p65 = por %p63, %p64
      %p66 = scmp.ne.s32.totalorder %s58, %s60
      %p67 = scmp.eq.s32.totalorder %s34, 1
      %p68 = por %p66, %p67
      %p69 = scmp.ne.s32.totalorder %s60, %s61
      %p70 = scmp.eq.s32.totalorder %s34, 0
      %p71 = por %p69, %p70
      %p72 = scmp.ne.s32.totalorder %s60, %s61
      %p73 = scmp.eq.s32.totalorder %s35, 1
      %p74 = por %p72, %p73
      %p76 = scmp.ne.s32.totalorder %s61, %s75
      %p77 = scmp.eq.s32.totalorder %s35, 0
      %p78 = por %p76, %p77
      %s79 = ssub.s32 %s29, %s36
      %p80 = scmp.eq.s32.totalorder %s79, 0
      %s82 = sadd.s32 %s81, 1
      %s83 = scalar_select %p80, %s81, %s82
      %p86 = pneg %p80
      %p87 = scmp.eq.s32.totalorder %s29, 1
      %p88 = por %p86, %p87
      %p89 = scmp.ne.s32.totalorder %s81, %s84
      %p90 = scmp.eq.s32.totalorder %s29, 0
      %p91 = por %p89, %p90
      %p92 = scmp.ne.s32.totalorder %s81, %s84
      %p93 = scmp.eq.s32.totalorder %s34, 1
      %p94 = por %p92, %p93
      %p95 = scmp.ne.s32.totalorder %s84, %s85
      %p96 = scmp.eq.s32.totalorder %s34, 0
      %p97 = por %p95, %p96
      %p98 = scmp.ne.s32.totalorder %s84, %s85
      %p99 = scmp.eq.s32.totalorder %s35, 1
      %p100 = por %p98, %p99
      %p102 = scmp.ne.s32.totalorder %s85, %s101
      %p103 = scmp.eq.s32.totalorder %s35, 0
      %p104 = por %p102, %p103
      %s105 = ssub.s32 %s29, %s36
      %p106 = scmp.eq.s32.totalorder %s105, 0
      %s108 = sadd.s32 %s107, 1
      %s109 = scalar_select %p106, %s107, %s108
      %p112 = pneg %p106
      %p113 = scmp.eq.s32.totalorder %s29, 1
      %p114 = por %p112, %p113
      %p115 = scmp.ne.s32.totalorder %s107, %s110
      %p116 = scmp.eq.s32.totalorder %s29, 0
      %p117 = por %p115, %p116
      %p118 = scmp.ne.s32.totalorder %s107, %s110
      %p119 = scmp.eq.s32.totalorder %s34, 1
      %p120 = por %p118, %p119
      %p121 = scmp.ne.s32.totalorder %s110, %s111
      %p122 = scmp.eq.s32.totalorder %s34, 0
      %p123 = por %p121, %p122
      %p124 = scmp.ne.s32.totalorder %s110, %s111
      %p125 = scmp.eq.s32.totalorder %s35, 1
      %p126 = por %p124, %p125
      %p128 = scmp.ne.s32.totalorder %s111, %s127
      %p129 = scmp.eq.s32.totalorder %s35, 0
      %p130 = por %p128, %p129
      %s131 = ssub.s32 %s29, %s36
      %p132 = scmp.eq.s32.totalorder %s131, 0
      %s134 = sadd.s32 %s133, 1
      %s135 = scalar_select %p132, %s133, %s134
      %p138 = pneg %p132
      %p139 = scmp.eq.s32.totalorder %s29, 1
      %p140 = por %p138, %p139
      %p141 = scmp.ne.s32.totalorder %s133, %s136
      %p142 = scmp.eq.s32.totalorder %s29, 0
      %p143 = por %p141, %p142
      %p144 = scmp.ne.s32.totalorder %s133, %s136
      %p145 = scmp.eq.s32.totalorder %s34, 1
      %p146 = por %p144, %p145
      %p147 = scmp.ne.s32.totalorder %s136, %s137
      %p148 = scmp.eq.s32.totalorder %s34, 0
      %p149 = por %p147, %p148
      %p150 = scmp.ne.s32.totalorder %s136, %s137
      %p151 = scmp.eq.s32.totalorder %s35, 1
      %p152 = por %p150, %p151
      %p154 = scmp.ne.s32.totalorder %s137, %s153
      %p155 = scmp.eq.s32.totalorder %s35, 0
      %p156 = por %p154, %p155
      %s157 = ssub.s32 %s29, %s36
      %p158 = scmp.eq.s32.totalorder %s157, 0
      %s160 = sadd.s32 %s159, 1
      %s161 = scalar_select %p158, %s159, %s160
      %p164 = pneg %p158
      %p165 = scmp.eq.s32.totalorder %s29, 1
      %p166 = por %p164, %p165
      %p167 = scmp.ne.s32.totalorder %s159, %s162
      %p168 = scmp.eq.s32.totalorder %s29, 0
      %p169 = por %p167, %p168
      %p170 = scmp.ne.s32.totalorder %s159, %s162
      %p171 = scmp.eq.s32.totalorder %s34, 1
      %p172 = por %p170, %p171
      %p173 = scmp.ne.s32.totalorder %s162, %s163
      %p174 = scmp.eq.s32.totalorder %s34, 0
      %p175 = por %p173, %p174
      %p176 = scmp.ne.s32.totalorder %s162, %s163
      %p177 = scmp.eq.s32.totalorder %s35, 1
      %p178 = por %p176, %p177
      %p180 = scmp.ne.s32.totalorder %s163, %s179
      %p181 = scmp.eq.s32.totalorder %s35, 0
      %p182 = por %p180, %p181
      %s183 = ssub.s32 %s29, %s36
      %p184 = scmp.eq.s32.totalorder %s183, 0
      %s186 = sadd.s32 %s185, 1
      %s187 = scalar_select %p184, %s185, %s186
      %p190 = pneg %p184
      %p191 = scmp.eq.s32.totalorder %s29, 1
      %p192 = por %p190, %p191
      %p193 = scmp.ne.s32.totalorder %s185, %s188
      %p194 = scmp.eq.s32.totalorder %s29, 0
      %p195 = por %p193, %p194
      %p196 = scmp.ne.s32.totalorder %s185, %s188
      %p197 = scmp.eq.s32.totalorder %s34, 1
      %p198 = por %p196, %p197
      %p199 = scmp.ne.s32.totalorder %s188, %s189
      %p200 = scmp.eq.s32.totalorder %s34, 0
      %p201 = por %p199, %p200
      %p202 = scmp.ne.s32.totalorder %s188, %s189
      %p203 = scmp.eq.s32.totalorder %s35, 1
      %p204 = por %p202, %p203
      %p206 = scmp.ne.s32.totalorder %s189, %s205
      %p207 = scmp.eq.s32.totalorder %s35, 0
      %p208 = por %p206, %p207
      %s209 = ssub.s32 %s29, %s36
      %p210 = scmp.eq.s32.totalorder %s209, 0
      %s212 = sadd.s32 %s211, 1
      %s213 = scalar_select %p210, %s211, %s212
      %p216 = pneg %p210
      %p217 = scmp.eq.s32.totalorder %s29, 1
      %p218 = por %p216, %p217
      %p219 = scmp.ne.s32.totalorder %s211, %s214
      %p220 = scmp.eq.s32.totalorder %s29, 0
      %p221 = por %p219, %p220
      %p222 = scmp.ne.s32.totalorder %s211, %s214
      %p223 = scmp.eq.s32.totalorder %s34, 1
      %p224 = por %p222, %p223
      %p225 = scmp.ne.s32.totalorder %s214, %s215
      %p226 = scmp.eq.s32.totalorder %s34, 0
      %p227 = por %p225, %p226
      %p228 = scmp.ne.s32.totalorder %s214, %s215
      %p229 = scmp.eq.s32.totalorder %s35, 1
      %p230 = por %p228, %p229
      %p232 = scmp.ne.s32.totalorder %s215, %s231
      %p233 = scmp.eq.s32.totalorder %s35, 0
      %p234 = por %p232, %p233
      %s235 = ssub.s32 %s29, %s36
      %p236 = scmp.eq.s32.totalorder %s235, 0
      %s238 = sadd.s32 %s237, 1
      %s239 = scalar_select %p236, %s237, %s238
      %p242 = pneg %p236
      %p243 = scmp.eq.s32.totalorder %s29, 1
      %p244 = por %p242, %p243
      %p245 = scmp.ne.s32.totalorder %s237, %s240
      %p246 = scmp.eq.s32.totalorder %s29, 0
      %p247 = por %p245, %p246
      %p248 = scmp.ne.s32.totalorder %s237, %s240
      %p249 = scmp.eq.s32.totalorder %s34, 1
      %p250 = por %p248, %p249
      %p251 = scmp.ne.s32.totalorder %s240, %s241
      %p252 = scmp.eq.s32.totalorder %s34, 0
      %p253 = por %p251, %p252
      %p254 = scmp.ne.s32.totalorder %s240, %s241
      %p255 = scmp.eq.s32.totalorder %s35, 1
      %p256 = por %p254, %p255
      %p258 = scmp.ne.s32.totalorder %s241, %s257
      %p259 = scmp.eq.s32.totalorder %s35, 0
      %p260 = por %p258, %p259
      %p261 = scmp.le.s32.totalorder 1, %s29
      %p262 = scmp.lt.s32.totalorder %s29, 3
      %p263 = pnand %p261, %p262
      %p264 = pneg %p263
      // Predicated region
      $region9: #{_lambda_.1} parent=5 // pred_check
        _
      $region10: #{_lambda_.1} parent=5 // pred_check_branch
        %266 = sbr.rel (%p263) target = $region12
      $region11: #{_lambda_.1} parent=5 // pred_region
        %s267 = ssub.s32 %s29, 1
        // Predicated region
        $region13: #{_lambda_.1} parent=11 // pred_check
          %p268 = pneg %p50
        $region14: #{_lambda_.1} parent=11 // pred_check_branch
          %270 = sbr.rel (%p268) target = $region16
        $region15: #{_lambda_.1} parent=11 // pred_region
          %s272 = ssub.s32 16, 16
          %273 = vsyncadd [#allocation5], %s272
          %s275 = sshll.u32 %s0, 4
          %s276 = int_to_ptr.vmem [resolvable:$true] %s275
          %278 = dma.vmem_to_smem %s276, 16, [#allocation2], [#allocation5]
        $region16: #{_lambda_.1} parent=11 // pred_fallthru
          _
        // Predicated region
        $region17: #{_lambda_.1} parent=11 // pred_check
          %p279 = pneg %p71
        $region18: #{_lambda_.1} parent=11 // pred_check_branch
          %281 = sbr.rel (%p279) target = $region20
        $region19: #{_lambda_.1} parent=11 // pred_region
          %s283 = ssub.s32 48, 48
          %284 = vsyncadd [#allocation7], %s283
          %s286 = sshll.u32 %s1, 4
          %s287 = int_to_ptr.vmem [resolvable:$true] %s286
          %289 = dma.vmem_to_smem %s287, 48, [#allocation6], [#allocation7]
        $region20: #{_lambda_.1} parent=11 // pred_fallthru
          _
      $region12: #{_lambda_.1} parent=5 // pred_fallthru
        _
      %p290 = scmp.lt.s32.totalorder %s29, 2
      // Predicated region
      $region21: #{_lambda_.1} parent=5 // pred_check
        %p291 = pneg %p290
      $region22: #{_lambda_.1} parent=5 // pred_check_branch
        %293 = sbr.rel (%p291) target = $region24
      $region23: #{_lambda_.1} parent=5 // pred_region
        // Predicated region
        $region25: #{_lambda_.1} parent=23 // pred_check
          %p294 = pneg %p91
        $region26: #{_lambda_.1} parent=23 // pred_check_branch
          %296 = sbr.rel (%p294) target = $region28
        $region27: #{_lambda_.1} parent=23 // pred_region
          %s297 = sand.u32 %s81, 1
          %s298 = scalar_lea.sflag [#allocation3], %s297
          %s299 = sand.u32 %s81, 1
          %s300 = smul.addr %s299, 48
          %s301 = scalar_lea.vmem [#allocation8], %s300
          %s303 = ssub.s32 768, 768
          %304 = vsyncadd %s298, %s303
          %s305 = smul.addr %s29, 6
          %s306 = smul.addr %s305, 128
          %s307 = scalar_lea.hbm %s2, %s306
          %s308 = sshll.u32 %s301, 4
          %s309 = int_to_ptr.vmem [resolvable:$true] %s308
          %314 = dma.hbm_to_vmem [thread:$0]  %s307, 768, %s309, %s298, 128, 128, 8
        $region28: #{_lambda_.1} parent=23 // pred_fallthru
          _
        // Predicated region
        $region29: #{_lambda_.1} parent=23 // pred_check
          %p315 = pneg %p117
        $region30: #{_lambda_.1} parent=23 // pred_check_branch
          %317 = sbr.rel (%p315) target = $region32
        $region31: #{_lambda_.1} parent=23 // pred_region
          %s318 = sand.u32 %s107, 1
          %s319 = scalar_lea.sflag [#allocation10], %s318
          %s320 = sand.u32 %s107, 1
          %s321 = smul.addr %s320, 48
          %s322 = scalar_lea.vmem [#allocation9], %s321
          %s324 = ssub.s32 768, 768
          %325 = vsyncadd %s319, %s324
          %s326 = smul.addr %s29, 6
          %s327 = smul.addr %s326, 128
          %s328 = scalar_lea.hbm %s3, %s327
          %s329 = sshll.u32 %s322, 4
          %s330 = int_to_ptr.vmem [resolvable:$true] %s329
          %335 = dma.hbm_to_vmem [thread:$0]  %s328, 768, %s330, %s319, 128, 128, 8
        $region32: #{_lambda_.1} parent=23 // pred_fallthru
          _
      $region24: #{_lambda_.1} parent=5 // pred_fallthru
        _
      %p336 = scmp.le.s32.totalorder 1, %s29
      %p337 = scmp.lt.s32.totalorder %s29, 3
      %p338 = pnand %p336, %p337
      %p339 = pneg %p338
      // Predicated region
      $region33: #{_lambda_.1} parent=5 // pred_check
        _
      $region34: #{_lambda_.1} parent=5 // pred_check_branch
        %341 = sbr.rel (%p338) target = $region36
      $region35: #{_lambda_.1} parent=5 // pred_region
        %s342 = ssub.s32 %s29, 1
        // Predicated region
        $region37: #{_lambda_.1} parent=35 // pred_check
          %p343 = pneg %p50
        $region38: #{_lambda_.1} parent=35 // pred_check_branch
          %345 = sbr.rel (%p343) target = $region40
        $region39: #{_lambda_.1} parent=35 // pred_region
          %346 = dma.done [#allocation5], 16
        $region40: #{_lambda_.1} parent=35 // pred_fallthru
          _
        // Predicated region
        $region41: #{_lambda_.1} parent=35 // pred_check
          %p347 = pneg %p71
        $region42: #{_lambda_.1} parent=35 // pred_check_branch
          %349 = sbr.rel (%p347) target = $region44
        $region43: #{_lambda_.1} parent=35 // pred_region
          %350 = dma.done [#allocation7], 48
        $region44: #{_lambda_.1} parent=35 // pred_fallthru
          _
        %s351 = sand.u32 %s84, 1
        %s352 = scalar_lea.sflag [#allocation3], %s351
        %s353 = sand.u32 %s84, 1
        %s354 = smul.addr %s353, 48
        %s355 = scalar_lea.vmem [#allocation8], %s354
        // Predicated region
        $region45: #{_lambda_.1} parent=35 // pred_check
          %p356 = pneg %p97
        $region46: #{_lambda_.1} parent=35 // pred_check_branch
          %358 = sbr.rel (%p356) target = $region48
        $region47: #{_lambda_.1} parent=35 // pred_region
          %359 = dma.done %s352, 768
        $region48: #{_lambda_.1} parent=35 // pred_fallthru
          _
        %s360 = sand.u32 %s110, 1
        %s361 = scalar_lea.sflag [#allocation10], %s360
        %s362 = sand.u32 %s110, 1
        %s363 = smul.addr %s362, 48
        %s364 = scalar_lea.vmem [#allocation9], %s363
        // Predicated region
        $region49: #{_lambda_.1} parent=35 // pred_check
          %p365 = pneg %p123
        $region50: #{_lambda_.1} parent=35 // pred_check_branch
          %367 = sbr.rel (%p365) target = $region52
        $region51: #{_lambda_.1} parent=35 // pred_region
          %368 = dma.done %s361, 768
        $region52: #{_lambda_.1} parent=35 // pred_fallthru
          _
        %369 = sfence
        %p370 = pneg %p50
        %p371 = pneg %p47
        %p372 = pneg %p71
        %p373 = pneg %p68
        %s374 = sand.u32 %s84, 1
        %s375 = scalar_lea.sflag [#allocation3], %s374
        %s376 = sand.u32 %s84, 1
        %s377 = smul.addr %s376, 48
        %s378 = scalar_lea.vmem [#allocation8], %s377
        %p379 = pneg %p97
        %p380 = pneg %p94
        %s381 = sand.u32 %s110, 1
        %s382 = scalar_lea.sflag [#allocation10], %s381
        %s383 = sand.u32 %s110, 1
        %s384 = smul.addr %s383, 48
        %s385 = scalar_lea.vmem [#allocation9], %s384
        %p386 = pneg %p123
        %p387 = pneg %p120
        %p388 = pneg %p149
        %p389 = pneg %p146
        %s390 = sand.u32 %s136, 1
        %s391 = scalar_lea.sflag [#allocation4], %s390
        %s392 = sand.u32 %s136, 1
        %s393 = smul.addr %s392, 48
        %s394 = scalar_lea.vmem [#allocation11], %s393
        %p395 = pneg %p175
        %p396 = pneg %p172
        %p397 = scmp.lt.s32.totalorder %s34, 1
        %s398 = scalar_select %p397, %s34, 1
        %s399 = smul.addr %s398, 6
        %s400 = smul.addr %s399, 8
        %s401 = scalar_lea.vmem %s5, %s400
        %p402 = pneg %p201
        %p403 = pneg %p198
        %s404 = sand.u32 %s34, 1
        %s405 = scalar_lea.sflag [#allocation13], %s404
        %s406 = sand.u32 %s188, 1
        %s407 = smul.addr %s406, 48
        %s408 = scalar_lea.vmem [#allocation12], %s407
        %p409 = pneg %p227
        %p410 = pneg %p224
        %s411 = sand.u32 %s34, 1
        %s412 = scalar_lea.sflag [#allocation13], %s411
        %s413 = sand.u32 %s214, 1
        %s414 = smul.addr %s413, 16
        %s415 = scalar_lea.vmem [#allocation14], %s414
        %p416 = pneg %p253
        %p417 = pneg %p250
        %p418 = scmp.lt.s32.totalorder %s34, 1
        %s419 = scalar_select %p418, %s34, 1
        %s420 = smul.addr %s419, 2
        %s421 = smul.addr %s420, 8
        %s422 = scalar_lea.vmem %s8, %s421
        %p423 = scmp.lt.s32.totalorder %s34, 1
        %s424 = scalar_select %p423, %s34, 1
        %s425 = smul.addr %s424, 6
        %s426 = smul.addr %s425, 8
        %s427 = scalar_lea.vmem %s5, %s426
        %p428 = scmp.lt.s32.totalorder %s34, 1
        %s429 = scalar_select %p428, %s34, 1
        %s430 = smul.addr %s429, 2
        %s431 = smul.addr %s430, 8
        %s432 = scalar_lea.vmem %s8, %s431
        %v433 = vlaneseq
        %v434 = vshrl.u32 %v433, 7
        %v435 = vadd.s32 %v434, 8
        %v436 = vlaneseq
        %v437 = vand.u32 %v436, 127
        %vm438 = vcmp.lt.s32.totalorder %v437, 15
        %vm439 = vcmp.ge.s32.totalorder %v437, 1
        %vm440 = vcmp.lt.s32.totalorder %v434, 15
        %vm441 = vcmp.lt.s32.totalorder %v435, 15
        %vm442 = vcmp.ge.s32.totalorder %v434, 1
        %vm443 = vcmp.ge.s32.totalorder %v435, 1
        %v444 = vld [vmem:[%s355] sm:$0xff]
        %v445 = vld [vmem:[%s355 + $0x8] sm:$0xff]
        %s446 = scalar_lea.vmem %s355, 16 [#allocation8]
        %v447 = vld [vmem:[%s446] sm:$0xff]
        %v448 = vld [vmem:[%s446 + $0x8] sm:$0xff]
        %s449 = scalar_lea.vmem %s355, 32 [#allocation8]
        %v450 = vld [vmem:[%s449] sm:$0xff]
        %v451 = vld [vmem:[%s449 + $0x8] sm:$0xff]
        %v452 = vld [vmem:[%s364] sm:$0xff]
        %v453 = vld [vmem:[%s364 + $0x8] sm:$0xff]
        %s454 = scalar_lea.vmem %s364, 16 [#allocation9]
        %v455 = vld [vmem:[%s454] sm:$0xff]
        %v456 = vld [vmem:[%s454 + $0x8] sm:$0xff]
        %s457 = scalar_lea.vmem %s364, 32 [#allocation9]
        %v458 = vld [vmem:[%s457] sm:$0xff]
        %v459 = vld [vmem:[%s457 + $0x8] sm:$0xff]
        %s460 = sld [smem:[#allocation2 + $0x36]]
        %v461 = vstv %s460
        %v462 = vadd.f32 %v461, 0.0
        %vm463 = vcmask 1047680
        %464 = vrot.lane.b32.xlu0 %v444, 16
        %v465 = vpop.permute.xlu0 %464
        %v466 = vsel %vm463, %v465, %v444
        %467 = vrot.lane.b32.xlu0 %v445, 16
        %v468 = vpop.permute.xlu0 %467
        %v469 = vsel %vm463, %v468, %v445
        %470 = vrot.lane.b32.xlu0 %v466, 16
        %v471 = vpop.permute.xlu0 %470
        %472 = vrot.lane.b32.xlu0 %v469, 16
        %v473 = vpop.permute.xlu0 %472
        %v474 = vsel %vm463, %v471, %v444
        %v475 = vsel %vm463, %v473, %v445
        %478 = vrot.lane.b32.xlu0 %v474, 113
        %v479 = vpop.permute.xlu0 %478
        %480 = vrot.lane.b32.xlu0 %v475, 113
        %v481 = vpop.permute.xlu0 %480
        %v484 = vsel %vm439, %v479, 0.0
        %v485 = vsel %vm439, %v481, 0.0
        %486 = vrot.lane.b32.xlu0 %v474, 127
        %v487 = vpop.permute.xlu0 %486
        %488 = vrot.lane.b32.xlu0 %v475, 127
        %v489 = vpop.permute.xlu0 %488
        %v492 = vsel %vm438, %v487, 0.0
        %v493 = vsel %vm438, %v489, 0.0
        %v494 = vrot.slane %v484, 7
        %v495 = vrot.slane %v485, 7
        %vm496 = vcmp.lt.s32.totalorder %v434, 1
        %v497 = vsel %vm496, %v494, %v495
        %v498 = vsel %vm496, %v495, %v494
        %v499 = vsel %vm442, %v498, 0.0
        %v500 = vsel %vm443, %v497, 0.0
        %s501 = sld [smem:[#allocation2]]
        %v502 = vstv %s501
        %v503 = vmul.f32 %v502, %v499
        %v504 = vmul.f32 %v502, %v500
        %v505 = vadd.f32 %v462, %v503
        %v506 = vadd.f32 %v462, %v504
        %v507 = vrot.slane %v444, 7
        %v508 = vrot.slane %v445, 7
        %v509 = vsel %vm496, %v507, %v508
        %v510 = vsel %vm496, %v508, %v507
        %v511 = vsel %vm442, %v510, 0.0
        %v512 = vsel %vm443, %v509, 0.0
        %s513 = sld [smem:[#allocation2 + $0x1]]
        %v514 = vstv %s513
        %v515 = vmul.f32 %v514, %v511
        %v516 = vmul.f32 %v514, %v512
        %v517 = vadd.f32 %v505, %v515
        %v518 = vadd.f32 %v506, %v516
        %v519 = vrot.slane %v492, 7
        %v520 = vrot.slane %v493, 7
        %v521 = vsel %vm496, %v519, %v520
        %v522 = vsel %vm496, %v520, %v519
        %v523 = vsel %vm442, %v522, 0.0
        %v524 = vsel %vm443, %v521, 0.0
        %s525 = sld [smem:[#allocation2 + $0x2]]
        %v526 = vstv %s525
        %v527 = vmul.f32 %v526, %v523
        %v528 = vmul.f32 %v526, %v524
        %v529 = vadd.f32 %v517, %v527
        %v530 = vadd.f32 %v518, %v528
        %s531 = sld [smem:[#allocation2 + $0x3]]
        %v532 = vstv %s531
        %v533 = vmul.f32 %v532, %v484
        %v534 = vmul.f32 %v532, %v485
        %v535 = vadd.f32 %v529, %v533
        %v536 = vadd.f32 %v530, %v534
        %s537 = sld [smem:[#allocation2 + $0x4]]
        %v538 = vstv %s537
        %v539 = vmul.f32 %v538, %v444
        %v540 = vmul.f32 %v538, %v445
        %v541 = vadd.f32 %v535, %v539
        %v542 = vadd.f32 %v536, %v540
        %s543 = sld [smem:[#allocation2 + $0x5]]
        %v544 = vstv %s543
        %v545 = vmul.f32 %v544, %v492
        %v546 = vmul.f32 %v544, %v493
        %v547 = vadd.f32 %v541, %v545
        %v548 = vadd.f32 %v542, %v546
        %v549 = vrot.slane %v484, 1
        %v550 = vrot.slane %v485, 1
        %vm551 = vcmp.lt.s32.totalorder %v434, 7
        %v552 = vsel %vm551, %v549, %v550
        %v553 = vsel %vm551, %v550, %v549
        %v554 = vsel %vm440, %v552, 0.0
        %v555 = vsel %vm441, %v553, 0.0
        %s556 = sld [smem:[#allocation2 + $0x6]]
        %v557 = vstv %s556
        %v558 = vmul.f32 %v557, %v554
        %v559 = vmul.f32 %v557, %v555
        %v560 = vadd.f32 %v547, %v558
        %v561 = vadd.f32 %v548, %v559
        %v562 = vrot.slane %v444, 1
        %v563 = vrot.slane %v445, 1
        %v564 = vsel %vm551, %v562, %v563
        %v565 = vsel %vm551, %v563, %v562
        %v566 = vsel %vm440, %v564, 0.0
        %v567 = vsel %vm441, %v565, 0.0
        %s568 = sld [smem:[#allocation2 + $0x7]]
        %v569 = vstv %s568
        %v570 = vmul.f32 %v569, %v566
        %v571 = vmul.f32 %v569, %v567
        %v572 = vadd.f32 %v560, %v570
        %v573 = vadd.f32 %v561, %v571
        %v574 = vrot.slane %v492, 1
        %v575 = vrot.slane %v493, 1
        %v576 = vsel %vm551, %v574, %v575
        %v577 = vsel %vm551, %v575, %v574
        %v578 = vsel %vm440, %v576, 0.0
        %v579 = vsel %vm441, %v577, 0.0
        %s580 = sld [smem:[#allocation2 + $0x8]]
        %v581 = vstv %s580
        %v582 = vmul.f32 %v581, %v578
        %v583 = vmul.f32 %v581, %v579
        %v584 = vadd.f32 %v572, %v582
        %v585 = vadd.f32 %v573, %v583
        %586 = vrot.lane.b32.xlu0 %v447, 16
        %v587 = vpop.permute.xlu0 %586
        %v588 = vsel %vm463, %v587, %v447
        %589 = vrot.lane.b32.xlu0 %v448, 16
        %v590 = vpop.permute.xlu0 %589
        %v591 = vsel %vm463, %v590, %v448
        %592 = vrot.lane.b32.xlu0 %v588, 16
        %v593 = vpop.permute.xlu0 %592
        %594 = vrot.lane.b32.xlu0 %v591, 16
        %v595 = vpop.permute.xlu0 %594
        %v596 = vsel %vm463, %v593, %v447
        %v597 = vsel %vm463, %v595, %v448
        %600 = vrot.lane.b32.xlu0 %v596, 113
        %v601 = vpop.permute.xlu0 %600
        %602 = vrot.lane.b32.xlu0 %v597, 113
        %v603 = vpop.permute.xlu0 %602
        %v606 = vsel %vm439, %v601, 0.0
        %v607 = vsel %vm439, %v603, 0.0
        %608 = vrot.lane.b32.xlu0 %v596, 127
        %v609 = vpop.permute.xlu0 %608
        %610 = vrot.lane.b32.xlu0 %v597, 127
        %v611 = vpop.permute.xlu0 %610
        %v614 = vsel %vm438, %v609, 0.0
        %v615 = vsel %vm438, %v611, 0.0
        %v616 = vrot.slane %v606, 7
        %v617 = vrot.slane %v607, 7
        %v618 = vsel %vm496, %v616, %v617
        %v619 = vsel %vm496, %v617, %v616
        %v620 = vsel %vm442, %v619, 0.0
        %v621 = vsel %vm443, %v618, 0.0
        %s622 = sld [smem:[#allocation2 + $0x9]]
        %v623 = vstv %s622
        %v624 = vmul.f32 %v623, %v620
        %v625 = vmul.f32 %v623, %v621
        %v626 = vadd.f32 %v584, %v624
        %v627 = vadd.f32 %v585, %v625
        %v628 = vrot.slane %v447, 7
        %v629 = vrot.slane %v448, 7
        %v630 = vsel %vm496, %v628, %v629
        %v631 = vsel %vm496, %v629, %v628
        %v632 = vsel %vm442, %v631, 0.0
        %v633 = vsel %vm443, %v630, 0.0
        %s634 = sld [smem:[#allocation2 + $0xa]]
        %v635 = vstv %s634
        %v636 = vmul.f32 %v635, %v632
        %v637 = vmul.f32 %v635, %v633
        %v638 = vadd.f32 %v626, %v636
        %v639 = vadd.f32 %v627, %v637
        %v640 = vrot.slane %v614, 7
        %v641 = vrot.slane %v615, 7
        %v642 = vsel %vm496, %v640, %v641
        %v643 = vsel %vm496, %v641, %v640
        %v644 = vsel %vm442, %v643, 0.0
        %v645 = vsel %vm443, %v642, 0.0
        %s646 = sld [smem:[#allocation2 + $0xb]]
        %v647 = vstv %s646
        %v648 = vmul.f32 %v647, %v644
        %v649 = vmul.f32 %v647, %v645
        %v650 = vadd.f32 %v638, %v648
        %v651 = vadd.f32 %v639, %v649
        %s652 = sld [smem:[#allocation2 + $0xc]]
        %v653 = vstv %s652
        %v654 = vmul.f32 %v653, %v606
        %v655 = vmul.f32 %v653, %v607
        %v656 = vadd.f32 %v650, %v654
        %v657 = vadd.f32 %v651, %v655
        %s658 = sld [smem:[#allocation2 + $0xd]]
        %v659 = vstv %s658
        %v660 = vmul.f32 %v659, %v447
        %v661 = vmul.f32 %v659, %v448
        %v662 = vadd.f32 %v656, %v660
        %v663 = vadd.f32 %v657, %v661
        %s664 = sld [smem:[#allocation2 + $0xe]]
        %v665 = vstv %s664
        %v666 = vmul.f32 %v665, %v614
        %v667 = vmul.f32 %v665, %v615
        %v668 = vadd.f32 %v662, %v666
        %v669 = vadd.f32 %v663, %v667
        %v670 = vrot.slane %v606, 1
        %v671 = vrot.slane %v607, 1
        %v672 = vsel %vm551, %v670, %v671
        %v673 = vsel %vm551, %v671, %v670
        %v674 = vsel %vm440, %v672, 0.0
        %v675 = vsel %vm441, %v673, 0.0
        %s676 = sld [smem:[#allocation2 + $0xf]]
        %v677 = vstv %s676
        %v678 = vmul.f32 %v677, %v674
        %v679 = vmul.f32 %v677, %v675
        %v680 = vadd.f32 %v668, %v678
        %v681 = vadd.f32 %v669, %v679
        %v682 = vrot.slane %v447, 1
        %v683 = vrot.slane %v448, 1
        %v684 = vsel %vm551, %v682, %v683
        %v685 = vsel %vm551, %v683, %v682
        %v686 = vsel %vm440, %v684, 0.0
        %v687 = vsel %vm441, %v685, 0.0
        %s688 = sld [smem:[#allocation2 + $0x10]]
        %v689 = vstv %s688
        %v690 = vmul.f32 %v689, %v686
        %v691 = vmul.f32 %v689, %v687
        %v692 = vadd.f32 %v680, %v690
        %v693 = vadd.f32 %v681, %v691
        %v694 = vrot.slane %v614, 1
        %v695 = vrot.slane %v615, 1
        %v696 = vsel %vm551, %v694, %v695
        %v697 = vsel %vm551, %v695, %v694
        %v698 = vsel %vm440, %v696, 0.0
        %v699 = vsel %vm441, %v697, 0.0
        %s700 = sld [smem:[#allocation2 + $0x11]]
        %v701 = vstv %s700
        %v702 = vmul.f32 %v701, %v698
        %v703 = vmul.f32 %v701, %v699
        %v704 = vadd.f32 %v692, %v702
        %v705 = vadd.f32 %v693, %v703
        %706 = vrot.lane.b32.xlu0 %v450, 16
        %v707 = vpop.permute.xlu0 %706
        %v708 = vsel %vm463, %v707, %v450
        %709 = vrot.lane.b32.xlu0 %v451, 16
        %v710 = vpop.permute.xlu0 %709
        %v711 = vsel %vm463, %v710, %v451
        %712 = vrot.lane.b32.xlu0 %v708, 16
        %v713 = vpop.permute.xlu0 %712
        %714 = vrot.lane.b32.xlu0 %v711, 16
        %v715 = vpop.permute.xlu0 %714
        %v716 = vsel %vm463, %v713, %v450
        %v717 = vsel %vm463, %v715, %v451
        %720 = vrot.lane.b32.xlu0 %v716, 113
        %v721 = vpop.permute.xlu0 %720
        %722 = vrot.lane.b32.xlu0 %v717, 113
        %v723 = vpop.permute.xlu0 %722
        %v726 = vsel %vm439, %v721, 0.0
        %v727 = vsel %vm439, %v723, 0.0
        %728 = vrot.lane.b32.xlu0 %v716, 127
        %v729 = vpop.permute.xlu0 %728
        %730 = vrot.lane.b32.xlu0 %v717, 127
        %v731 = vpop.permute.xlu0 %730
        %v734 = vsel %vm438, %v729, 0.0
        %v735 = vsel %vm438, %v731, 0.0
        %v736 = vrot.slane %v726, 7
        %v737 = vrot.slane %v727, 7
        %v738 = vsel %vm496, %v736, %v737
        %v739 = vsel %vm496, %v737, %v736
        %v740 = vsel %vm442, %v739, 0.0
        %v741 = vsel %vm443, %v738, 0.0
        %s742 = sld [smem:[#allocation2 + $0x12]]
        %v743 = vstv %s742
        %v744 = vmul.f32 %v743, %v740
        %v745 = vmul.f32 %v743, %v741
        %v746 = vadd.f32 %v704, %v744
        %v747 = vadd.f32 %v705, %v745
        %v748 = vrot.slane %v450, 7
        %v749 = vrot.slane %v451, 7
        %v750 = vsel %vm496, %v748, %v749
        %v751 = vsel %vm496, %v749, %v748
        %v752 = vsel %vm442, %v751, 0.0
        %v753 = vsel %vm443, %v750, 0.0
        %s754 = sld [smem:[#allocation2 + $0x13]]
        %v755 = vstv %s754
        %v756 = vmul.f32 %v755, %v752
        %v757 = vmul.f32 %v755, %v753
        %v758 = vadd.f32 %v746, %v756
        %v759 = vadd.f32 %v747, %v757
        %v760 = vrot.slane %v734, 7
        %v761 = vrot.slane %v735, 7
        %v762 = vsel %vm496, %v760, %v761
        %v763 = vsel %vm496, %v761, %v760
        %v764 = vsel %vm442, %v763, 0.0
        %v765 = vsel %vm443, %v762, 0.0
        %s766 = sld [smem:[#allocation2 + $0x14]]
        %v767 = vstv %s766
        %v768 = vmul.f32 %v767, %v764
        %v769 = vmul.f32 %v767, %v765
        %v770 = vadd.f32 %v758, %v768
        %v771 = vadd.f32 %v759, %v769
        %s772 = sld [smem:[#allocation2 + $0x15]]
        %v773 = vstv %s772
        %v774 = vmul.f32 %v773, %v726
        %v775 = vmul.f32 %v773, %v727
        %v776 = vadd.f32 %v770, %v774
        %v777 = vadd.f32 %v771, %v775
        %s778 = sld [smem:[#allocation2 + $0x16]]
        %v779 = vstv %s778
        %v780 = vmul.f32 %v779, %v450
        %v781 = vmul.f32 %v779, %v451
        %v782 = vadd.f32 %v776, %v780
        %v783 = vadd.f32 %v777, %v781
        %s784 = sld [smem:[#allocation2 + $0x17]]
        %v785 = vstv %s784
        %v786 = vmul.f32 %v785, %v734
        %v787 = vmul.f32 %v785, %v735
        %v788 = vadd.f32 %v782, %v786
        %v789 = vadd.f32 %v783, %v787
        %v790 = vrot.slane %v726, 1
        %v791 = vrot.slane %v727, 1
        %v792 = vsel %vm551, %v790, %v791
        %v793 = vsel %vm551, %v791, %v790
        %v794 = vsel %vm440, %v792, 0.0
        %v795 = vsel %vm441, %v793, 0.0
        %s796 = sld [smem:[#allocation2 + $0x18]]
        %v797 = vstv %s796
        %v798 = vmul.f32 %v797, %v794
        %v799 = vmul.f32 %v797, %v795
        %v800 = vadd.f32 %v788, %v798
        %v801 = vadd.f32 %v789, %v799
        %v802 = vrot.slane %v450, 1
        %v803 = vrot.slane %v451, 1
        %v804 = vsel %vm551, %v802, %v803
        %v805 = vsel %vm551, %v803, %v802
        %v806 = vsel %vm440, %v804, 0.0
        %v807 = vsel %vm441, %v805, 0.0
        %s808 = sld [smem:[#allocation2 + $0x19]]
        %v809 = vstv %s808
        %v810 = vmul.f32 %v809, %v806
        %v811 = vmul.f32 %v809, %v807
        %v812 = vadd.f32 %v800, %v810
        %v813 = vadd.f32 %v801, %v811
        %v814 = vrot.slane %v734, 1
        %v815 = vrot.slane %v735, 1
        %v816 = vsel %vm551, %v814, %v815
        %v817 = vsel %vm551, %v815, %v814
        %v818 = vsel %vm440, %v816, 0.0
        %v819 = vsel %vm441, %v817, 0.0
        %s820 = sld [smem:[#allocation2 + $0x1a]]
        %v821 = vstv %s820
        %v822 = vmul.f32 %v821, %v818
        %v823 = vmul.f32 %v821, %v819
        %v824 = vadd.f32 %v812, %v822
        %v825 = vadd.f32 %v813, %v823
        %826 = vrot.lane.b32.xlu0 %v452, 16
        %v827 = vpop.permute.xlu0 %826
        %v828 = vsel %vm463, %v827, %v452
        %829 = vrot.lane.b32.xlu0 %v453, 16
        %v830 = vpop.permute.xlu0 %829
        %v831 = vsel %vm463, %v830, %v453
        %832 = vrot.lane.b32.xlu0 %v828, 16
        %v833 = vpop.permute.xlu0 %832
        %834 = vrot.lane.b32.xlu0 %v831, 16
        %v835 = vpop.permute.xlu0 %834
        %v836 = vsel %vm463, %v833, %v452
        %v837 = vsel %vm463, %v835, %v453
        %840 = vrot.lane.b32.xlu0 %v836, 113
        %v841 = vpop.permute.xlu0 %840
        %842 = vrot.lane.b32.xlu0 %v837, 113
        %v843 = vpop.permute.xlu0 %842
        %v846 = vsel %vm439, %v841, 0.0
        %v847 = vsel %vm439, %v843, 0.0
        %848 = vrot.lane.b32.xlu0 %v836, 127
        %v849 = vpop.permute.xlu0 %848
        %850 = vrot.lane.b32.xlu0 %v837, 127
        %v851 = vpop.permute.xlu0 %850
        %v854 = vsel %vm438, %v849, 0.0
        %v855 = vsel %vm438, %v851, 0.0
        %v856 = vrot.slane %v846, 7
        %v857 = vrot.slane %v847, 7
        %v858 = vsel %vm496, %v856, %v857
        %v859 = vsel %vm496, %v857, %v856
        %v860 = vsel %vm442, %v859, 0.0
        %v861 = vsel %vm443, %v858, 0.0
        %s862 = sld [smem:[#allocation2 + $0x1b]]
        %v863 = vstv %s862
        %v864 = vmul.f32 %v863, %v860
        %v865 = vmul.f32 %v863, %v861
        %v866 = vadd.f32 %v824, %v864
        %v867 = vadd.f32 %v825, %v865
        %v868 = vrot.slane %v452, 7
        %v869 = vrot.slane %v453, 7
        %v870 = vsel %vm496, %v868, %v869
        %v871 = vsel %vm496, %v869, %v868
        %v872 = vsel %vm442, %v871, 0.0
        %v873 = vsel %vm443, %v870, 0.0
        %s874 = sld [smem:[#allocation2 + $0x1c]]
        %v875 = vstv %s874
        %v876 = vmul.f32 %v875, %v872
        %v877 = vmul.f32 %v875, %v873
        %v878 = vadd.f32 %v866, %v876
        %v879 = vadd.f32 %v867, %v877
        %v880 = vrot.slane %v854, 7
        %v881 = vrot.slane %v855, 7
        %v882 = vsel %vm496, %v880, %v881
        %v883 = vsel %vm496, %v881, %v880
        %v884 = vsel %vm442, %v883, 0.0
        %v885 = vsel %vm443, %v882, 0.0
        %s886 = sld [smem:[#allocation2 + $0x1d]]
        %v887 = vstv %s886
        %v888 = vmul.f32 %v887, %v884
        %v889 = vmul.f32 %v887, %v885
        %v890 = vadd.f32 %v878, %v888
        %v891 = vadd.f32 %v879, %v889
        %s892 = sld [smem:[#allocation2 + $0x1e]]
        %v893 = vstv %s892
        %v894 = vmul.f32 %v893, %v846
        %v895 = vmul.f32 %v893, %v847
        %v896 = vadd.f32 %v890, %v894
        %v897 = vadd.f32 %v891, %v895
        %s898 = sld [smem:[#allocation2 + $0x1f]]
        %v899 = vstv %s898
        %v900 = vmul.f32 %v899, %v452
        %v901 = vmul.f32 %v899, %v453
        %v902 = vadd.f32 %v896, %v900
        %v903 = vadd.f32 %v897, %v901
        %s904 = sld [smem:[#allocation2 + $0x20]]
        %v905 = vstv %s904
        %v906 = vmul.f32 %v905, %v854
        %v907 = vmul.f32 %v905, %v855
        %v908 = vadd.f32 %v902, %v906
        %v909 = vadd.f32 %v903, %v907
        %v910 = vrot.slane %v846, 1
        %v911 = vrot.slane %v847, 1
        %v912 = vsel %vm551, %v910, %v911
        %v913 = vsel %vm551, %v911, %v910
        %v914 = vsel %vm440, %v912, 0.0
        %v915 = vsel %vm441, %v913, 0.0
        %s916 = sld [smem:[#allocation2 + $0x21]]
        %v917 = vstv %s916
        %v918 = vmul.f32 %v917, %v914
        %v919 = vmul.f32 %v917, %v915
        %v920 = vadd.f32 %v908, %v918
        %v921 = vadd.f32 %v909, %v919
        %v922 = vrot.slane %v452, 1
        %v923 = vrot.slane %v453, 1
        %v924 = vsel %vm551, %v922, %v923
        %v925 = vsel %vm551, %v923, %v922
        %v926 = vsel %vm440, %v924, 0.0
        %v927 = vsel %vm441, %v925, 0.0
        %s928 = sld [smem:[#allocation2 + $0x22]]
        %v929 = vstv %s928
        %v930 = vmul.f32 %v929, %v926
        %v931 = vmul.f32 %v929, %v927
        %v932 = vadd.f32 %v920, %v930
        %v933 = vadd.f32 %v921, %v931
        %v934 = vrot.slane %v854, 1
        %v935 = vrot.slane %v855, 1
        %v936 = vsel %vm551, %v934, %v935
        %v937 = vsel %vm551, %v935, %v934
        %v938 = vsel %vm440, %v936, 0.0
        %v939 = vsel %vm441, %v937, 0.0
        %s940 = sld [smem:[#allocation2 + $0x23]]
        %v941 = vstv %s940
        %v942 = vmul.f32 %v941, %v938
        %v943 = vmul.f32 %v941, %v939
        %v944 = vadd.f32 %v932, %v942
        %v945 = vadd.f32 %v933, %v943
        %946 = vrot.lane.b32.xlu0 %v455, 16
        %v947 = vpop.permute.xlu0 %946
        %v948 = vsel %vm463, %v947, %v455
        %949 = vrot.lane.b32.xlu0 %v456, 16
        %v950 = vpop.permute.xlu0 %949
        %v951 = vsel %vm463, %v950, %v456
        %952 = vrot.lane.b32.xlu0 %v948, 16
        %v953 = vpop.permute.xlu0 %952
        %954 = vrot.lane.b32.xlu0 %v951, 16
        %v955 = vpop.permute.xlu0 %954
        %v956 = vsel %vm463, %v953, %v455
        %v957 = vsel %vm463, %v955, %v456
        %960 = vrot.lane.b32.xlu0 %v956, 113
        %v961 = vpop.permute.xlu0 %960
        %962 = vrot.lane.b32.xlu0 %v957, 113
        %v963 = vpop.permute.xlu0 %962
        %v966 = vsel %vm439, %v961, 0.0
        %v967 = vsel %vm439, %v963, 0.0
        %968 = vrot.lane.b32.xlu0 %v956, 127
        %v969 = vpop.permute.xlu0 %968
        %970 = vrot.lane.b32.xlu0 %v957, 127
        %v971 = vpop.permute.xlu0 %970
        %v974 = vsel %vm438, %v969, 0.0
        %v975 = vsel %vm438, %v971, 0.0
        %v976 = vrot.slane %v966, 7
        %v977 = vrot.slane %v967, 7
        %v978 = vsel %vm496, %v976, %v977
        %v979 = vsel %vm496, %v977, %v976
        %v980 = vsel %vm442, %v979, 0.0
        %v981 = vsel %vm443, %v978, 0.0
        %s982 = sld [smem:[#allocation2 + $0x24]]
        %v983 = vstv %s982
        %v984 = vmul.f32 %v983, %v980
        %v985 = vmul.f32 %v983, %v981
        %v986 = vadd.f32 %v944, %v984
        %v987 = vadd.f32 %v945, %v985
        %v988 = vrot.slane %v455, 7
        %v989 = vrot.slane %v456, 7
        %v990 = vsel %vm496, %v988, %v989
        %v991 = vsel %vm496, %v989, %v988
        %v992 = vsel %vm442, %v991, 0.0
        %v993 = vsel %vm443, %v990, 0.0
        %s994 = sld [smem:[#allocation2 + $0x25]]
        %v995 = vstv %s994
        %v996 = vmul.f32 %v995, %v992
        %v997 = vmul.f32 %v995, %v993
        %v998 = vadd.f32 %v986, %v996
        %v999 = vadd.f32 %v987, %v997
        %v1000 = vrot.slane %v974, 7
        %v1001 = vrot.slane %v975, 7
        %v1002 = vsel %vm496, %v1000, %v1001
        %v1003 = vsel %vm496, %v1001, %v1000
        %v1004 = vsel %vm442, %v1003, 0.0
        %v1005 = vsel %vm443, %v1002, 0.0
        %s1006 = sld [smem:[#allocation2 + $0x26]]
        %v1007 = vstv %s1006
        %v1008 = vmul.f32 %v1007, %v1004
        %v1009 = vmul.f32 %v1007, %v1005
        %v1010 = vadd.f32 %v998, %v1008
        %v1011 = vadd.f32 %v999, %v1009
        %s1012 = sld [smem:[#allocation2 + $0x27]]
        %v1013 = vstv %s1012
        %v1014 = vmul.f32 %v1013, %v966
        %v1015 = vmul.f32 %v1013, %v967
        %v1016 = vadd.f32 %v1010, %v1014
        %v1017 = vadd.f32 %v1011, %v1015
        %s1018 = sld [smem:[#allocation2 + $0x28]]
        %v1019 = vstv %s1018
        %v1020 = vmul.f32 %v1019, %v455
        %v1021 = vmul.f32 %v1019, %v456
        %v1022 = vadd.f32 %v1016, %v1020
        %v1023 = vadd.f32 %v1017, %v1021
        %s1024 = sld [smem:[#allocation2 + $0x29]]
        %v1025 = vstv %s1024
        %v1026 = vmul.f32 %v1025, %v974
        %v1027 = vmul.f32 %v1025, %v975
        %v1028 = vadd.f32 %v1022, %v1026
        %v1029 = vadd.f32 %v1023, %v1027
        %v1030 = vrot.slane %v966, 1
        %v1031 = vrot.slane %v967, 1
        %v1032 = vsel %vm551, %v1030, %v1031
        %v1033 = vsel %vm551, %v1031, %v1030
        %v1034 = vsel %vm440, %v1032, 0.0
        %v1035 = vsel %vm441, %v1033, 0.0
        %s1036 = sld [smem:[#allocation2 + $0x2a]]
        %v1037 = vstv %s1036
        %v1038 = vmul.f32 %v1037, %v1034
        %v1039 = vmul.f32 %v1037, %v1035
        %v1040 = vadd.f32 %v1028, %v1038
        %v1041 = vadd.f32 %v1029, %v1039
        %v1042 = vrot.slane %v455, 1
        %v1043 = vrot.slane %v456, 1
        %v1044 = vsel %vm551, %v1042, %v1043
        %v1045 = vsel %vm551, %v1043, %v1042
        %v1046 = vsel %vm440, %v1044, 0.0
        %v1047 = vsel %vm441, %v1045, 0.0
        %s1048 = sld [smem:[#allocation2 + $0x2b]]
        %v1049 = vstv %s1048
        %v1050 = vmul.f32 %v1049, %v1046
        %v1051 = vmul.f32 %v1049, %v1047
        %v1052 = vadd.f32 %v1040, %v1050
        %v1053 = vadd.f32 %v1041, %v1051
        %v1054 = vrot.slane %v974, 1
        %v1055 = vrot.slane %v975, 1
        %v1056 = vsel %vm551, %v1054, %v1055
        %v1057 = vsel %vm551, %v1055, %v1054
        %v1058 = vsel %vm440, %v1056, 0.0
        %v1059 = vsel %vm441, %v1057, 0.0
        %s1060 = sld [smem:[#allocation2 + $0x2c]]
        %v1061 = vstv %s1060
        %v1062 = vmul.f32 %v1061, %v1058
        %v1063 = vmul.f32 %v1061, %v1059
        %v1064 = vadd.f32 %v1052, %v1062
        %v1065 = vadd.f32 %v1053, %v1063
        %1066 = vrot.lane.b32.xlu0 %v458, 16
        %v1067 = vpop.permute.xlu0 %1066
        %v1068 = vsel %vm463, %v1067, %v458
        %1069 = vrot.lane.b32.xlu0 %v459, 16
        %v1070 = vpop.permute.xlu0 %1069
        %v1071 = vsel %vm463, %v1070, %v459
        %1072 = vrot.lane.b32.xlu0 %v1068, 16
        %v1073 = vpop.permute.xlu0 %1072
        %1074 = vrot.lane.b32.xlu0 %v1071, 16
        %v1075 = vpop.permute.xlu0 %1074
        %v1076 = vsel %vm463, %v1073, %v458
        %v1077 = vsel %vm463, %v1075, %v459
        %1080 = vrot.lane.b32.xlu0 %v1076, 113
        %v1081 = vpop.permute.xlu0 %1080
        %1082 = vrot.lane.b32.xlu0 %v1077, 113
        %v1083 = vpop.permute.xlu0 %1082
        %v1086 = vsel %vm439, %v1081, 0.0
        %v1087 = vsel %vm439, %v1083, 0.0
        %1088 = vrot.lane.b32.xlu0 %v1076, 127
        %v1089 = vpop.permute.xlu0 %1088
        %1090 = vrot.lane.b32.xlu0 %v1077, 127
        %v1091 = vpop.permute.xlu0 %1090
        %v1094 = vsel %vm438, %v1089, 0.0
        %v1095 = vsel %vm438, %v1091, 0.0
        %v1096 = vrot.slane %v1086, 7
        %v1097 = vrot.slane %v1087, 7
        %v1098 = vsel %vm496, %v1096, %v1097
        %v1099 = vsel %vm496, %v1097, %v1096
        %v1100 = vsel %vm442, %v1099, 0.0
        %v1101 = vsel %vm443, %v1098, 0.0
        %s1102 = sld [smem:[#allocation2 + $0x2d]]
        %v1103 = vstv %s1102
        %v1104 = vmul.f32 %v1103, %v1100
        %v1105 = vmul.f32 %v1103, %v1101
        %v1106 = vadd.f32 %v1064, %v1104
        %v1107 = vadd.f32 %v1065, %v1105
        %v1108 = vrot.slane %v458, 7
        %v1109 = vrot.slane %v459, 7
        %v1110 = vsel %vm496, %v1108, %v1109
        %v1111 = vsel %vm496, %v1109, %v1108
        %v1112 = vsel %vm442, %v1111, 0.0
        %v1113 = vsel %vm443, %v1110, 0.0
        %s1114 = sld [smem:[#allocation2 + $0x2e]]
        %v1115 = vstv %s1114
        %v1116 = vmul.f32 %v1115, %v1112
        %v1117 = vmul.f32 %v1115, %v1113
        %v1118 = vadd.f32 %v1106, %v1116
        %v1119 = vadd.f32 %v1107, %v1117
        %v1120 = vrot.slane %v1094, 7
        %v1121 = vrot.slane %v1095, 7
        %v1122 = vsel %vm496, %v1120, %v1121
        %v1123 = vsel %vm496, %v1121, %v1120
        %v1124 = vsel %vm442, %v1123, 0.0
        %v1125 = vsel %vm443, %v1122, 0.0
        %s1126 = sld [smem:[#allocation2 + $0x2f]]
        %v1127 = vstv %s1126
        %v1128 = vmul.f32 %v1127, %v1124
        %v1129 = vmul.f32 %v1127, %v1125
        %v1130 = vadd.f32 %v1118, %v1128
        %v1131 = vadd.f32 %v1119, %v1129
        %s1132 = sld [smem:[#allocation2 + $0x30]]
        %v1133 = vstv %s1132
        %v1134 = vmul.f32 %v1133, %v1086
        %v1135 = vmul.f32 %v1133, %v1087
        %v1136 = vadd.f32 %v1130, %v1134
        %v1137 = vadd.f32 %v1131, %v1135
        %s1138 = sld [smem:[#allocation2 + $0x31]]
        %v1139 = vstv %s1138
        %v1140 = vmul.f32 %v1139, %v458
        %v1141 = vmul.f32 %v1139, %v459
        %v1142 = vadd.f32 %v1136, %v1140
        %v1143 = vadd.f32 %v1137, %v1141
        %s1144 = sld [smem:[#allocation2 + $0x32]]
        %v1145 = vstv %s1144
        %v1146 = vmul.f32 %v1145, %v1094
        %v1147 = vmul.f32 %v1145, %v1095
        %v1148 = vadd.f32 %v1142, %v1146
        %v1149 = vadd.f32 %v1143, %v1147
        %v1150 = vrot.slane %v1086, 1
        %v1151 = vrot.slane %v1087, 1
        %v1152 = vsel %vm551, %v1150, %v1151
        %v1153 = vsel %vm551, %v1151, %v1150
        %v1154 = vsel %vm440, %v1152, 0.0
        %v1155 = vsel %vm441, %v1153, 0.0
        %s1156 = sld [smem:[#allocation2 + $0x33]]
        %v1157 = vstv %s1156
        %v1158 = vmul.f32 %v1157, %v1154
        %v1159 = vmul.f32 %v1157, %v1155
        %v1160 = vadd.f32 %v1148, %v1158
        %v1161 = vadd.f32 %v1149, %v1159
        %v1162 = vrot.slane %v458, 1
        %v1163 = vrot.slane %v459, 1
        %v1164 = vsel %vm551, %v1162, %v1163
        %v1165 = vsel %vm551, %v1163, %v1162
        %v1166 = vsel %vm440, %v1164, 0.0
        %v1167 = vsel %vm441, %v1165, 0.0
        %s1168 = sld [smem:[#allocation2 + $0x34]]
        %v1169 = vstv %s1168
        %v1170 = vmul.f32 %v1169, %v1166
        %v1171 = vmul.f32 %v1169, %v1167
        %v1172 = vadd.f32 %v1160, %v1170
        %v1173 = vadd.f32 %v1161, %v1171
        %v1174 = vrot.slane %v1094, 1
        %v1175 = vrot.slane %v1095, 1
        %v1176 = vsel %vm551, %v1174, %v1175
        %v1177 = vsel %vm551, %v1175, %v1174
        %v1178 = vsel %vm440, %v1176, 0.0
        %v1179 = vsel %vm441, %v1177, 0.0
        %s1180 = sld [smem:[#allocation2 + $0x35]]
        %v1181 = vstv %s1180
        %v1182 = vmul.f32 %v1181, %v1178
        %v1183 = vmul.f32 %v1181, %v1179
        %v1184 = vadd.f32 %v1172, %v1182
        %v1185 = vadd.f32 %v1173, %v1183
        %vm1186 = vcmask 130048
        %1187 = vst.msk [vmem:[%s432] sm:$0xff] %vm1186, %v1184
        %1188 = vst.msk [vmem:[%s432 + $0x8] sm:$0xff] %vm1186, %v1185
        %1189 = vrot.lane.b32.xlu0 %v1184, 16
        %v1190 = vpop.permute.xlu0 %1189
        %v1191 = vsel %vm463, %v1190, %v1184
        %1192 = vrot.lane.b32.xlu0 %v1185, 16
        %v1193 = vpop.permute.xlu0 %1192
        %v1194 = vsel %vm463, %v1193, %v1185
        %1195 = vrot.lane.b32.xlu0 %v1191, 16
        %v1196 = vpop.permute.xlu0 %1195
        %1197 = vrot.lane.b32.xlu0 %v1194, 16
        %v1198 = vpop.permute.xlu0 %1197
        %v1199 = vsel %vm463, %v1196, %v1184
        %v1200 = vsel %vm463, %v1198, %v1185
        %1203 = vrot.lane.b32.xlu0 %v1184, 1
        %v1204 = vpop.permute.xlu0 %1203
        %1205 = vrot.lane.b32.xlu0 %v1185, 1
        %v1206 = vpop.permute.xlu0 %1205
        %v1209 = vsub.f32 %v1199, %v1204
        %v1210 = vsub.f32 %v1200, %v1206
        %1213 = vrot.lane.b32.xlu0 %v1209, 127
        %v1214 = vpop.permute.xlu0 %1213
        %1215 = vrot.lane.b32.xlu0 %v1210, 127
        %v1216 = vpop.permute.xlu0 %1215
        %v1219 = vsel %vm438, %v1214, 0.0
        %v1220 = vsel %vm438, %v1216, 0.0
        %v1221 = vrot.slane %v1184, 1
        %v1222 = vrot.slane %v1185, 1
        %v1223 = vsel %vm551, %v1221, %v1222
        %v1224 = vsel %vm551, %v1222, %v1221
        %v1225 = vsub.f32 %v1223, %v1184
        %v1226 = vsub.f32 %v1224, %v1185
        %v1227 = vsel %vm440, %v1225, 0.0
        %v1228 = vsel %vm441, %v1226, 0.0
        %v1229 = vsub.f32 0.0, %v1219
        %v1230 = vsub.f32 0.0, %v1220
        %v1231 = vsub.f32 0.0, %v1227
        %v1232 = vsub.f32 0.0, %v1228
        %v1233 = vmul.f32 %v1229, %v1229
        %v1234 = vmul.f32 %v1230, %v1230
        %v1235 = vmul.f32 %v1231, %v1231
        %v1236 = vmul.f32 %v1232, %v1232
        %v1237 = vadd.f32 %v1233, %v1235
        %v1238 = vadd.f32 %v1234, %v1236
        %v1239 = vadd.f32 %v1237, 1.0
        %v1240 = vadd.f32 %v1238, 1.0
        %v1241 = vrsqrt.pop %v1239
        %v1242 = vrsqrt.pop %v1240
        %v1243 = vmul.f32 %v1229, %v1241
        %v1244 = vmul.f32 %v1230, %v1242
        %v1245 = vmul.f32 %v1231, %v1241
        %v1246 = vmul.f32 %v1232, %v1242
        %1247 = vst.msk [vmem:[%s427] sm:$0xff] %vm1186, %v1243
        %1248 = vst.msk [vmem:[%s427 + $0x8] sm:$0xff] %vm1186, %v1244
        %s1249 = scalar_lea.vmem %s427, 16
        %1250 = vst.msk [vmem:[%s1249] sm:$0xff] %vm1186, %v1245
        %1251 = vst.msk [vmem:[%s1249 + $0x8] sm:$0xff] %vm1186, %v1246
        %s1252 = scalar_lea.vmem %s427, 32
        %1253 = vst.msk [vmem:[%s1252] sm:$0xff] %vm1186, %v1241
        %1254 = vst.msk [vmem:[%s1252 + $0x8] sm:$0xff] %vm1186, %v1242
        %v1255 = vmul.f32 %v1243, 0.30151135
        %v1256 = vmul.f32 %v1244, 0.30151135
        %v1257 = vmul.f32 %v1245, 0.30151135
        %v1258 = vmul.f32 %v1246, 0.30151135
        %v1259 = vadd.f32 %v1255, %v1257
        %v1260 = vadd.f32 %v1256, %v1258
        %v1261 = vmul.f32 %v1241, 0.90453404
        %v1262 = vmul.f32 %v1242, 0.90453404
        %v1263 = vadd.f32 %v1259, %v1261
        %v1264 = vadd.f32 %v1260, %v1262
        %v1265 = vmax.f32 %v1263, 0.0
        %v1266 = vmax.f32 %v1264, 0.0
        %v1267 = vmul.f32 %v444, %v1265
        %v1268 = vmul.f32 %v445, %v1266
        %v1269 = vmul.f32 %v447, %v1265
        %v1270 = vmul.f32 %v448, %v1266
        %v1271 = vmul.f32 %v450, %v1265
        %v1272 = vmul.f32 %v451, %v1266
        %1273 = vst.msk [vmem:[%s408] sm:$0xff] %vm1186, %v1267
        %1274 = vst.msk [vmem:[%s408 + $0x8] sm:$0xff] %vm1186, %v1268
        %s1275 = scalar_lea.vmem %s408, 16 [#allocation12]
        %1276 = vst.msk [vmem:[%s1275] sm:$0xff] %vm1186, %v1269
        %1277 = vst.msk [vmem:[%s1275 + $0x8] sm:$0xff] %vm1186, %v1270
        %s1278 = scalar_lea.vmem %s408, 32 [#allocation12]
        %1279 = vst.msk [vmem:[%s1278] sm:$0xff] %vm1186, %v1271
        %1280 = vst.msk [vmem:[%s1278 + $0x8] sm:$0xff] %vm1186, %v1272
        %vm1281 = vcmp.gt.f32.partialorder %v1265, 0.0
        %vm1282 = vcmp.gt.f32.partialorder %v1266, 0.0
        %v1283 = vsel %vm1281, 1, 0
        %v1284 = vsel %vm1282, 1, 0
        %v1285 = vcvt.s32.f32 %v1283
        %v1286 = vcvt.s32.f32 %v1284
        %1287 = vst.msk [vmem:[%s415] sm:$0xff] %vm1186, %v1285
        %1288 = vst.msk [vmem:[%s415 + $0x8] sm:$0xff] %vm1186, %v1286
        %v1289 = vmul.f32 %v1243, 0.15448783
        %v1290 = vmul.f32 %v1244, 0.15448783
        %v1291 = vmul.f32 %v1245, 0.15448783
        %v1292 = vmul.f32 %v1246, 0.15448783
        %v1293 = vadd.f32 %v1289, %v1291
        %v1294 = vadd.f32 %v1290, %v1292
        %v1295 = vmul.f32 %v1241, 0.9758417
        %v1296 = vmul.f32 %v1242, 0.9758417
        %v1297 = vadd.f32 %v1293, %v1295
        %v1298 = vadd.f32 %v1294, %v1296
        %v1299 = vmax.f32 %v1297, 0.0
        %v1300 = vmax.f32 %v1298, 0.0
        %v1301 = vmul.f32 %v1299, %v1299
        %v1302 = vmul.f32 %v1300, %v1300
        %v1303 = vmul.f32 %v1301, %v1301
        %v1304 = vmul.f32 %v1302, %v1302
        %v1305 = vmul.f32 %v1303, %v1303
        %v1306 = vmul.f32 %v1304, %v1304
        %v1307 = vmul.f32 %v1305, %v1305
        %v1308 = vmul.f32 %v1306, %v1306
        %v1309 = vmul.f32 %v1307, %v1307
        %v1310 = vmul.f32 %v1308, %v1308
        %s1311 = sld [smem:[#allocation6 + $0x10e]]
        %v1312 = vstv %s1311
        %v1313 = vadd.f32 %v1312, 0.0
        %s1314 = sld [smem:[#allocation6 + $0x10f]]
        %v1315 = vstv %s1314
        %v1316 = vadd.f32 %v1315, 0.0
        %s1317 = sld [smem:[#allocation6 + $0x110]]
        %v1318 = vstv %s1317
        %v1319 = vadd.f32 %v1318, 0.0
        %s1320 = sld [smem:[#allocation6]]
        %v1321 = vstv %s1320
        %v1322 = vmul.f32 %v1321, %v499
        %v1323 = vmul.f32 %v1321, %v500
        %v1324 = vadd.f32 %v1313, %v1322
        %v1325 = vadd.f32 %v1313, %v1323
        %s1326 = sld [smem:[#allocation6 + $0x5a]]
        %v1327 = vstv %s1326
        %v1328 = vmul.f32 %v1327, %v499
        %v1329 = vmul.f32 %v1327, %v500
        %v1330 = vadd.f32 %v1316, %v1328
        %v1331 = vadd.f32 %v1316, %v1329
        %s1332 = sld [smem:[#allocation6 + $0xb4]]
        %v1333 = vstv %s1332
        %v1334 = vmul.f32 %v1333, %v499
        %v1335 = vmul.f32 %v1333, %v500
        %v1336 = vadd.f32 %v1319, %v1334
        %v1337 = vadd.f32 %v1319, %v1335
        %s1338 = sld [smem:[#allocation6 + $0x1]]
        %v1339 = vstv %s1338
        %v1340 = vmul.f32 %v1339, %v511
        %v1341 = vmul.f32 %v1339, %v512
        %v1342 = vadd.f32 %v1324, %v1340
        %v1343 = vadd.f32 %v1325, %v1341
        %s1344 = sld [smem:[#allocation6 + $0x5b]]
        %v1345 = vstv %s1344
        %v1346 = vmul.f32 %v1345, %v511
        %v1347 = vmul.f32 %v1345, %v512
        %v1348 = vadd.f32 %v1330, %v1346
        %v1349 = vadd.f32 %v1331, %v1347
        %s1350 = sld [smem:[#allocation6 + $0xb5]]
        %v1351 = vstv %s1350
        %v1352 = vmul.f32 %v1351, %v511
        %v1353 = vmul.f32 %v1351, %v512
        %v1354 = vadd.f32 %v1336, %v1352
        %v1355 = vadd.f32 %v1337, %v1353
        %s1356 = sld [smem:[#allocation6 + $0x2]]
        %v1357 = vstv %s1356
        %v1358 = vmul.f32 %v1357, %v523
        %v1359 = vmul.f32 %v1357, %v524
        %v1360 = vadd.f32 %v1342, %v1358
        %v1361 = vadd.f32 %v1343, %v1359
        %s1362 = sld [smem:[#allocation6 + $0x5c]]
        %v1363 = vstv %s1362
        %v1364 = vmul.f32 %v1363, %v523
        %v1365 = vmul.f32 %v1363, %v524
        %v1366 = vadd.f32 %v1348, %v1364
        %v1367 = vadd.f32 %v1349, %v1365
        %s1368 = sld [smem:[#allocation6 + $0xb6]]
        %v1369 = vstv %s1368
        %v1370 = vmul.f32 %v1369, %v523
        %v1371 = vmul.f32 %v1369, %v524
        %v1372 = vadd.f32 %v1354, %v1370
        %v1373 = vadd.f32 %v1355, %v1371
        %s1374 = sld [smem:[#allocation6 + $0x3]]
        %v1375 = vstv %s1374
        %v1376 = vmul.f32 %v1375, %v484
        %v1377 = vmul.f32 %v1375, %v485
        %v1378 = vadd.f32 %v1360, %v1376
        %v1379 = vadd.f32 %v1361, %v1377
        %s1380 = sld [smem:[#allocation6 + $0x5d]]
        %v1381 = vstv %s1380
        %v1382 = vmul.f32 %v1381, %v484
        %v1383 = vmul.f32 %v1381, %v485
        %v1384 = vadd.f32 %v1366, %v1382
        %v1385 = vadd.f32 %v1367, %v1383
        %s1386 = sld [smem:[#allocation6 + $0xb7]]
        %v1387 = vstv %s1386
        %v1388 = vmul.f32 %v1387, %v484
        %v1389 = vmul.f32 %v1387, %v485
        %v1390 = vadd.f32 %v1372, %v1388
        %v1391 = vadd.f32 %v1373, %v1389
        %s1392 = sld [smem:[#allocation6 + $0x4]]
        %v1393 = vstv %s1392
        %v1394 = vmul.f32 %v1393, %v444
        %v1395 = vmul.f32 %v1393, %v445
        %v1396 = vadd.f32 %v1378, %v1394
        %v1397 = vadd.f32 %v1379, %v1395
        %s1398 = sld [smem:[#allocation6 + $0x5e]]
        %v1399 = vstv %s1398
        %v1400 = vmul.f32 %v1399, %v444
        %v1401 = vmul.f32 %v1399, %v445
        %v1402 = vadd.f32 %v1384, %v1400
        %v1403 = vadd.f32 %v1385, %v1401
        %s1404 = sld [smem:[#allocation6 + $0xb8]]
        %v1405 = vstv %s1404
        %v1406 = vmul.f32 %v1405, %v444
        %v1407 = vmul.f32 %v1405, %v445
        %v1408 = vadd.f32 %v1390, %v1406
        %v1409 = vadd.f32 %v1391, %v1407
        %s1410 = sld [smem:[#allocation6 + $0x5]]
        %v1411 = vstv %s1410
        %v1412 = vmul.f32 %v1411, %v492
        %v1413 = vmul.f32 %v1411, %v493
        %v1414 = vadd.f32 %v1396, %v1412
        %v1415 = vadd.f32 %v1397, %v1413
        %s1416 = sld [smem:[#allocation6 + $0x5f]]
        %v1417 = vstv %s1416
        %v1418 = vmul.f32 %v1417, %v492
        %v1419 = vmul.f32 %v1417, %v493
        %v1420 = vadd.f32 %v1402, %v1418
        %v1421 = vadd.f32 %v1403, %v1419
        %s1422 = sld [smem:[#allocation6 + $0xb9]]
        %v1423 = vstv %s1422
        %v1424 = vmul.f32 %v1423, %v492
        %v1425 = vmul.f32 %v1423, %v493
        %v1426 = vadd.f32 %v1408, %v1424
        %v1427 = vadd.f32 %v1409, %v1425
        %s1428 = sld [smem:[#allocation6 + $0x6]]
        %v1429 = vstv %s1428
        %v1430 = vmul.f32 %v1429, %v554
        %v1431 = vmul.f32 %v1429, %v555
        %v1432 = vadd.f32 %v1414, %v1430
        %v1433 = vadd.f32 %v1415, %v1431
        %s1434 = sld [smem:[#allocation6 + $0x60]]
        %v1435 = vstv %s1434
        %v1436 = vmul.f32 %v1435, %v554
        %v1437 = vmul.f32 %v1435, %v555
        %v1438 = vadd.f32 %v1420, %v1436
        %v1439 = vadd.f32 %v1421, %v1437
        %s1440 = sld [smem:[#allocation6 + $0xba]]
        %v1441 = vstv %s1440
        %v1442 = vmul.f32 %v1441, %v554
        %v1443 = vmul.f32 %v1441, %v555
        %v1444 = vadd.f32 %v1426, %v1442
        %v1445 = vadd.f32 %v1427, %v1443
        %s1446 = sld [smem:[#allocation6 + $0x7]]
        %v1447 = vstv %s1446
        %v1448 = vmul.f32 %v1447, %v566
        %v1449 = vmul.f32 %v1447, %v567
        %v1450 = vadd.f32 %v1432, %v1448
        %v1451 = vadd.f32 %v1433, %v1449
        %s1452 = sld [smem:[#allocation6 + $0x61]]
        %v1453 = vstv %s1452
        %v1454 = vmul.f32 %v1453, %v566
        %v1455 = vmul.f32 %v1453, %v567
        %v1456 = vadd.f32 %v1438, %v1454
        %v1457 = vadd.f32 %v1439, %v1455
        %s1458 = sld [smem:[#allocation6 + $0xbb]]
        %v1459 = vstv %s1458
        %v1460 = vmul.f32 %v1459, %v566
        %v1461 = vmul.f32 %v1459, %v567
        %v1462 = vadd.f32 %v1444, %v1460
        %v1463 = vadd.f32 %v1445, %v1461
        %s1464 = sld [smem:[#allocation6 + $0x8]]
        %v1465 = vstv %s1464
        %v1466 = vmul.f32 %v1465, %v578
        %v1467 = vmul.f32 %v1465, %v579
        %v1468 = vadd.f32 %v1450, %v1466
        %v1469 = vadd.f32 %v1451, %v1467
        %s1470 = sld [smem:[#allocation6 + $0x62]]
        %v1471 = vstv %s1470
        %v1472 = vmul.f32 %v1471, %v578
        %v1473 = vmul.f32 %v1471, %v579
        %v1474 = vadd.f32 %v1456, %v1472
        %v1475 = vadd.f32 %v1457, %v1473
        %s1476 = sld [smem:[#allocation6 + $0xbc]]
        %v1477 = vstv %s1476
        %v1478 = vmul.f32 %v1477, %v578
        %v1479 = vmul.f32 %v1477, %v579
        %v1480 = vadd.f32 %v1462, %v1478
        %v1481 = vadd.f32 %v1463, %v1479
        %s1482 = sld [smem:[#allocation6 + $0x9]]
        %v1483 = vstv %s1482
        %v1484 = vmul.f32 %v1483, %v620
        %v1485 = vmul.f32 %v1483, %v621
        %v1486 = vadd.f32 %v1468, %v1484
        %v1487 = vadd.f32 %v1469, %v1485
        %s1488 = sld [smem:[#allocation6 + $0x63]]
        %v1489 = vstv %s1488
        %v1490 = vmul.f32 %v1489, %v620
        %v1491 = vmul.f32 %v1489, %v621
        %v1492 = vadd.f32 %v1474, %v1490
        %v1493 = vadd.f32 %v1475, %v1491
        %s1494 = sld [smem:[#allocation6 + $0xbd]]
        %v1495 = vstv %s1494
        %v1496 = vmul.f32 %v1495, %v620
        %v1497 = vmul.f32 %v1495, %v621
        %v1498 = vadd.f32 %v1480, %v1496
        %v1499 = vadd.f32 %v1481, %v1497
        %s1500 = sld [smem:[#allocation6 + $0xa]]
        %v1501 = vstv %s1500
        %v1502 = vmul.f32 %v1501, %v632
        %v1503 = vmul.f32 %v1501, %v633
        %v1504 = vadd.f32 %v1486, %v1502
        %v1505 = vadd.f32 %v1487, %v1503
        %s1506 = sld [smem:[#allocation6 + $0x64]]
        %v1507 = vstv %s1506
        %v1508 = vmul.f32 %v1507, %v632
        %v1509 = vmul.f32 %v1507, %v633
        %v1510 = vadd.f32 %v1492, %v1508
        %v1511 = vadd.f32 %v1493, %v1509
        %s1512 = sld [smem:[#allocation6 + $0xbe]]
        %v1513 = vstv %s1512
        %v1514 = vmul.f32 %v1513, %v632
        %v1515 = vmul.f32 %v1513, %v633
        %v1516 = vadd.f32 %v1498, %v1514
        %v1517 = vadd.f32 %v1499, %v1515
        %s1518 = sld [smem:[#allocation6 + $0xb]]
        %v1519 = vstv %s1518
        %v1520 = vmul.f32 %v1519, %v644
        %v1521 = vmul.f32 %v1519, %v645
        %v1522 = vadd.f32 %v1504, %v1520
        %v1523 = vadd.f32 %v1505, %v1521
        %s1524 = sld [smem:[#allocation6 + $0x65]]
        %v1525 = vstv %s1524
        %v1526 = vmul.f32 %v1525, %v644
        %v1527 = vmul.f32 %v1525, %v645
        %v1528 = vadd.f32 %v1510, %v1526
        %v1529 = vadd.f32 %v1511, %v1527
        %s1530 = sld [smem:[#allocation6 + $0xbf]]
        %v1531 = vstv %s1530
        %v1532 = vmul.f32 %v1531, %v644
        %v1533 = vmul.f32 %v1531, %v645
        %v1534 = vadd.f32 %v1516, %v1532
        %v1535 = vadd.f32 %v1517, %v1533
        %s1536 = sld [smem:[#allocation6 + $0xc]]
        %v1537 = vstv %s1536
        %v1538 = vmul.f32 %v1537, %v606
        %v1539 = vmul.f32 %v1537, %v607
        %v1540 = vadd.f32 %v1522, %v1538
        %v1541 = vadd.f32 %v1523, %v1539
        %s1542 = sld [smem:[#allocation6 + $0x66]]
        %v1543 = vstv %s1542
        %v1544 = vmul.f32 %v1543, %v606
        %v1545 = vmul.f32 %v1543, %v607
        %v1546 = vadd.f32 %v1528, %v1544
        %v1547 = vadd.f32 %v1529, %v1545
        %s1548 = sld [smem:[#allocation6 + $0xc0]]
        %v1549 = vstv %s1548
        %v1550 = vmul.f32 %v1549, %v606
        %v1551 = vmul.f32 %v1549, %v607
        %v1552 = vadd.f32 %v1534, %v1550
        %v1553 = vadd.f32 %v1535, %v1551
        %s1554 = sld [smem:[#allocation6 + $0xd]]
        %v1555 = vstv %s1554
        %v1556 = vmul.f32 %v1555, %v447
        %v1557 = vmul.f32 %v1555, %v448
        %v1558 = vadd.f32 %v1540, %v1556
        %v1559 = vadd.f32 %v1541, %v1557
        %s1560 = sld [smem:[#allocation6 + $0x67]]
        %v1561 = vstv %s1560
        %v1562 = vmul.f32 %v1561, %v447
        %v1563 = vmul.f32 %v1561, %v448
        %v1564 = vadd.f32 %v1546, %v1562
        %v1565 = vadd.f32 %v1547, %v1563
        %s1566 = sld [smem:[#allocation6 + $0xc1]]
        %v1567 = vstv %s1566
        %v1568 = vmul.f32 %v1567, %v447
        %v1569 = vmul.f32 %v1567, %v448
        %v1570 = vadd.f32 %v1552, %v1568
        %v1571 = vadd.f32 %v1553, %v1569
        %s1572 = sld [smem:[#allocation6 + $0xe]]
        %v1573 = vstv %s1572
        %v1574 = vmul.f32 %v1573, %v614
        %v1575 = vmul.f32 %v1573, %v615
        %v1576 = vadd.f32 %v1558, %v1574
        %v1577 = vadd.f32 %v1559, %v1575
        %s1578 = sld [smem:[#allocation6 + $0x68]]
        %v1579 = vstv %s1578
        %v1580 = vmul.f32 %v1579, %v614
        %v1581 = vmul.f32 %v1579, %v615
        %v1582 = vadd.f32 %v1564, %v1580
        %v1583 = vadd.f32 %v1565, %v1581
        %s1584 = sld [smem:[#allocation6 + $0xc2]]
        %v1585 = vstv %s1584
        %v1586 = vmul.f32 %v1585, %v614
        %v1587 = vmul.f32 %v1585, %v615
        %v1588 = vadd.f32 %v1570, %v1586
        %v1589 = vadd.f32 %v1571, %v1587
        %s1590 = sld [smem:[#allocation6 + $0xf]]
        %v1591 = vstv %s1590
        %v1592 = vmul.f32 %v1591, %v674
        %v1593 = vmul.f32 %v1591, %v675
        %v1594 = vadd.f32 %v1576, %v1592
        %v1595 = vadd.f32 %v1577, %v1593
        %s1596 = sld [smem:[#allocation6 + $0x69]]
        %v1597 = vstv %s1596
        %v1598 = vmul.f32 %v1597, %v674
        %v1599 = vmul.f32 %v1597, %v675
        %v1600 = vadd.f32 %v1582, %v1598
        %v1601 = vadd.f32 %v1583, %v1599
        %s1602 = sld [smem:[#allocation6 + $0xc3]]
        %v1603 = vstv %s1602
        %v1604 = vmul.f32 %v1603, %v674
        %v1605 = vmul.f32 %v1603, %v675
        %v1606 = vadd.f32 %v1588, %v1604
        %v1607 = vadd.f32 %v1589, %v1605
        %s1608 = sld [smem:[#allocation6 + $0x10]]
        %v1609 = vstv %s1608
        %v1610 = vmul.f32 %v1609, %v686
        %v1611 = vmul.f32 %v1609, %v687
        %v1612 = vadd.f32 %v1594, %v1610
        %v1613 = vadd.f32 %v1595, %v1611
        %s1614 = sld [smem:[#allocation6 + $0x6a]]
        %v1615 = vstv %s1614
        %v1616 = vmul.f32 %v1615, %v686
        %v1617 = vmul.f32 %v1615, %v687
        %v1618 = vadd.f32 %v1600, %v1616
        %v1619 = vadd.f32 %v1601, %v1617
        %s1620 = sld [smem:[#allocation6 + $0xc4]]
        %v1621 = vstv %s1620
        %v1622 = vmul.f32 %v1621, %v686
        %v1623 = vmul.f32 %v1621, %v687
        %v1624 = vadd.f32 %v1606, %v1622
        %v1625 = vadd.f32 %v1607, %v1623
        %s1626 = sld [smem:[#allocation6 + $0x11]]
        %v1627 = vstv %s1626
        %v1628 = vmul.f32 %v1627, %v698
        %v1629 = vmul.f32 %v1627, %v699
        %v1630 = vadd.f32 %v1612, %v1628
        %v1631 = vadd.f32 %v1613, %v1629
        %s1632 = sld [smem:[#allocation6 + $0x6b]]
        %v1633 = vstv %s1632
        %v1634 = vmul.f32 %v1633, %v698
        %v1635 = vmul.f32 %v1633, %v699
        %v1636 = vadd.f32 %v1618, %v1634
        %v1637 = vadd.f32 %v1619, %v1635
        %s1638 = sld [smem:[#allocation6 + $0xc5]]
        %v1639 = vstv %s1638
        %v1640 = vmul.f32 %v1639, %v698
        %v1641 = vmul.f32 %v1639, %v699
        %v1642 = vadd.f32 %v1624, %v1640
        %v1643 = vadd.f32 %v1625, %v1641
        %s1644 = sld [smem:[#allocation6 + $0x12]]
        %v1645 = vstv %s1644
        %v1646 = vmul.f32 %v1645, %v740
        %v1647 = vmul.f32 %v1645, %v741
        %v1648 = vadd.f32 %v1630, %v1646
        %v1649 = vadd.f32 %v1631, %v1647
        %s1650 = sld [smem:[#allocation6 + $0x6c]]
        %v1651 = vstv %s1650
        %v1652 = vmul.f32 %v1651, %v740
        %v1653 = vmul.f32 %v1651, %v741
        %v1654 = vadd.f32 %v1636, %v1652
        %v1655 = vadd.f32 %v1637, %v1653
        %s1656 = sld [smem:[#allocation6 + $0xc6]]
        %v1657 = vstv %s1656
        %v1658 = vmul.f32 %v1657, %v740
        %v1659 = vmul.f32 %v1657, %v741
        %v1660 = vadd.f32 %v1642, %v1658
        %v1661 = vadd.f32 %v1643, %v1659
        %s1662 = sld [smem:[#allocation6 + $0x13]]
        %v1663 = vstv %s1662
        %v1664 = vmul.f32 %v1663, %v752
        %v1665 = vmul.f32 %v1663, %v753
        %v1666 = vadd.f32 %v1648, %v1664
        %v1667 = vadd.f32 %v1649, %v1665
        %s1668 = sld [smem:[#allocation6 + $0x6d]]
        %v1669 = vstv %s1668
        %v1670 = vmul.f32 %v1669, %v752
        %v1671 = vmul.f32 %v1669, %v753
        %v1672 = vadd.f32 %v1654, %v1670
        %v1673 = vadd.f32 %v1655, %v1671
        %s1674 = sld [smem:[#allocation6 + $0xc7]]
        %v1675 = vstv %s1674
        %v1676 = vmul.f32 %v1675, %v752
        %v1677 = vmul.f32 %v1675, %v753
        %v1678 = vadd.f32 %v1660, %v1676
        %v1679 = vadd.f32 %v1661, %v1677
        %s1680 = sld [smem:[#allocation6 + $0x14]]
        %v1681 = vstv %s1680
        %v1682 = vmul.f32 %v1681, %v764
        %v1683 = vmul.f32 %v1681, %v765
        %v1684 = vadd.f32 %v1666, %v1682
        %v1685 = vadd.f32 %v1667, %v1683
        %s1686 = sld [smem:[#allocation6 + $0x6e]]
        %v1687 = vstv %s1686
        %v1688 = vmul.f32 %v1687, %v764
        %v1689 = vmul.f32 %v1687, %v765
        %v1690 = vadd.f32 %v1672, %v1688
        %v1691 = vadd.f32 %v1673, %v1689
        %s1692 = sld [smem:[#allocation6 + $0xc8]]
        %v1693 = vstv %s1692
        %v1694 = vmul.f32 %v1693, %v764
        %v1695 = vmul.f32 %v1693, %v765
        %v1696 = vadd.f32 %v1678, %v1694
        %v1697 = vadd.f32 %v1679, %v1695
        %s1698 = sld [smem:[#allocation6 + $0x15]]
        %v1699 = vstv %s1698
        %v1700 = vmul.f32 %v1699, %v726
        %v1701 = vmul.f32 %v1699, %v727
        %v1702 = vadd.f32 %v1684, %v1700
        %v1703 = vadd.f32 %v1685, %v1701
        %s1704 = sld [smem:[#allocation6 + $0x6f]]
        %v1705 = vstv %s1704
        %v1706 = vmul.f32 %v1705, %v726
        %v1707 = vmul.f32 %v1705, %v727
        %v1708 = vadd.f32 %v1690, %v1706
        %v1709 = vadd.f32 %v1691, %v1707
        %s1710 = sld [smem:[#allocation6 + $0xc9]]
        %v1711 = vstv %s1710
        %v1712 = vmul.f32 %v1711, %v726
        %v1713 = vmul.f32 %v1711, %v727
        %v1714 = vadd.f32 %v1696, %v1712
        %v1715 = vadd.f32 %v1697, %v1713
        %s1716 = sld [smem:[#allocation6 + $0x16]]
        %v1717 = vstv %s1716
        %v1718 = vmul.f32 %v1717, %v450
        %v1719 = vmul.f32 %v1717, %v451
        %v1720 = vadd.f32 %v1702, %v1718
        %v1721 = vadd.f32 %v1703, %v1719
        %s1722 = sld [smem:[#allocation6 + $0x70]]
        %v1723 = vstv %s1722
        %v1724 = vmul.f32 %v1723, %v450
        %v1725 = vmul.f32 %v1723, %v451
        %v1726 = vadd.f32 %v1708, %v1724
        %v1727 = vadd.f32 %v1709, %v1725
        %s1728 = sld [smem:[#allocation6 + $0xca]]
        %v1729 = vstv %s1728
        %v1730 = vmul.f32 %v1729, %v450
        %v1731 = vmul.f32 %v1729, %v451
        %v1732 = vadd.f32 %v1714, %v1730
        %v1733 = vadd.f32 %v1715, %v1731
        %s1734 = sld [smem:[#allocation6 + $0x17]]
        %v1735 = vstv %s1734
        %v1736 = vmul.f32 %v1735, %v734
        %v1737 = vmul.f32 %v1735, %v735
        %v1738 = vadd.f32 %v1720, %v1736
        %v1739 = vadd.f32 %v1721, %v1737
        %s1740 = sld [smem:[#allocation6 + $0x71]]
        %v1741 = vstv %s1740
        %v1742 = vmul.f32 %v1741, %v734
        %v1743 = vmul.f32 %v1741, %v735
        %v1744 = vadd.f32 %v1726, %v1742
        %v1745 = vadd.f32 %v1727, %v1743
        %s1746 = sld [smem:[#allocation6 + $0xcb]]
        %v1747 = vstv %s1746
        %v1748 = vmul.f32 %v1747, %v734
        %v1749 = vmul.f32 %v1747, %v735
        %v1750 = vadd.f32 %v1732, %v1748
        %v1751 = vadd.f32 %v1733, %v1749
        %s1752 = sld [smem:[#allocation6 + $0x18]]
        %v1753 = vstv %s1752
        %v1754 = vmul.f32 %v1753, %v794
        %v1755 = vmul.f32 %v1753, %v795
        %v1756 = vadd.f32 %v1738, %v1754
        %v1757 = vadd.f32 %v1739, %v1755
        %s1758 = sld [smem:[#allocation6 + $0x72]]
        %v1759 = vstv %s1758
        %v1760 = vmul.f32 %v1759, %v794
        %v1761 = vmul.f32 %v1759, %v795
        %v1762 = vadd.f32 %v1744, %v1760
        %v1763 = vadd.f32 %v1745, %v1761
        %s1764 = sld [smem:[#allocation6 + $0xcc]]
        %v1765 = vstv %s1764
        %v1766 = vmul.f32 %v1765, %v794
        %v1767 = vmul.f32 %v1765, %v795
        %v1768 = vadd.f32 %v1750, %v1766
        %v1769 = vadd.f32 %v1751, %v1767
        %s1770 = sld [smem:[#allocation6 + $0x19]]
        %v1771 = vstv %s1770
        %v1772 = vmul.f32 %v1771, %v806
        %v1773 = vmul.f32 %v1771, %v807
        %v1774 = vadd.f32 %v1756, %v1772
        %v1775 = vadd.f32 %v1757, %v1773
        %s1776 = sld [smem:[#allocation6 + $0x73]]
        %v1777 = vstv %s1776
        %v1778 = vmul.f32 %v1777, %v806
        %v1779 = vmul.f32 %v1777, %v807
        %v1780 = vadd.f32 %v1762, %v1778
        %v1781 = vadd.f32 %v1763, %v1779
        %s1782 = sld [smem:[#allocation6 + $0xcd]]
        %v1783 = vstv %s1782
        %v1784 = vmul.f32 %v1783, %v806
        %v1785 = vmul.f32 %v1783, %v807
        %v1786 = vadd.f32 %v1768, %v1784
        %v1787 = vadd.f32 %v1769, %v1785
        %s1788 = sld [smem:[#allocation6 + $0x1a]]
        %v1789 = vstv %s1788
        %v1790 = vmul.f32 %v1789, %v818
        %v1791 = vmul.f32 %v1789, %v819
        %v1792 = vadd.f32 %v1774, %v1790
        %v1793 = vadd.f32 %v1775, %v1791
        %s1794 = sld [smem:[#allocation6 + $0x74]]
        %v1795 = vstv %s1794
        %v1796 = vmul.f32 %v1795, %v818
        %v1797 = vmul.f32 %v1795, %v819
        %v1798 = vadd.f32 %v1780, %v1796
        %v1799 = vadd.f32 %v1781, %v1797
        %s1800 = sld [smem:[#allocation6 + $0xce]]
        %v1801 = vstv %s1800
        %v1802 = vmul.f32 %v1801, %v818
        %v1803 = vmul.f32 %v1801, %v819
        %v1804 = vadd.f32 %v1786, %v1802
        %v1805 = vadd.f32 %v1787, %v1803
        %s1806 = sld [smem:[#allocation6 + $0x1b]]
        %v1807 = vstv %s1806
        %v1808 = vmul.f32 %v1807, %v860
        %v1809 = vmul.f32 %v1807, %v861
        %v1810 = vadd.f32 %v1792, %v1808
        %v1811 = vadd.f32 %v1793, %v1809
        %s1812 = sld [smem:[#allocation6 + $0x75]]
        %v1813 = vstv %s1812
        %v1814 = vmul.f32 %v1813, %v860
        %v1815 = vmul.f32 %v1813, %v861
        %v1816 = vadd.f32 %v1798, %v1814
        %v1817 = vadd.f32 %v1799, %v1815
        %s1818 = sld [smem:[#allocation6 + $0xcf]]
        %v1819 = vstv %s1818
        %v1820 = vmul.f32 %v1819, %v860
        %v1821 = vmul.f32 %v1819, %v861
        %v1822 = vadd.f32 %v1804, %v1820
        %v1823 = vadd.f32 %v1805, %v1821
        %s1824 = sld [smem:[#allocation6 + $0x1c]]
        %v1825 = vstv %s1824
        %v1826 = vmul.f32 %v1825, %v872
        %v1827 = vmul.f32 %v1825, %v873
        %v1828 = vadd.f32 %v1810, %v1826
        %v1829 = vadd.f32 %v1811, %v1827
        %s1830 = sld [smem:[#allocation6 + $0x76]]
        %v1831 = vstv %s1830
        %v1832 = vmul.f32 %v1831, %v872
        %v1833 = vmul.f32 %v1831, %v873
        %v1834 = vadd.f32 %v1816, %v1832
        %v1835 = vadd.f32 %v1817, %v1833
        %s1836 = sld [smem:[#allocation6 + $0xd0]]
        %v1837 = vstv %s1836
        %v1838 = vmul.f32 %v1837, %v872
        %v1839 = vmul.f32 %v1837, %v873
        %v1840 = vadd.f32 %v1822, %v1838
        %v1841 = vadd.f32 %v1823, %v1839
        %s1842 = sld [smem:[#allocation6 + $0x1d]]
        %v1843 = vstv %s1842
        %v1844 = vmul.f32 %v1843, %v884
        %v1845 = vmul.f32 %v1843, %v885
        %v1846 = vadd.f32 %v1828, %v1844
        %v1847 = vadd.f32 %v1829, %v1845
        %s1848 = sld [smem:[#allocation6 + $0x77]]
        %v1849 = vstv %s1848
        %v1850 = vmul.f32 %v1849, %v884
        %v1851 = vmul.f32 %v1849, %v885
        %v1852 = vadd.f32 %v1834, %v1850
        %v1853 = vadd.f32 %v1835, %v1851
        %s1854 = sld [smem:[#allocation6 + $0xd1]]
        %v1855 = vstv %s1854
        %v1856 = vmul.f32 %v1855, %v884
        %v1857 = vmul.f32 %v1855, %v885
        %v1858 = vadd.f32 %v1840, %v1856
        %v1859 = vadd.f32 %v1841, %v1857
        %s1860 = sld [smem:[#allocation6 + $0x1e]]
        %v1861 = vstv %s1860
        %v1862 = vmul.f32 %v1861, %v846
        %v1863 = vmul.f32 %v1861, %v847
        %v1864 = vadd.f32 %v1846, %v1862
        %v1865 = vadd.f32 %v1847, %v1863
        %s1866 = sld [smem:[#allocation6 + $0x78]]
        %v1867 = vstv %s1866
        %v1868 = vmul.f32 %v1867, %v846
        %v1869 = vmul.f32 %v1867, %v847
        %v1870 = vadd.f32 %v1852, %v1868
        %v1871 = vadd.f32 %v1853, %v1869
        %s1872 = sld [smem:[#allocation6 + $0xd2]]
        %v1873 = vstv %s1872
        %v1874 = vmul.f32 %v1873, %v846
        %v1875 = vmul.f32 %v1873, %v847
        %v1876 = vadd.f32 %v1858, %v1874
        %v1877 = vadd.f32 %v1859, %v1875
        %s1878 = sld [smem:[#allocation6 + $0x1f]]
        %v1879 = vstv %s1878
        %v1880 = vmul.f32 %v1879, %v452
        %v1881 = vmul.f32 %v1879, %v453
        %v1882 = vadd.f32 %v1864, %v1880
        %v1883 = vadd.f32 %v1865, %v1881
        %s1884 = sld [smem:[#allocation6 + $0x79]]
        %v1885 = vstv %s1884
        %v1886 = vmul.f32 %v1885, %v452
        %v1887 = vmul.f32 %v1885, %v453
        %v1888 = vadd.f32 %v1870, %v1886
        %v1889 = vadd.f32 %v1871, %v1887
        %s1890 = sld [smem:[#allocation6 + $0xd3]]
        %v1891 = vstv %s1890
        %v1892 = vmul.f32 %v1891, %v452
        %v1893 = vmul.f32 %v1891, %v453
        %v1894 = vadd.f32 %v1876, %v1892
        %v1895 = vadd.f32 %v1877, %v1893
        %s1896 = sld [smem:[#allocation6 + $0x20]]
        %v1897 = vstv %s1896
        %v1898 = vmul.f32 %v1897, %v854
        %v1899 = vmul.f32 %v1897, %v855
        %v1900 = vadd.f32 %v1882, %v1898
        %v1901 = vadd.f32 %v1883, %v1899
        %s1902 = sld [smem:[#allocation6 + $0x7a]]
        %v1903 = vstv %s1902
        %v1904 = vmul.f32 %v1903, %v854
        %v1905 = vmul.f32 %v1903, %v855
        %v1906 = vadd.f32 %v1888, %v1904
        %v1907 = vadd.f32 %v1889, %v1905
        %s1908 = sld [smem:[#allocation6 + $0xd4]]
        %v1909 = vstv %s1908
        %v1910 = vmul.f32 %v1909, %v854
        %v1911 = vmul.f32 %v1909, %v855
        %v1912 = vadd.f32 %v1894, %v1910
        %v1913 = vadd.f32 %v1895, %v1911
        %s1914 = sld [smem:[#allocation6 + $0x21]]
        %v1915 = vstv %s1914
        %v1916 = vmul.f32 %v1915, %v914
        %v1917 = vmul.f32 %v1915, %v915
        %v1918 = vadd.f32 %v1900, %v1916
        %v1919 = vadd.f32 %v1901, %v1917
        %s1920 = sld [smem:[#allocation6 + $0x7b]]
        %v1921 = vstv %s1920
        %v1922 = vmul.f32 %v1921, %v914
        %v1923 = vmul.f32 %v1921, %v915
        %v1924 = vadd.f32 %v1906, %v1922
        %v1925 = vadd.f32 %v1907, %v1923
        %s1926 = sld [smem:[#allocation6 + $0xd5]]
        %v1927 = vstv %s1926
        %v1928 = vmul.f32 %v1927, %v914
        %v1929 = vmul.f32 %v1927, %v915
        %v1930 = vadd.f32 %v1912, %v1928
        %v1931 = vadd.f32 %v1913, %v1929
        %s1932 = sld [smem:[#allocation6 + $0x22]]
        %v1933 = vstv %s1932
        %v1934 = vmul.f32 %v1933, %v926
        %v1935 = vmul.f32 %v1933, %v927
        %v1936 = vadd.f32 %v1918, %v1934
        %v1937 = vadd.f32 %v1919, %v1935
        %s1938 = sld [smem:[#allocation6 + $0x7c]]
        %v1939 = vstv %s1938
        %v1940 = vmul.f32 %v1939, %v926
        %v1941 = vmul.f32 %v1939, %v927
        %v1942 = vadd.f32 %v1924, %v1940
        %v1943 = vadd.f32 %v1925, %v1941
        %s1944 = sld [smem:[#allocation6 + $0xd6]]
        %v1945 = vstv %s1944
        %v1946 = vmul.f32 %v1945, %v926
        %v1947 = vmul.f32 %v1945, %v927
        %v1948 = vadd.f32 %v1930, %v1946
        %v1949 = vadd.f32 %v1931, %v1947
        %s1950 = sld [smem:[#allocation6 + $0x23]]
        %v1951 = vstv %s1950
        %v1952 = vmul.f32 %v1951, %v938
        %v1953 = vmul.f32 %v1951, %v939
        %v1954 = vadd.f32 %v1936, %v1952
        %v1955 = vadd.f32 %v1937, %v1953
        %s1956 = sld [smem:[#allocation6 + $0x7d]]
        %v1957 = vstv %s1956
        %v1958 = vmul.f32 %v1957, %v938
        %v1959 = vmul.f32 %v1957, %v939
        %v1960 = vadd.f32 %v1942, %v1958
        %v1961 = vadd.f32 %v1943, %v1959
        %s1962 = sld [smem:[#allocation6 + $0xd7]]
        %v1963 = vstv %s1962
        %v1964 = vmul.f32 %v1963, %v938
        %v1965 = vmul.f32 %v1963, %v939
        %v1966 = vadd.f32 %v1948, %v1964
        %v1967 = vadd.f32 %v1949, %v1965
        %s1968 = sld [smem:[#allocation6 + $0x24]]
        %v1969 = vstv %s1968
        %v1970 = vmul.f32 %v1969, %v980
        %v1971 = vmul.f32 %v1969, %v981
        %v1972 = vadd.f32 %v1954, %v1970
        %v1973 = vadd.f32 %v1955, %v1971
        %s1974 = sld [smem:[#allocation6 + $0x7e]]
        %v1975 = vstv %s1974
        %v1976 = vmul.f32 %v1975, %v980
        %v1977 = vmul.f32 %v1975, %v981
        %v1978 = vadd.f32 %v1960, %v1976
        %v1979 = vadd.f32 %v1961, %v1977
        %s1980 = sld [smem:[#allocation6 + $0xd8]]
        %v1981 = vstv %s1980
        %v1982 = vmul.f32 %v1981, %v980
        %v1983 = vmul.f32 %v1981, %v981
        %v1984 = vadd.f32 %v1966, %v1982
        %v1985 = vadd.f32 %v1967, %v1983
        %s1986 = sld [smem:[#allocation6 + $0x25]]
        %v1987 = vstv %s1986
        %v1988 = vmul.f32 %v1987, %v992
        %v1989 = vmul.f32 %v1987, %v993
        %v1990 = vadd.f32 %v1972, %v1988
        %v1991 = vadd.f32 %v1973, %v1989
        %s1992 = sld [smem:[#allocation6 + $0x7f]]
        %v1993 = vstv %s1992
        %v1994 = vmul.f32 %v1993, %v992
        %v1995 = vmul.f32 %v1993, %v993
        %v1996 = vadd.f32 %v1978, %v1994
        %v1997 = vadd.f32 %v1979, %v1995
        %s1998 = sld [smem:[#allocation6 + $0xd9]]
        %v1999 = vstv %s1998
        %v2000 = vmul.f32 %v1999, %v992
        %v2001 = vmul.f32 %v1999, %v993
        %v2002 = vadd.f32 %v1984, %v2000
        %v2003 = vadd.f32 %v1985, %v2001
        %s2004 = sld [smem:[#allocation6 + $0x26]]
        %v2005 = vstv %s2004
        %v2006 = vmul.f32 %v2005, %v1004
        %v2007 = vmul.f32 %v2005, %v1005
        %v2008 = vadd.f32 %v1990, %v2006
        %v2009 = vadd.f32 %v1991, %v2007
        %s2010 = sld [smem:[#allocation6 + $0x80]]
        %v2011 = vstv %s2010
        %v2012 = vmul.f32 %v2011, %v1004
        %v2013 = vmul.f32 %v2011, %v1005
        %v2014 = vadd.f32 %v1996, %v2012
        %v2015 = vadd.f32 %v1997, %v2013
        %s2016 = sld [smem:[#allocation6 + $0xda]]
        %v2017 = vstv %s2016
        %v2018 = vmul.f32 %v2017, %v1004
        %v2019 = vmul.f32 %v2017, %v1005
        %v2020 = vadd.f32 %v2002, %v2018
        %v2021 = vadd.f32 %v2003, %v2019
        %s2022 = sld [smem:[#allocation6 + $0x27]]
        %v2023 = vstv %s2022
        %v2024 = vmul.f32 %v2023, %v966
        %v2025 = vmul.f32 %v2023, %v967
        %v2026 = vadd.f32 %v2008, %v2024
        %v2027 = vadd.f32 %v2009, %v2025
        %s2028 = sld [smem:[#allocation6 + $0x81]]
        %v2029 = vstv %s2028
        %v2030 = vmul.f32 %v2029, %v966
        %v2031 = vmul.f32 %v2029, %v967
        %v2032 = vadd.f32 %v2014, %v2030
        %v2033 = vadd.f32 %v2015, %v2031
        %s2034 = sld [smem:[#allocation6 + $0xdb]]
        %v2035 = vstv %s2034
        %v2036 = vmul.f32 %v2035, %v966
        %v2037 = vmul.f32 %v2035, %v967
        %v2038 = vadd.f32 %v2020, %v2036
        %v2039 = vadd.f32 %v2021, %v2037
        %s2040 = sld [smem:[#allocation6 + $0x28]]
        %v2041 = vstv %s2040
        %v2042 = vmul.f32 %v2041, %v455
        %v2043 = vmul.f32 %v2041, %v456
        %v2044 = vadd.f32 %v2026, %v2042
        %v2045 = vadd.f32 %v2027, %v2043
        %s2046 = sld [smem:[#allocation6 + $0x82]]
        %v2047 = vstv %s2046
        %v2048 = vmul.f32 %v2047, %v455
        %v2049 = vmul.f32 %v2047, %v456
        %v2050 = vadd.f32 %v2032, %v2048
        %v2051 = vadd.f32 %v2033, %v2049
        %s2052 = sld [smem:[#allocation6 + $0xdc]]
        %v2053 = vstv %s2052
        %v2054 = vmul.f32 %v2053, %v455
        %v2055 = vmul.f32 %v2053, %v456
        %v2056 = vadd.f32 %v2038, %v2054
        %v2057 = vadd.f32 %v2039, %v2055
        %s2058 = sld [smem:[#allocation6 + $0x29]]
        %v2059 = vstv %s2058
        %v2060 = vmul.f32 %v2059, %v974
        %v2061 = vmul.f32 %v2059, %v975
        %v2062 = vadd.f32 %v2044, %v2060
        %v2063 = vadd.f32 %v2045, %v2061
        %s2064 = sld [smem:[#allocation6 + $0x83]]
        %v2065 = vstv %s2064
        %v2066 = vmul.f32 %v2065, %v974
        %v2067 = vmul.f32 %v2065, %v975
        %v2068 = vadd.f32 %v2050, %v2066
        %v2069 = vadd.f32 %v2051, %v2067
        %s2070 = sld [smem:[#allocation6 + $0xdd]]
        %v2071 = vstv %s2070
        %v2072 = vmul.f32 %v2071, %v974
        %v2073 = vmul.f32 %v2071, %v975
        %v2074 = vadd.f32 %v2056, %v2072
        %v2075 = vadd.f32 %v2057, %v2073
        %s2076 = sld [smem:[#allocation6 + $0x2a]]
        %v2077 = vstv %s2076
        %v2078 = vmul.f32 %v2077, %v1034
        %v2079 = vmul.f32 %v2077, %v1035
        %v2080 = vadd.f32 %v2062, %v2078
        %v2081 = vadd.f32 %v2063, %v2079
        %s2082 = sld [smem:[#allocation6 + $0x84]]
        %v2083 = vstv %s2082
        %v2084 = vmul.f32 %v2083, %v1034
        %v2085 = vmul.f32 %v2083, %v1035
        %v2086 = vadd.f32 %v2068, %v2084
        %v2087 = vadd.f32 %v2069, %v2085
        %s2088 = sld [smem:[#allocation6 + $0xde]]
        %v2089 = vstv %s2088
        %v2090 = vmul.f32 %v2089, %v1034
        %v2091 = vmul.f32 %v2089, %v1035
        %v2092 = vadd.f32 %v2074, %v2090
        %v2093 = vadd.f32 %v2075, %v2091
        %s2094 = sld [smem:[#allocation6 + $0x2b]]
        %v2095 = vstv %s2094
        %v2096 = vmul.f32 %v2095, %v1046
        %v2097 = vmul.f32 %v2095, %v1047
        %v2098 = vadd.f32 %v2080, %v2096
        %v2099 = vadd.f32 %v2081, %v2097
        %s2100 = sld [smem:[#allocation6 + $0x85]]
        %v2101 = vstv %s2100
        %v2102 = vmul.f32 %v2101, %v1046
        %v2103 = vmul.f32 %v2101, %v1047
        %v2104 = vadd.f32 %v2086, %v2102
        %v2105 = vadd.f32 %v2087, %v2103
        %s2106 = sld [smem:[#allocation6 + $0xdf]]
        %v2107 = vstv %s2106
        %v2108 = vmul.f32 %v2107, %v1046
        %v2109 = vmul.f32 %v2107, %v1047
        %v2110 = vadd.f32 %v2092, %v2108
        %v2111 = vadd.f32 %v2093, %v2109
        %s2112 = sld [smem:[#allocation6 + $0x2c]]
        %v2113 = vstv %s2112
        %v2114 = vmul.f32 %v2113, %v1058
        %v2115 = vmul.f32 %v2113, %v1059
        %v2116 = vadd.f32 %v2098, %v2114
        %v2117 = vadd.f32 %v2099, %v2115
        %s2118 = sld [smem:[#allocation6 + $0x86]]
        %v2119 = vstv %s2118
        %v2120 = vmul.f32 %v2119, %v1058
        %v2121 = vmul.f32 %v2119, %v1059
        %v2122 = vadd.f32 %v2104, %v2120
        %v2123 = vadd.f32 %v2105, %v2121
        %s2124 = sld [smem:[#allocation6 + $0xe0]]
        %v2125 = vstv %s2124
        %v2126 = vmul.f32 %v2125, %v1058
        %v2127 = vmul.f32 %v2125, %v1059
        %v2128 = vadd.f32 %v2110, %v2126
        %v2129 = vadd.f32 %v2111, %v2127
        %s2130 = sld [smem:[#allocation6 + $0x2d]]
        %v2131 = vstv %s2130
        %v2132 = vmul.f32 %v2131, %v1100
        %v2133 = vmul.f32 %v2131, %v1101
        %v2134 = vadd.f32 %v2116, %v2132
        %v2135 = vadd.f32 %v2117, %v2133
        %s2136 = sld [smem:[#allocation6 + $0x87]]
        %v2137 = vstv %s2136
        %v2138 = vmul.f32 %v2137, %v1100
        %v2139 = vmul.f32 %v2137, %v1101
        %v2140 = vadd.f32 %v2122, %v2138
        %v2141 = vadd.f32 %v2123, %v2139
        %s2142 = sld [smem:[#allocation6 + $0xe1]]
        %v2143 = vstv %s2142
        %v2144 = vmul.f32 %v2143, %v1100
        %v2145 = vmul.f32 %v2143, %v1101
        %v2146 = vadd.f32 %v2128, %v2144
        %v2147 = vadd.f32 %v2129, %v2145
        %s2148 = sld [smem:[#allocation6 + $0x2e]]
        %v2149 = vstv %s2148
        %v2150 = vmul.f32 %v2149, %v1112
        %v2151 = vmul.f32 %v2149, %v1113
        %v2152 = vadd.f32 %v2134, %v2150
        %v2153 = vadd.f32 %v2135, %v2151
        %s2154 = sld [smem:[#allocation6 + $0x88]]
        %v2155 = vstv %s2154
        %v2156 = vmul.f32 %v2155, %v1112
        %v2157 = vmul.f32 %v2155, %v1113
        %v2158 = vadd.f32 %v2140, %v2156
        %v2159 = vadd.f32 %v2141, %v2157
        %s2160 = sld [smem:[#allocation6 + $0xe2]]
        %v2161 = vstv %s2160
        %v2162 = vmul.f32 %v2161, %v1112
        %v2163 = vmul.f32 %v2161, %v1113
        %v2164 = vadd.f32 %v2146, %v2162
        %v2165 = vadd.f32 %v2147, %v2163
        %s2166 = sld [smem:[#allocation6 + $0x2f]]
        %v2167 = vstv %s2166
        %v2168 = vmul.f32 %v2167, %v1124
        %v2169 = vmul.f32 %v2167, %v1125
        %v2170 = vadd.f32 %v2152, %v2168
        %v2171 = vadd.f32 %v2153, %v2169
        %s2172 = sld [smem:[#allocation6 + $0x89]]
        %v2173 = vstv %s2172
        %v2174 = vmul.f32 %v2173, %v1124
        %v2175 = vmul.f32 %v2173, %v1125
        %v2176 = vadd.f32 %v2158, %v2174
        %v2177 = vadd.f32 %v2159, %v2175
        %s2178 = sld [smem:[#allocation6 + $0xe3]]
        %v2179 = vstv %s2178
        %v2180 = vmul.f32 %v2179, %v1124
        %v2181 = vmul.f32 %v2179, %v1125
        %v2182 = vadd.f32 %v2164, %v2180
        %v2183 = vadd.f32 %v2165, %v2181
        %s2184 = sld [smem:[#allocation6 + $0x30]]
        %v2185 = vstv %s2184
        %v2186 = vmul.f32 %v2185, %v1086
        %v2187 = vmul.f32 %v2185, %v1087
        %v2188 = vadd.f32 %v2170, %v2186
        %v2189 = vadd.f32 %v2171, %v2187
        %s2190 = sld [smem:[#allocation6 + $0x8a]]
        %v2191 = vstv %s2190
        %v2192 = vmul.f32 %v2191, %v1086
        %v2193 = vmul.f32 %v2191, %v1087
        %v2194 = vadd.f32 %v2176, %v2192
        %v2195 = vadd.f32 %v2177, %v2193
        %s2196 = sld [smem:[#allocation6 + $0xe4]]
        %v2197 = vstv %s2196
        %v2198 = vmul.f32 %v2197, %v1086
        %v2199 = vmul.f32 %v2197, %v1087
        %v2200 = vadd.f32 %v2182, %v2198
        %v2201 = vadd.f32 %v2183, %v2199
        %s2202 = sld [smem:[#allocation6 + $0x31]]
        %v2203 = vstv %s2202
        %v2204 = vmul.f32 %v2203, %v458
        %v2205 = vmul.f32 %v2203, %v459
        %v2206 = vadd.f32 %v2188, %v2204
        %v2207 = vadd.f32 %v2189, %v2205
        %s2208 = sld [smem:[#allocation6 + $0x8b]]
        %v2209 = vstv %s2208
        %v2210 = vmul.f32 %v2209, %v458
        %v2211 = vmul.f32 %v2209, %v459
        %v2212 = vadd.f32 %v2194, %v2210
        %v2213 = vadd.f32 %v2195, %v2211
        %s2214 = sld [smem:[#allocation6 + $0xe5]]
        %v2215 = vstv %s2214
        %v2216 = vmul.f32 %v2215, %v458
        %v2217 = vmul.f32 %v2215, %v459
        %v2218 = vadd.f32 %v2200, %v2216
        %v2219 = vadd.f32 %v2201, %v2217
        %s2220 = sld [smem:[#allocation6 + $0x32]]
        %v2221 = vstv %s2220
        %v2222 = vmul.f32 %v2221, %v1094
        %v2223 = vmul.f32 %v2221, %v1095
        %v2224 = vadd.f32 %v2206, %v2222
        %v2225 = vadd.f32 %v2207, %v2223
        %s2226 = sld [smem:[#allocation6 + $0x8c]]
        %v2227 = vstv %s2226
        %v2228 = vmul.f32 %v2227, %v1094
        %v2229 = vmul.f32 %v2227, %v1095
        %v2230 = vadd.f32 %v2212, %v2228
        %v2231 = vadd.f32 %v2213, %v2229
        %s2232 = sld [smem:[#allocation6 + $0xe6]]
        %v2233 = vstv %s2232
        %v2234 = vmul.f32 %v2233, %v1094
        %v2235 = vmul.f32 %v2233, %v1095
        %v2236 = vadd.f32 %v2218, %v2234
        %v2237 = vadd.f32 %v2219, %v2235
        %s2238 = sld [smem:[#allocation6 + $0x33]]
        %v2239 = vstv %s2238
        %v2240 = vmul.f32 %v2239, %v1154
        %v2241 = vmul.f32 %v2239, %v1155
        %v2242 = vadd.f32 %v2224, %v2240
        %v2243 = vadd.f32 %v2225, %v2241
        %s2244 = sld [smem:[#allocation6 + $0x8d]]
        %v2245 = vstv %s2244
        %v2246 = vmul.f32 %v2245, %v1154
        %v2247 = vmul.f32 %v2245, %v1155
        %v2248 = vadd.f32 %v2230, %v2246
        %v2249 = vadd.f32 %v2231, %v2247
        %s2250 = sld [smem:[#allocation6 + $0xe7]]
        %v2251 = vstv %s2250
        %v2252 = vmul.f32 %v2251, %v1154
        %v2253 = vmul.f32 %v2251, %v1155
        %v2254 = vadd.f32 %v2236, %v2252
        %v2255 = vadd.f32 %v2237, %v2253
        %s2256 = sld [smem:[#allocation6 + $0x34]]
        %v2257 = vstv %s2256
        %v2258 = vmul.f32 %v2257, %v1166
        %v2259 = vmul.f32 %v2257, %v1167
        %v2260 = vadd.f32 %v2242, %v2258
        %v2261 = vadd.f32 %v2243, %v2259
        %s2262 = sld [smem:[#allocation6 + $0x8e]]
        %v2263 = vstv %s2262
        %v2264 = vmul.f32 %v2263, %v1166
        %v2265 = vmul.f32 %v2263, %v1167
        %v2266 = vadd.f32 %v2248, %v2264
        %v2267 = vadd.f32 %v2249, %v2265
        %s2268 = sld [smem:[#allocation6 + $0xe8]]
        %v2269 = vstv %s2268
        %v2270 = vmul.f32 %v2269, %v1166
        %v2271 = vmul.f32 %v2269, %v1167
        %v2272 = vadd.f32 %v2254, %v2270
        %v2273 = vadd.f32 %v2255, %v2271
        %s2274 = sld [smem:[#allocation6 + $0x35]]
        %v2275 = vstv %s2274
        %v2276 = vmul.f32 %v2275, %v1178
        %v2277 = vmul.f32 %v2275, %v1179
        %v2278 = vadd.f32 %v2260, %v2276
        %v2279 = vadd.f32 %v2261, %v2277
        %s2280 = sld [smem:[#allocation6 + $0x8f]]
        %v2281 = vstv %s2280
        %v2282 = vmul.f32 %v2281, %v1178
        %v2283 = vmul.f32 %v2281, %v1179
        %v2284 = vadd.f32 %v2266, %v2282
        %v2285 = vadd.f32 %v2267, %v2283
        %s2286 = sld [smem:[#allocation6 + $0xe9]]
        %v2287 = vstv %s2286
        %v2288 = vmul.f32 %v2287, %v1178
        %v2289 = vmul.f32 %v2287, %v1179
        %v2290 = vadd.f32 %v2272, %v2288
        %v2291 = vadd.f32 %v2273, %v2289
        %2292 = vrot.lane.b32.xlu0 %v1267, 16
        %v2293 = vpop.permute.xlu0 %2292
        %v2294 = vsel %vm463, %v2293, %v1267
        %2295 = vrot.lane.b32.xlu0 %v1268, 16
        %v2296 = vpop.permute.xlu0 %2295
        %v2297 = vsel %vm463, %v2296, %v1268
        %2298 = vrot.lane.b32.xlu0 %v2294, 16
        %v2299 = vpop.permute.xlu0 %2298
        %2300 = vrot.lane.b32.xlu0 %v2297, 16
        %v2301 = vpop.permute.xlu0 %2300
        %v2302 = vsel %vm463, %v2299, %v1267
        %v2303 = vsel %vm463, %v2301, %v1268
        %2306 = vrot.lane.b32.xlu0 %v2302, 113
        %v2307 = vpop.permute.xlu0 %2306
        %2308 = vrot.lane.b32.xlu0 %v2303, 113
        %v2309 = vpop.permute.xlu0 %2308
        %v2312 = vsel %vm439, %v2307, 0.0
        %v2313 = vsel %vm439, %v2309, 0.0
        %2314 = vrot.lane.b32.xlu0 %v2302, 127
        %v2315 = vpop.permute.xlu0 %2314
        %2316 = vrot.lane.b32.xlu0 %v2303, 127
        %v2317 = vpop.permute.xlu0 %2316
        %v2320 = vsel %vm438, %v2315, 0.0
        %v2321 = vsel %vm438, %v2317, 0.0
        %v2322 = vrot.slane %v2312, 7
        %v2323 = vrot.slane %v2313, 7
        %v2324 = vsel %vm496, %v2322, %v2323
        %v2325 = vsel %vm496, %v2323, %v2322
        %v2326 = vsel %vm442, %v2325, 0.0
        %v2327 = vsel %vm443, %v2324, 0.0
        %s2328 = sld [smem:[#allocation6 + $0x36]]
        %v2329 = vstv %s2328
        %v2330 = vmul.f32 %v2329, %v2326
        %v2331 = vmul.f32 %v2329, %v2327
        %v2332 = vadd.f32 %v2278, %v2330
        %v2333 = vadd.f32 %v2279, %v2331
        %s2334 = sld [smem:[#allocation6 + $0x90]]
        %v2335 = vstv %s2334
        %v2336 = vmul.f32 %v2335, %v2326
        %v2337 = vmul.f32 %v2335, %v2327
        %v2338 = vadd.f32 %v2284, %v2336
        %v2339 = vadd.f32 %v2285, %v2337
        %s2340 = sld [smem:[#allocation6 + $0xea]]
        %v2341 = vstv %s2340
        %v2342 = vmul.f32 %v2341, %v2326
        %v2343 = vmul.f32 %v2341, %v2327
        %v2344 = vadd.f32 %v2290, %v2342
        %v2345 = vadd.f32 %v2291, %v2343
        %v2346 = vrot.slane %v1267, 7
        %v2347 = vrot.slane %v1268, 7
        %v2348 = vsel %vm496, %v2346, %v2347
        %v2349 = vsel %vm496, %v2347, %v2346
        %v2350 = vsel %vm442, %v2349, 0.0
        %v2351 = vsel %vm443, %v2348, 0.0
        %s2352 = sld [smem:[#allocation6 + $0x37]]
        %v2353 = vstv %s2352
        %v2354 = vmul.f32 %v2353, %v2350
        %v2355 = vmul.f32 %v2353, %v2351
        %v2356 = vadd.f32 %v2332, %v2354
        %v2357 = vadd.f32 %v2333, %v2355
        %s2358 = sld [smem:[#allocation6 + $0x91]]
        %v2359 = vstv %s2358
        %v2360 = vmul.f32 %v2359, %v2350
        %v2361 = vmul.f32 %v2359, %v2351
        %v2362 = vadd.f32 %v2338, %v2360
        %v2363 = vadd.f32 %v2339, %v2361
        %s2364 = sld [smem:[#allocation6 + $0xeb]]
        %v2365 = vstv %s2364
        %v2366 = vmul.f32 %v2365, %v2350
        %v2367 = vmul.f32 %v2365, %v2351
        %v2368 = vadd.f32 %v2344, %v2366
        %v2369 = vadd.f32 %v2345, %v2367
        %v2370 = vrot.slane %v2320, 7
        %v2371 = vrot.slane %v2321, 7
        %v2372 = vsel %vm496, %v2370, %v2371
        %v2373 = vsel %vm496, %v2371, %v2370
        %v2374 = vsel %vm442, %v2373, 0.0
        %v2375 = vsel %vm443, %v2372, 0.0
        %s2376 = sld [smem:[#allocation6 + $0x38]]
        %v2377 = vstv %s2376
        %v2378 = vmul.f32 %v2377, %v2374
        %v2379 = vmul.f32 %v2377, %v2375
        %v2380 = vadd.f32 %v2356, %v2378
        %v2381 = vadd.f32 %v2357, %v2379
        %s2382 = sld [smem:[#allocation6 + $0x92]]
        %v2383 = vstv %s2382
        %v2384 = vmul.f32 %v2383, %v2374
        %v2385 = vmul.f32 %v2383, %v2375
        %v2386 = vadd.f32 %v2362, %v2384
        %v2387 = vadd.f32 %v2363, %v2385
        %s2388 = sld [smem:[#allocation6 + $0xec]]
        %v2389 = vstv %s2388
        %v2390 = vmul.f32 %v2389, %v2374
        %v2391 = vmul.f32 %v2389, %v2375
        %v2392 = vadd.f32 %v2368, %v2390
        %v2393 = vadd.f32 %v2369, %v2391
        %s2394 = sld [smem:[#allocation6 + $0x39]]
        %v2395 = vstv %s2394
        %v2396 = vmul.f32 %v2395, %v2312
        %v2397 = vmul.f32 %v2395, %v2313
        %v2398 = vadd.f32 %v2380, %v2396
        %v2399 = vadd.f32 %v2381, %v2397
        %s2400 = sld [smem:[#allocation6 + $0x93]]
        %v2401 = vstv %s2400
        %v2402 = vmul.f32 %v2401, %v2312
        %v2403 = vmul.f32 %v2401, %v2313
        %v2404 = vadd.f32 %v2386, %v2402
        %v2405 = vadd.f32 %v2387, %v2403
        %s2406 = sld [smem:[#allocation6 + $0xed]]
        %v2407 = vstv %s2406
        %v2408 = vmul.f32 %v2407, %v2312
        %v2409 = vmul.f32 %v2407, %v2313
        %v2410 = vadd.f32 %v2392, %v2408
        %v2411 = vadd.f32 %v2393, %v2409
        %s2412 = sld [smem:[#allocation6 + $0x3a]]
        %v2413 = vstv %s2412
        %v2414 = vmul.f32 %v2413, %v1267
        %v2415 = vmul.f32 %v2413, %v1268
        %v2416 = vadd.f32 %v2398, %v2414
        %v2417 = vadd.f32 %v2399, %v2415
        %s2418 = sld [smem:[#allocation6 + $0x94]]
        %v2419 = vstv %s2418
        %v2420 = vmul.f32 %v2419, %v1267
        %v2421 = vmul.f32 %v2419, %v1268
        %v2422 = vadd.f32 %v2404, %v2420
        %v2423 = vadd.f32 %v2405, %v2421
        %s2424 = sld [smem:[#allocation6 + $0xee]]
        %v2425 = vstv %s2424
        %v2426 = vmul.f32 %v2425, %v1267
        %v2427 = vmul.f32 %v2425, %v1268
        %v2428 = vadd.f32 %v2410, %v2426
        %v2429 = vadd.f32 %v2411, %v2427
        %s2430 = sld [smem:[#allocation6 + $0x3b]]
        %v2431 = vstv %s2430
        %v2432 = vmul.f32 %v2431, %v2320
        %v2433 = vmul.f32 %v2431, %v2321
        %v2434 = vadd.f32 %v2416, %v2432
        %v2435 = vadd.f32 %v2417, %v2433
        %s2436 = sld [smem:[#allocation6 + $0x95]]
        %v2437 = vstv %s2436
        %v2438 = vmul.f32 %v2437, %v2320
        %v2439 = vmul.f32 %v2437, %v2321
        %v2440 = vadd.f32 %v2422, %v2438
        %v2441 = vadd.f32 %v2423, %v2439
        %s2442 = sld [smem:[#allocation6 + $0xef]]
        %v2443 = vstv %s2442
        %v2444 = vmul.f32 %v2443, %v2320
        %v2445 = vmul.f32 %v2443, %v2321
        %v2446 = vadd.f32 %v2428, %v2444
        %v2447 = vadd.f32 %v2429, %v2445
        %v2448 = vrot.slane %v2312, 1
        %v2449 = vrot.slane %v2313, 1
        %v2450 = vsel %vm551, %v2448, %v2449
        %v2451 = vsel %vm551, %v2449, %v2448
        %v2452 = vsel %vm440, %v2450, 0.0
        %v2453 = vsel %vm441, %v2451, 0.0
        %s2454 = sld [smem:[#allocation6 + $0x3c]]
        %v2455 = vstv %s2454
        %v2456 = vmul.f32 %v2455, %v2452
        %v2457 = vmul.f32 %v2455, %v2453
        %v2458 = vadd.f32 %v2434, %v2456
        %v2459 = vadd.f32 %v2435, %v2457
        %s2460 = sld [smem:[#allocation6 + $0x96]]
        %v2461 = vstv %s2460
        %v2462 = vmul.f32 %v2461, %v2452
        %v2463 = vmul.f32 %v2461, %v2453
        %v2464 = vadd.f32 %v2440, %v2462
        %v2465 = vadd.f32 %v2441, %v2463
        %s2466 = sld [smem:[#allocation6 + $0xf0]]
        %v2467 = vstv %s2466
        %v2468 = vmul.f32 %v2467, %v2452
        %v2469 = vmul.f32 %v2467, %v2453
        %v2470 = vadd.f32 %v2446, %v2468
        %v2471 = vadd.f32 %v2447, %v2469
        %v2472 = vrot.slane %v1267, 1
        %v2473 = vrot.slane %v1268, 1
        %v2474 = vsel %vm551, %v2472, %v2473
        %v2475 = vsel %vm551, %v2473, %v2472
        %v2476 = vsel %vm440, %v2474, 0.0
        %v2477 = vsel %vm441, %v2475, 0.0
        %s2478 = sld [smem:[#allocation6 + $0x3d]]
        %v2479 = vstv %s2478
        %v2480 = vmul.f32 %v2479, %v2476
        %v2481 = vmul.f32 %v2479, %v2477
        %v2482 = vadd.f32 %v2458, %v2480
        %v2483 = vadd.f32 %v2459, %v2481
        %s2484 = sld [smem:[#allocation6 + $0x97]]
        %v2485 = vstv %s2484
        %v2486 = vmul.f32 %v2485, %v2476
        %v2487 = vmul.f32 %v2485, %v2477
        %v2488 = vadd.f32 %v2464, %v2486
        %v2489 = vadd.f32 %v2465, %v2487
        %s2490 = sld [smem:[#allocation6 + $0xf1]]
        %v2491 = vstv %s2490
        %v2492 = vmul.f32 %v2491, %v2476
        %v2493 = vmul.f32 %v2491, %v2477
        %v2494 = vadd.f32 %v2470, %v2492
        %v2495 = vadd.f32 %v2471, %v2493
        %v2496 = vrot.slane %v2320, 1
        %v2497 = vrot.slane %v2321, 1
        %v2498 = vsel %vm551, %v2496, %v2497
        %v2499 = vsel %vm551, %v2497, %v2496
        %v2500 = vsel %vm440, %v2498, 0.0
        %v2501 = vsel %vm441, %v2499, 0.0
        %s2502 = sld [smem:[#allocation6 + $0x3e]]
        %v2503 = vstv %s2502
        %v2504 = vmul.f32 %v2503, %v2500
        %v2505 = vmul.f32 %v2503, %v2501
        %v2506 = vadd.f32 %v2482, %v2504
        %v2507 = vadd.f32 %v2483, %v2505
        %s2508 = sld [smem:[#allocation6 + $0x98]]
        %v2509 = vstv %s2508
        %v2510 = vmul.f32 %v2509, %v2500
        %v2511 = vmul.f32 %v2509, %v2501
        %v2512 = vadd.f32 %v2488, %v2510
        %v2513 = vadd.f32 %v2489, %v2511
        %s2514 = sld [smem:[#allocation6 + $0xf2]]
        %v2515 = vstv %s2514
        %v2516 = vmul.f32 %v2515, %v2500
        %v2517 = vmul.f32 %v2515, %v2501
        %v2518 = vadd.f32 %v2494, %v2516
        %v2519 = vadd.f32 %v2495, %v2517
        %2520 = vrot.lane.b32.xlu0 %v1269, 16
        %v2521 = vpop.permute.xlu0 %2520
        %v2522 = vsel %vm463, %v2521, %v1269
        %2523 = vrot.lane.b32.xlu0 %v1270, 16
        %v2524 = vpop.permute.xlu0 %2523
        %v2525 = vsel %vm463, %v2524, %v1270
        %2526 = vrot.lane.b32.xlu0 %v2522, 16
        %v2527 = vpop.permute.xlu0 %2526
        %2528 = vrot.lane.b32.xlu0 %v2525, 16
        %v2529 = vpop.permute.xlu0 %2528
        %v2530 = vsel %vm463, %v2527, %v1269
        %v2531 = vsel %vm463, %v2529, %v1270
        %2534 = vrot.lane.b32.xlu0 %v2530, 113
        %v2535 = vpop.permute.xlu0 %2534
        %2536 = vrot.lane.b32.xlu0 %v2531, 113
        %v2537 = vpop.permute.xlu0 %2536
        %v2540 = vsel %vm439, %v2535, 0.0
        %v2541 = vsel %vm439, %v2537, 0.0
        %2542 = vrot.lane.b32.xlu0 %v2530, 127
        %v2543 = vpop.permute.xlu0 %2542
        %2544 = vrot.lane.b32.xlu0 %v2531, 127
        %v2545 = vpop.permute.xlu0 %2544
        %v2548 = vsel %vm438, %v2543, 0.0
        %v2549 = vsel %vm438, %v2545, 0.0
        %v2550 = vrot.slane %v2540, 7
        %v2551 = vrot.slane %v2541, 7
        %v2552 = vsel %vm496, %v2550, %v2551
        %v2553 = vsel %vm496, %v2551, %v2550
        %v2554 = vsel %vm442, %v2553, 0.0
        %v2555 = vsel %vm443, %v2552, 0.0
        %s2556 = sld [smem:[#allocation6 + $0x3f]]
        %v2557 = vstv %s2556
        %v2558 = vmul.f32 %v2557, %v2554
        %v2559 = vmul.f32 %v2557, %v2555
        %v2560 = vadd.f32 %v2506, %v2558
        %v2561 = vadd.f32 %v2507, %v2559
        %s2562 = sld [smem:[#allocation6 + $0x99]]
        %v2563 = vstv %s2562
        %v2564 = vmul.f32 %v2563, %v2554
        %v2565 = vmul.f32 %v2563, %v2555
        %v2566 = vadd.f32 %v2512, %v2564
        %v2567 = vadd.f32 %v2513, %v2565
        %s2568 = sld [smem:[#allocation6 + $0xf3]]
        %v2569 = vstv %s2568
        %v2570 = vmul.f32 %v2569, %v2554
        %v2571 = vmul.f32 %v2569, %v2555
        %v2572 = vadd.f32 %v2518, %v2570
        %v2573 = vadd.f32 %v2519, %v2571
        %v2574 = vrot.slane %v1269, 7
        %v2575 = vrot.slane %v1270, 7
        %v2576 = vsel %vm496, %v2574, %v2575
        %v2577 = vsel %vm496, %v2575, %v2574
        %v2578 = vsel %vm442, %v2577, 0.0
        %v2579 = vsel %vm443, %v2576, 0.0
        %s2580 = sld [smem:[#allocation6 + $0x40]]
        %v2581 = vstv %s2580
        %v2582 = vmul.f32 %v2581, %v2578
        %v2583 = vmul.f32 %v2581, %v2579
        %v2584 = vadd.f32 %v2560, %v2582
        %v2585 = vadd.f32 %v2561, %v2583
        %s2586 = sld [smem:[#allocation6 + $0x9a]]
        %v2587 = vstv %s2586
        %v2588 = vmul.f32 %v2587, %v2578
        %v2589 = vmul.f32 %v2587, %v2579
        %v2590 = vadd.f32 %v2566, %v2588
        %v2591 = vadd.f32 %v2567, %v2589
        %s2592 = sld [smem:[#allocation6 + $0xf4]]
        %v2593 = vstv %s2592
        %v2594 = vmul.f32 %v2593, %v2578
        %v2595 = vmul.f32 %v2593, %v2579
        %v2596 = vadd.f32 %v2572, %v2594
        %v2597 = vadd.f32 %v2573, %v2595
        %v2598 = vrot.slane %v2548, 7
        %v2599 = vrot.slane %v2549, 7
        %v2600 = vsel %vm496, %v2598, %v2599
        %v2601 = vsel %vm496, %v2599, %v2598
        %v2602 = vsel %vm442, %v2601, 0.0
        %v2603 = vsel %vm443, %v2600, 0.0
        %s2604 = sld [smem:[#allocation6 + $0x41]]
        %v2605 = vstv %s2604
        %v2606 = vmul.f32 %v2605, %v2602
        %v2607 = vmul.f32 %v2605, %v2603
        %v2608 = vadd.f32 %v2584, %v2606
        %v2609 = vadd.f32 %v2585, %v2607
        %s2610 = sld [smem:[#allocation6 + $0x9b]]
        %v2611 = vstv %s2610
        %v2612 = vmul.f32 %v2611, %v2602
        %v2613 = vmul.f32 %v2611, %v2603
        %v2614 = vadd.f32 %v2590, %v2612
        %v2615 = vadd.f32 %v2591, %v2613
        %s2616 = sld [smem:[#allocation6 + $0xf5]]
        %v2617 = vstv %s2616
        %v2618 = vmul.f32 %v2617, %v2602
        %v2619 = vmul.f32 %v2617, %v2603
        %v2620 = vadd.f32 %v2596, %v2618
        %v2621 = vadd.f32 %v2597, %v2619
        %s2622 = sld [smem:[#allocation6 + $0x42]]
        %v2623 = vstv %s2622
        %v2624 = vmul.f32 %v2623, %v2540
        %v2625 = vmul.f32 %v2623, %v2541
        %v2626 = vadd.f32 %v2608, %v2624
        %v2627 = vadd.f32 %v2609, %v2625
        %s2628 = sld [smem:[#allocation6 + $0x9c]]
        %v2629 = vstv %s2628
        %v2630 = vmul.f32 %v2629, %v2540
        %v2631 = vmul.f32 %v2629, %v2541
        %v2632 = vadd.f32 %v2614, %v2630
        %v2633 = vadd.f32 %v2615, %v2631
        %s2634 = sld [smem:[#allocation6 + $0xf6]]
        %v2635 = vstv %s2634
        %v2636 = vmul.f32 %v2635, %v2540
        %v2637 = vmul.f32 %v2635, %v2541
        %v2638 = vadd.f32 %v2620, %v2636
        %v2639 = vadd.f32 %v2621, %v2637
        %s2640 = sld [smem:[#allocation6 + $0x43]]
        %v2641 = vstv %s2640
        %v2642 = vmul.f32 %v2641, %v1269
        %v2643 = vmul.f32 %v2641, %v1270
        %v2644 = vadd.f32 %v2626, %v2642
        %v2645 = vadd.f32 %v2627, %v2643
        %s2646 = sld [smem:[#allocation6 + $0x9d]]
        %v2647 = vstv %s2646
        %v2648 = vmul.f32 %v2647, %v1269
        %v2649 = vmul.f32 %v2647, %v1270
        %v2650 = vadd.f32 %v2632, %v2648
        %v2651 = vadd.f32 %v2633, %v2649
        %s2652 = sld [smem:[#allocation6 + $0xf7]]
        %v2653 = vstv %s2652
        %v2654 = vmul.f32 %v2653, %v1269
        %v2655 = vmul.f32 %v2653, %v1270
        %v2656 = vadd.f32 %v2638, %v2654
        %v2657 = vadd.f32 %v2639, %v2655
        %s2658 = sld [smem:[#allocation6 + $0x44]]
        %v2659 = vstv %s2658
        %v2660 = vmul.f32 %v2659, %v2548
        %v2661 = vmul.f32 %v2659, %v2549
        %v2662 = vadd.f32 %v2644, %v2660
        %v2663 = vadd.f32 %v2645, %v2661
        %s2664 = sld [smem:[#allocation6 + $0x9e]]
        %v2665 = vstv %s2664
        %v2666 = vmul.f32 %v2665, %v2548
        %v2667 = vmul.f32 %v2665, %v2549
        %v2668 = vadd.f32 %v2650, %v2666
        %v2669 = vadd.f32 %v2651, %v2667
        %s2670 = sld [smem:[#allocation6 + $0xf8]]
        %v2671 = vstv %s2670
        %v2672 = vmul.f32 %v2671, %v2548
        %v2673 = vmul.f32 %v2671, %v2549
        %v2674 = vadd.f32 %v2656, %v2672
        %v2675 = vadd.f32 %v2657, %v2673
        %v2676 = vrot.slane %v2540, 1
        %v2677 = vrot.slane %v2541, 1
        %v2678 = vsel %vm551, %v2676, %v2677
        %v2679 = vsel %vm551, %v2677, %v2676
        %v2680 = vsel %vm440, %v2678, 0.0
        %v2681 = vsel %vm441, %v2679, 0.0
        %s2682 = sld [smem:[#allocation6 + $0x45]]
        %v2683 = vstv %s2682
        %v2684 = vmul.f32 %v2683, %v2680
        %v2685 = vmul.f32 %v2683, %v2681
        %v2686 = vadd.f32 %v2662, %v2684
        %v2687 = vadd.f32 %v2663, %v2685
        %s2688 = sld [smem:[#allocation6 + $0x9f]]
        %v2689 = vstv %s2688
        %v2690 = vmul.f32 %v2689, %v2680
        %v2691 = vmul.f32 %v2689, %v2681
        %v2692 = vadd.f32 %v2668, %v2690
        %v2693 = vadd.f32 %v2669, %v2691
        %s2694 = sld [smem:[#allocation6 + $0xf9]]
        %v2695 = vstv %s2694
        %v2696 = vmul.f32 %v2695, %v2680
        %v2697 = vmul.f32 %v2695, %v2681
        %v2698 = vadd.f32 %v2674, %v2696
        %v2699 = vadd.f32 %v2675, %v2697
        %v2700 = vrot.slane %v1269, 1
        %v2701 = vrot.slane %v1270, 1
        %v2702 = vsel %vm551, %v2700, %v2701
        %v2703 = vsel %vm551, %v2701, %v2700
        %v2704 = vsel %vm440, %v2702, 0.0
        %v2705 = vsel %vm441, %v2703, 0.0
        %s2706 = sld [smem:[#allocation6 + $0x46]]
        %v2707 = vstv %s2706
        %v2708 = vmul.f32 %v2707, %v2704
        %v2709 = vmul.f32 %v2707, %v2705
        %v2710 = vadd.f32 %v2686, %v2708
        %v2711 = vadd.f32 %v2687, %v2709
        %s2712 = sld [smem:[#allocation6 + $0xa0]]
        %v2713 = vstv %s2712
        %v2714 = vmul.f32 %v2713, %v2704
        %v2715 = vmul.f32 %v2713, %v2705
        %v2716 = vadd.f32 %v2692, %v2714
        %v2717 = vadd.f32 %v2693, %v2715
        %s2718 = sld [smem:[#allocation6 + $0xfa]]
        %v2719 = vstv %s2718
        %v2720 = vmul.f32 %v2719, %v2704
        %v2721 = vmul.f32 %v2719, %v2705
        %v2722 = vadd.f32 %v2698, %v2720
        %v2723 = vadd.f32 %v2699, %v2721
        %v2724 = vrot.slane %v2548, 1
        %v2725 = vrot.slane %v2549, 1
        %v2726 = vsel %vm551, %v2724, %v2725
        %v2727 = vsel %vm551, %v2725, %v2724
        %v2728 = vsel %vm440, %v2726, 0.0
        %v2729 = vsel %vm441, %v2727, 0.0
        %s2730 = sld [smem:[#allocation6 + $0x47]]
        %v2731 = vstv %s2730
        %v2732 = vmul.f32 %v2731, %v2728
        %v2733 = vmul.f32 %v2731, %v2729
        %v2734 = vadd.f32 %v2710, %v2732
        %v2735 = vadd.f32 %v2711, %v2733
        %s2736 = sld [smem:[#allocation6 + $0xa1]]
        %v2737 = vstv %s2736
        %v2738 = vmul.f32 %v2737, %v2728
        %v2739 = vmul.f32 %v2737, %v2729
        %v2740 = vadd.f32 %v2716, %v2738
        %v2741 = vadd.f32 %v2717, %v2739
        %s2742 = sld [smem:[#allocation6 + $0xfb]]
        %v2743 = vstv %s2742
        %v2744 = vmul.f32 %v2743, %v2728
        %v2745 = vmul.f32 %v2743, %v2729
        %v2746 = vadd.f32 %v2722, %v2744
        %v2747 = vadd.f32 %v2723, %v2745
        %2748 = vrot.lane.b32.xlu0 %v1271, 16
        %v2749 = vpop.permute.xlu0 %2748
        %v2750 = vsel %vm463, %v2749, %v1271
        %2751 = vrot.lane.b32.xlu0 %v1272, 16
        %v2752 = vpop.permute.xlu0 %2751
        %v2753 = vsel %vm463, %v2752, %v1272
        %2754 = vrot.lane.b32.xlu0 %v2750, 16
        %v2755 = vpop.permute.xlu0 %2754
        %2756 = vrot.lane.b32.xlu0 %v2753, 16
        %v2757 = vpop.permute.xlu0 %2756
        %v2758 = vsel %vm463, %v2755, %v1271
        %v2759 = vsel %vm463, %v2757, %v1272
        %2762 = vrot.lane.b32.xlu0 %v2758, 113
        %v2763 = vpop.permute.xlu0 %2762
        %2764 = vrot.lane.b32.xlu0 %v2759, 113
        %v2765 = vpop.permute.xlu0 %2764
        %v2768 = vsel %vm439, %v2763, 0.0
        %v2769 = vsel %vm439, %v2765, 0.0
        %2770 = vrot.lane.b32.xlu0 %v2758, 127
        %v2771 = vpop.permute.xlu0 %2770
        %2772 = vrot.lane.b32.xlu0 %v2759, 127
        %v2773 = vpop.permute.xlu0 %2772
        %v2776 = vsel %vm438, %v2771, 0.0
        %v2777 = vsel %vm438, %v2773, 0.0
        %v2778 = vrot.slane %v2768, 7
        %v2779 = vrot.slane %v2769, 7
        %v2780 = vsel %vm496, %v2778, %v2779
        %v2781 = vsel %vm496, %v2779, %v2778
        %v2782 = vsel %vm442, %v2781, 0.0
        %v2783 = vsel %vm443, %v2780, 0.0
        %s2784 = sld [smem:[#allocation6 + $0x48]]
        %v2785 = vstv %s2784
        %v2786 = vmul.f32 %v2785, %v2782
        %v2787 = vmul.f32 %v2785, %v2783
        %v2788 = vadd.f32 %v2734, %v2786
        %v2789 = vadd.f32 %v2735, %v2787
        %s2790 = sld [smem:[#allocation6 + $0xa2]]
        %v2791 = vstv %s2790
        %v2792 = vmul.f32 %v2791, %v2782
        %v2793 = vmul.f32 %v2791, %v2783
        %v2794 = vadd.f32 %v2740, %v2792
        %v2795 = vadd.f32 %v2741, %v2793
        %s2796 = sld [smem:[#allocation6 + $0xfc]]
        %v2797 = vstv %s2796
        %v2798 = vmul.f32 %v2797, %v2782
        %v2799 = vmul.f32 %v2797, %v2783
        %v2800 = vadd.f32 %v2746, %v2798
        %v2801 = vadd.f32 %v2747, %v2799
        %v2802 = vrot.slane %v1271, 7
        %v2803 = vrot.slane %v1272, 7
        %v2804 = vsel %vm496, %v2802, %v2803
        %v2805 = vsel %vm496, %v2803, %v2802
        %v2806 = vsel %vm442, %v2805, 0.0
        %v2807 = vsel %vm443, %v2804, 0.0
        %s2808 = sld [smem:[#allocation6 + $0x49]]
        %v2809 = vstv %s2808
        %v2810 = vmul.f32 %v2809, %v2806
        %v2811 = vmul.f32 %v2809, %v2807
        %v2812 = vadd.f32 %v2788, %v2810
        %v2813 = vadd.f32 %v2789, %v2811
        %s2814 = sld [smem:[#allocation6 + $0xa3]]
        %v2815 = vstv %s2814
        %v2816 = vmul.f32 %v2815, %v2806
        %v2817 = vmul.f32 %v2815, %v2807
        %v2818 = vadd.f32 %v2794, %v2816
        %v2819 = vadd.f32 %v2795, %v2817
        %s2820 = sld [smem:[#allocation6 + $0xfd]]
        %v2821 = vstv %s2820
        %v2822 = vmul.f32 %v2821, %v2806
        %v2823 = vmul.f32 %v2821, %v2807
        %v2824 = vadd.f32 %v2800, %v2822
        %v2825 = vadd.f32 %v2801, %v2823
        %v2826 = vrot.slane %v2776, 7
        %v2827 = vrot.slane %v2777, 7
        %v2828 = vsel %vm496, %v2826, %v2827
        %v2829 = vsel %vm496, %v2827, %v2826
        %v2830 = vsel %vm442, %v2829, 0.0
        %v2831 = vsel %vm443, %v2828, 0.0
        %s2832 = sld [smem:[#allocation6 + $0x4a]]
        %v2833 = vstv %s2832
        %v2834 = vmul.f32 %v2833, %v2830
        %v2835 = vmul.f32 %v2833, %v2831
        %v2836 = vadd.f32 %v2812, %v2834
        %v2837 = vadd.f32 %v2813, %v2835
        %s2838 = sld [smem:[#allocation6 + $0xa4]]
        %v2839 = vstv %s2838
        %v2840 = vmul.f32 %v2839, %v2830
        %v2841 = vmul.f32 %v2839, %v2831
        %v2842 = vadd.f32 %v2818, %v2840
        %v2843 = vadd.f32 %v2819, %v2841
        %s2844 = sld [smem:[#allocation6 + $0xfe]]
        %v2845 = vstv %s2844
        %v2846 = vmul.f32 %v2845, %v2830
        %v2847 = vmul.f32 %v2845, %v2831
        %v2848 = vadd.f32 %v2824, %v2846
        %v2849 = vadd.f32 %v2825, %v2847
        %s2850 = sld [smem:[#allocation6 + $0x4b]]
        %v2851 = vstv %s2850
        %v2852 = vmul.f32 %v2851, %v2768
        %v2853 = vmul.f32 %v2851, %v2769
        %v2854 = vadd.f32 %v2836, %v2852
        %v2855 = vadd.f32 %v2837, %v2853
        %s2856 = sld [smem:[#allocation6 + $0xa5]]
        %v2857 = vstv %s2856
        %v2858 = vmul.f32 %v2857, %v2768
        %v2859 = vmul.f32 %v2857, %v2769
        %v2860 = vadd.f32 %v2842, %v2858
        %v2861 = vadd.f32 %v2843, %v2859
        %s2862 = sld [smem:[#allocation6 + $0xff]]
        %v2863 = vstv %s2862
        %v2864 = vmul.f32 %v2863, %v2768
        %v2865 = vmul.f32 %v2863, %v2769
        %v2866 = vadd.f32 %v2848, %v2864
        %v2867 = vadd.f32 %v2849, %v2865
        %s2868 = sld [smem:[#allocation6 + $0x4c]]
        %v2869 = vstv %s2868
        %v2870 = vmul.f32 %v2869, %v1271
        %v2871 = vmul.f32 %v2869, %v1272
        %v2872 = vadd.f32 %v2854, %v2870
        %v2873 = vadd.f32 %v2855, %v2871
        %s2874 = sld [smem:[#allocation6 + $0xa6]]
        %v2875 = vstv %s2874
        %v2876 = vmul.f32 %v2875, %v1271
        %v2877 = vmul.f32 %v2875, %v1272
        %v2878 = vadd.f32 %v2860, %v2876
        %v2879 = vadd.f32 %v2861, %v2877
        %s2880 = sld [smem:[#allocation6 + $0x100]]
        %v2881 = vstv %s2880
        %v2882 = vmul.f32 %v2881, %v1271
        %v2883 = vmul.f32 %v2881, %v1272
        %v2884 = vadd.f32 %v2866, %v2882
        %v2885 = vadd.f32 %v2867, %v2883
        %s2886 = sld [smem:[#allocation6 + $0x4d]]
        %v2887 = vstv %s2886
        %v2888 = vmul.f32 %v2887, %v2776
        %v2889 = vmul.f32 %v2887, %v2777
        %v2890 = vadd.f32 %v2872, %v2888
        %v2891 = vadd.f32 %v2873, %v2889
        %s2892 = sld [smem:[#allocation6 + $0xa7]]
        %v2893 = vstv %s2892
        %v2894 = vmul.f32 %v2893, %v2776
        %v2895 = vmul.f32 %v2893, %v2777
        %v2896 = vadd.f32 %v2878, %v2894
        %v2897 = vadd.f32 %v2879, %v2895
        %s2898 = sld [smem:[#allocation6 + $0x101]]
        %v2899 = vstv %s2898
        %v2900 = vmul.f32 %v2899, %v2776
        %v2901 = vmul.f32 %v2899, %v2777
        %v2902 = vadd.f32 %v2884, %v2900
        %v2903 = vadd.f32 %v2885, %v2901
        %v2904 = vrot.slane %v2768, 1
        %v2905 = vrot.slane %v2769, 1
        %v2906 = vsel %vm551, %v2904, %v2905
        %v2907 = vsel %vm551, %v2905, %v2904
        %v2908 = vsel %vm440, %v2906, 0.0
        %v2909 = vsel %vm441, %v2907, 0.0
        %s2910 = sld [smem:[#allocation6 + $0x4e]]
        %v2911 = vstv %s2910
        %v2912 = vmul.f32 %v2911, %v2908
        %v2913 = vmul.f32 %v2911, %v2909
        %v2914 = vadd.f32 %v2890, %v2912
        %v2915 = vadd.f32 %v2891, %v2913
        %s2916 = sld [smem:[#allocation6 + $0xa8]]
        %v2917 = vstv %s2916
        %v2918 = vmul.f32 %v2917, %v2908
        %v2919 = vmul.f32 %v2917, %v2909
        %v2920 = vadd.f32 %v2896, %v2918
        %v2921 = vadd.f32 %v2897, %v2919
        %s2922 = sld [smem:[#allocation6 + $0x102]]
        %v2923 = vstv %s2922
        %v2924 = vmul.f32 %v2923, %v2908
        %v2925 = vmul.f32 %v2923, %v2909
        %v2926 = vadd.f32 %v2902, %v2924
        %v2927 = vadd.f32 %v2903, %v2925
        %v2928 = vrot.slane %v1271, 1
        %v2929 = vrot.slane %v1272, 1
        %v2930 = vsel %vm551, %v2928, %v2929
        %v2931 = vsel %vm551, %v2929, %v2928
        %v2932 = vsel %vm440, %v2930, 0.0
        %v2933 = vsel %vm441, %v2931, 0.0
        %s2934 = sld [smem:[#allocation6 + $0x4f]]
        %v2935 = vstv %s2934
        %v2936 = vmul.f32 %v2935, %v2932
        %v2937 = vmul.f32 %v2935, %v2933
        %v2938 = vadd.f32 %v2914, %v2936
        %v2939 = vadd.f32 %v2915, %v2937
        %s2940 = sld [smem:[#allocation6 + $0xa9]]
        %v2941 = vstv %s2940
        %v2942 = vmul.f32 %v2941, %v2932
        %v2943 = vmul.f32 %v2941, %v2933
        %v2944 = vadd.f32 %v2920, %v2942
        %v2945 = vadd.f32 %v2921, %v2943
        %s2946 = sld [smem:[#allocation6 + $0x103]]
        %v2947 = vstv %s2946
        %v2948 = vmul.f32 %v2947, %v2932
        %v2949 = vmul.f32 %v2947, %v2933
        %v2950 = vadd.f32 %v2926, %v2948
        %v2951 = vadd.f32 %v2927, %v2949
        %v2952 = vrot.slane %v2776, 1
        %v2953 = vrot.slane %v2777, 1
        %v2954 = vsel %vm551, %v2952, %v2953
        %v2955 = vsel %vm551, %v2953, %v2952
        %v2956 = vsel %vm440, %v2954, 0.0
        %v2957 = vsel %vm441, %v2955, 0.0
        %s2958 = sld [smem:[#allocation6 + $0x50]]
        %v2959 = vstv %s2958
        %v2960 = vmul.f32 %v2959, %v2956
        %v2961 = vmul.f32 %v2959, %v2957
        %v2962 = vadd.f32 %v2938, %v2960
        %v2963 = vadd.f32 %v2939, %v2961
        %s2964 = sld [smem:[#allocation6 + $0xaa]]
        %v2965 = vstv %s2964
        %v2966 = vmul.f32 %v2965, %v2956
        %v2967 = vmul.f32 %v2965, %v2957
        %v2968 = vadd.f32 %v2944, %v2966
        %v2969 = vadd.f32 %v2945, %v2967
        %s2970 = sld [smem:[#allocation6 + $0x104]]
        %v2971 = vstv %s2970
        %v2972 = vmul.f32 %v2971, %v2956
        %v2973 = vmul.f32 %v2971, %v2957
        %v2974 = vadd.f32 %v2950, %v2972
        %v2975 = vadd.f32 %v2951, %v2973
        %2976 = vrot.lane.b32.xlu0 %v1309, 16
        %v2977 = vpop.permute.xlu0 %2976
        %v2978 = vsel %vm463, %v2977, %v1309
        %2979 = vrot.lane.b32.xlu0 %v1310, 16
        %v2980 = vpop.permute.xlu0 %2979
        %v2981 = vsel %vm463, %v2980, %v1310
        %2982 = vrot.lane.b32.xlu0 %v2978, 16
        %v2983 = vpop.permute.xlu0 %2982
        %2984 = vrot.lane.b32.xlu0 %v2981, 16
        %v2985 = vpop.permute.xlu0 %2984
        %v2986 = vsel %vm463, %v2983, %v1309
        %v2987 = vsel %vm463, %v2985, %v1310
        %2990 = vrot.lane.b32.xlu0 %v2986, 113
        %v2991 = vpop.permute.xlu0 %2990
        %2992 = vrot.lane.b32.xlu0 %v2987, 113
        %v2993 = vpop.permute.xlu0 %2992
        %v2996 = vsel %vm439, %v2991, 0.0
        %v2997 = vsel %vm439, %v2993, 0.0
        %2998 = vrot.lane.b32.xlu0 %v2986, 127
        %v2999 = vpop.permute.xlu0 %2998
        %3000 = vrot.lane.b32.xlu0 %v2987, 127
        %v3001 = vpop.permute.xlu0 %3000
        %v3004 = vsel %vm438, %v2999, 0.0
        %v3005 = vsel %vm438, %v3001, 0.0
        %v3006 = vrot.slane %v2996, 7
        %v3007 = vrot.slane %v2997, 7
        %v3008 = vsel %vm496, %v3006, %v3007
        %v3009 = vsel %vm496, %v3007, %v3006
        %v3010 = vsel %vm442, %v3009, 0.0
        %v3011 = vsel %vm443, %v3008, 0.0
        %s3012 = sld [smem:[#allocation6 + $0x51]]
        %v3013 = vstv %s3012
        %v3014 = vmul.f32 %v3013, %v3010
        %v3015 = vmul.f32 %v3013, %v3011
        %v3016 = vadd.f32 %v2962, %v3014
        %v3017 = vadd.f32 %v2963, %v3015
        %s3018 = sld [smem:[#allocation6 + $0xab]]
        %v3019 = vstv %s3018
        %v3020 = vmul.f32 %v3019, %v3010
        %v3021 = vmul.f32 %v3019, %v3011
        %v3022 = vadd.f32 %v2968, %v3020
        %v3023 = vadd.f32 %v2969, %v3021
        %s3024 = sld [smem:[#allocation6 + $0x105]]
        %v3025 = vstv %s3024
        %v3026 = vmul.f32 %v3025, %v3010
        %v3027 = vmul.f32 %v3025, %v3011
        %v3028 = vadd.f32 %v2974, %v3026
        %v3029 = vadd.f32 %v2975, %v3027
        %v3030 = vrot.slane %v1309, 7
        %v3031 = vrot.slane %v1310, 7
        %v3032 = vsel %vm496, %v3030, %v3031
        %v3033 = vsel %vm496, %v3031, %v3030
        %v3034 = vsel %vm442, %v3033, 0.0
        %v3035 = vsel %vm443, %v3032, 0.0
        %s3036 = sld [smem:[#allocation6 + $0x52]]
        %v3037 = vstv %s3036
        %v3038 = vmul.f32 %v3037, %v3034
        %v3039 = vmul.f32 %v3037, %v3035
        %v3040 = vadd.f32 %v3016, %v3038
        %v3041 = vadd.f32 %v3017, %v3039
        %s3042 = sld [smem:[#allocation6 + $0xac]]
        %v3043 = vstv %s3042
        %v3044 = vmul.f32 %v3043, %v3034
        %v3045 = vmul.f32 %v3043, %v3035
        %v3046 = vadd.f32 %v3022, %v3044
        %v3047 = vadd.f32 %v3023, %v3045
        %s3048 = sld [smem:[#allocation6 + $0x106]]
        %v3049 = vstv %s3048
        %v3050 = vmul.f32 %v3049, %v3034
        %v3051 = vmul.f32 %v3049, %v3035
        %v3052 = vadd.f32 %v3028, %v3050
        %v3053 = vadd.f32 %v3029, %v3051
        %v3054 = vrot.slane %v3004, 7
        %v3055 = vrot.slane %v3005, 7
        %v3056 = vsel %vm496, %v3054, %v3055
        %v3057 = vsel %vm496, %v3055, %v3054
        %v3058 = vsel %vm442, %v3057, 0.0
        %v3059 = vsel %vm443, %v3056, 0.0
        %s3060 = sld [smem:[#allocation6 + $0x53]]
        %v3061 = vstv %s3060
        %v3062 = vmul.f32 %v3061, %v3058
        %v3063 = vmul.f32 %v3061, %v3059
        %v3064 = vadd.f32 %v3040, %v3062
        %v3065 = vadd.f32 %v3041, %v3063
        %s3066 = sld [smem:[#allocation6 + $0xad]]
        %v3067 = vstv %s3066
        %v3068 = vmul.f32 %v3067, %v3058
        %v3069 = vmul.f32 %v3067, %v3059
        %v3070 = vadd.f32 %v3046, %v3068
        %v3071 = vadd.f32 %v3047, %v3069
        %s3072 = sld [smem:[#allocation6 + $0x107]]
        %v3073 = vstv %s3072
        %v3074 = vmul.f32 %v3073, %v3058
        %v3075 = vmul.f32 %v3073, %v3059
        %v3076 = vadd.f32 %v3052, %v3074
        %v3077 = vadd.f32 %v3053, %v3075
        %s3078 = sld [smem:[#allocation6 + $0x54]]
        %v3079 = vstv %s3078
        %v3080 = vmul.f32 %v3079, %v2996
        %v3081 = vmul.f32 %v3079, %v2997
        %v3082 = vadd.f32 %v3064, %v3080
        %v3083 = vadd.f32 %v3065, %v3081
        %s3084 = sld [smem:[#allocation6 + $0xae]]
        %v3085 = vstv %s3084
        %v3086 = vmul.f32 %v3085, %v2996
        %v3087 = vmul.f32 %v3085, %v2997
        %v3088 = vadd.f32 %v3070, %v3086
        %v3089 = vadd.f32 %v3071, %v3087
        %s3090 = sld [smem:[#allocation6 + $0x108]]
        %v3091 = vstv %s3090
        %v3092 = vmul.f32 %v3091, %v2996
        %v3093 = vmul.f32 %v3091, %v2997
        %v3094 = vadd.f32 %v3076, %v3092
        %v3095 = vadd.f32 %v3077, %v3093
        %s3096 = sld [smem:[#allocation6 + $0x55]]
        %v3097 = vstv %s3096
        %v3098 = vmul.f32 %v3097, %v1309
        %v3099 = vmul.f32 %v3097, %v1310
        %v3100 = vadd.f32 %v3082, %v3098
        %v3101 = vadd.f32 %v3083, %v3099
        %s3102 = sld [smem:[#allocation6 + $0xaf]]
        %v3103 = vstv %s3102
        %v3104 = vmul.f32 %v3103, %v1309
        %v3105 = vmul.f32 %v3103, %v1310
        %v3106 = vadd.f32 %v3088, %v3104
        %v3107 = vadd.f32 %v3089, %v3105
        %s3108 = sld [smem:[#allocation6 + $0x109]]
        %v3109 = vstv %s3108
        %v3110 = vmul.f32 %v3109, %v1309
        %v3111 = vmul.f32 %v3109, %v1310
        %v3112 = vadd.f32 %v3094, %v3110
        %v3113 = vadd.f32 %v3095, %v3111
        %s3114 = sld [smem:[#allocation6 + $0x56]]
        %v3115 = vstv %s3114
        %v3116 = vmul.f32 %v3115, %v3004
        %v3117 = vmul.f32 %v3115, %v3005
        %v3118 = vadd.f32 %v3100, %v3116
        %v3119 = vadd.f32 %v3101, %v3117
        %s3120 = sld [smem:[#allocation6 + $0xb0]]
        %v3121 = vstv %s3120
        %v3122 = vmul.f32 %v3121, %v3004
        %v3123 = vmul.f32 %v3121, %v3005
        %v3124 = vadd.f32 %v3106, %v3122
        %v3125 = vadd.f32 %v3107, %v3123
        %s3126 = sld [smem:[#allocation6 + $0x10a]]
        %v3127 = vstv %s3126
        %v3128 = vmul.f32 %v3127, %v3004
        %v3129 = vmul.f32 %v3127, %v3005
        %v3130 = vadd.f32 %v3112, %v3128
        %v3131 = vadd.f32 %v3113, %v3129
        %v3132 = vrot.slane %v2996, 1
        %v3133 = vrot.slane %v2997, 1
        %v3134 = vsel %vm551, %v3132, %v3133
        %v3135 = vsel %vm551, %v3133, %v3132
        %v3136 = vsel %vm440, %v3134, 0.0
        %v3137 = vsel %vm441, %v3135, 0.0
        %s3138 = sld [smem:[#allocation6 + $0x57]]
        %v3139 = vstv %s3138
        %v3140 = vmul.f32 %v3139, %v3136
        %v3141 = vmul.f32 %v3139, %v3137
        %v3142 = vadd.f32 %v3118, %v3140
        %v3143 = vadd.f32 %v3119, %v3141
        %s3144 = sld [smem:[#allocation6 + $0xb1]]
        %v3145 = vstv %s3144
        %v3146 = vmul.f32 %v3145, %v3136
        %v3147 = vmul.f32 %v3145, %v3137
        %v3148 = vadd.f32 %v3124, %v3146
        %v3149 = vadd.f32 %v3125, %v3147
        %s3150 = sld [smem:[#allocation6 + $0x10b]]
        %v3151 = vstv %s3150
        %v3152 = vmul.f32 %v3151, %v3136
        %v3153 = vmul.f32 %v3151, %v3137
        %v3154 = vadd.f32 %v3130, %v3152
        %v3155 = vadd.f32 %v3131, %v3153
        %v3156 = vrot.slane %v1309, 1
        %v3157 = vrot.slane %v1310, 1
        %v3158 = vsel %vm551, %v3156, %v3157
        %v3159 = vsel %vm551, %v3157, %v3156
        %v3160 = vsel %vm440, %v3158, 0.0
        %v3161 = vsel %vm441, %v3159, 0.0
        %s3162 = sld [smem:[#allocation6 + $0x58]]
        %v3163 = vstv %s3162
        %v3164 = vmul.f32 %v3163, %v3160
        %v3165 = vmul.f32 %v3163, %v3161
        %v3166 = vadd.f32 %v3142, %v3164
        %v3167 = vadd.f32 %v3143, %v3165
        %s3168 = sld [smem:[#allocation6 + $0xb2]]
        %v3169 = vstv %s3168
        %v3170 = vmul.f32 %v3169, %v3160
        %v3171 = vmul.f32 %v3169, %v3161
        %v3172 = vadd.f32 %v3148, %v3170
        %v3173 = vadd.f32 %v3149, %v3171
        %s3174 = sld [smem:[#allocation6 + $0x10c]]
        %v3175 = vstv %s3174
        %v3176 = vmul.f32 %v3175, %v3160
        %v3177 = vmul.f32 %v3175, %v3161
        %v3178 = vadd.f32 %v3154, %v3176
        %v3179 = vadd.f32 %v3155, %v3177
        %v3180 = vrot.slane %v3004, 1
        %v3181 = vrot.slane %v3005, 1
        %v3182 = vsel %vm551, %v3180, %v3181
        %v3183 = vsel %vm551, %v3181, %v3180
        %v3184 = vsel %vm440, %v3182, 0.0
        %v3185 = vsel %vm441, %v3183, 0.0
        %s3186 = sld [smem:[#allocation6 + $0x59]]
        %v3187 = vstv %s3186
        %v3188 = vmul.f32 %v3187, %v3184
        %v3189 = vmul.f32 %v3187, %v3185
        %v3190 = vadd.f32 %v3166, %v3188
        %v3191 = vadd.f32 %v3167, %v3189
        %s3192 = sld [smem:[#allocation6 + $0xb3]]
        %v3193 = vstv %s3192
        %v3194 = vmul.f32 %v3193, %v3184
        %v3195 = vmul.f32 %v3193, %v3185
        %v3196 = vadd.f32 %v3172, %v3194
        %v3197 = vadd.f32 %v3173, %v3195
        %s3198 = sld [smem:[#allocation6 + $0x10d]]
        %v3199 = vstv %s3198
        %v3200 = vmul.f32 %v3199, %v3184
        %v3201 = vmul.f32 %v3199, %v3185
        %v3202 = vadd.f32 %v3178, %v3200
        %v3203 = vadd.f32 %v3179, %v3201
        %v3204 = vxor.u32 %v3190, 2147483648
        %v3205 = vxor.u32 %v3191, 2147483648
        %v3206 = vmul.f32 %v3204, 1.442695
        %v3207 = vpow.pop %v3206
        %v3208 = vmul.f32 %v3205, 1.442695
        %v3209 = vpow.pop %v3208
        %v3210 = vadd.f32 %v3207, 1.0
        %v3211 = vadd.f32 %v3209, 1.0
        %v3212 = vrcp.pop %v3210
        %v3213 = vmul.f32 1.0, %v3212
        %v3214 = vrcp.pop %v3211
        %v3215 = vmul.f32 1.0, %v3214
        %3216 = vst.msk [vmem:[%s394] sm:$0xff] %vm1186, %v3213
        %3217 = vst.msk [vmem:[%s394 + $0x8] sm:$0xff] %vm1186, %v3215
        %v3218 = vxor.u32 %v3196, 2147483648
        %v3219 = vxor.u32 %v3197, 2147483648
        %v3220 = vmul.f32 %v3218, 1.442695
        %v3221 = vpow.pop %v3220
        %v3222 = vmul.f32 %v3219, 1.442695
        %v3223 = vpow.pop %v3222
        %v3224 = vadd.f32 %v3221, 1.0
        %v3225 = vadd.f32 %v3223, 1.0
        %v3226 = vrcp.pop %v3224
        %v3227 = vmul.f32 1.0, %v3226
        %v3228 = vrcp.pop %v3225
        %v3229 = vmul.f32 1.0, %v3228
        %s3230 = scalar_lea.vmem %s394, 16 [#allocation11]
        %3231 = vst.msk [vmem:[%s3230] sm:$0xff] %vm1186, %v3227
        %3232 = vst.msk [vmem:[%s3230 + $0x8] sm:$0xff] %vm1186, %v3229
        %v3233 = vxor.u32 %v3202, 2147483648
        %v3234 = vxor.u32 %v3203, 2147483648
        %v3235 = vmul.f32 %v3233, 1.442695
        %v3236 = vpow.pop %v3235
        %v3237 = vmul.f32 %v3234, 1.442695
        %v3238 = vpow.pop %v3237
        %v3239 = vadd.f32 %v3236, 1.0
        %v3240 = vadd.f32 %v3238, 1.0
        %v3241 = vrcp.pop %v3239
        %v3242 = vmul.f32 1.0, %v3241
        %v3243 = vrcp.pop %v3240
        %v3244 = vmul.f32 1.0, %v3243
        %s3245 = scalar_lea.vmem %s394, 32 [#allocation11]
        %3246 = vst.msk [vmem:[%s3245] sm:$0xff] %vm1186, %v3242
        %3247 = vst.msk [vmem:[%s3245 + $0x8] sm:$0xff] %vm1186, %v3244
        %s3248 = sand.u32 %s136, 1
        %s3249 = scalar_lea.sflag [#allocation4], %s3248
        %s3250 = sand.u32 %s136, 1
        %s3251 = smul.addr %s3250, 48
        %s3252 = scalar_lea.vmem [#allocation11], %s3251
        %p3253 = scmp.lt.s32.totalorder %s34, 1
        %s3254 = scalar_select %p3253, %s34, 1
        %s3255 = smul.addr %s3254, 6
        %s3256 = smul.addr %s3255, 8
        %s3257 = scalar_lea.vmem %s5, %s3256
        %s3258 = sand.u32 %s34, 1
        %s3259 = scalar_lea.sflag [#allocation13], %s3258
        %s3260 = sand.u32 %s188, 1
        %s3261 = smul.addr %s3260, 48
        %s3262 = scalar_lea.vmem [#allocation12], %s3261
        %s3263 = sand.u32 %s34, 1
        %s3264 = scalar_lea.sflag [#allocation13], %s3263
        %s3265 = sand.u32 %s214, 1
        %s3266 = smul.addr %s3265, 16
        %s3267 = scalar_lea.vmem [#allocation14], %s3266
        %p3268 = scmp.lt.s32.totalorder %s34, 1
        %s3269 = scalar_select %p3268, %s34, 1
        %s3270 = smul.addr %s3269, 2
        %s3271 = smul.addr %s3270, 8
        %s3272 = scalar_lea.vmem %s8, %s3271
        // Predicated region
        $region53: #{_lambda_.1} parent=35 // pred_check
          %p3273 = pneg %p146
        $region54: #{_lambda_.1} parent=35 // pred_check_branch
          %3275 = sbr.rel (%p3273) target = $region56
        $region55: #{_lambda_.1} parent=35 // pred_region
          %s3277 = ssub.s32 768, 768
          %3278 = vsyncadd %s3249, %s3277
          %s3279 = smul.addr %s34, 6
          %s3280 = smul.addr %s3279, 128
          %s3281 = scalar_lea.hbm %s4, %s3280
          %s3282 = sshll.u32 %s3252, 4
          %s3283 = int_to_ptr.vmem [resolvable:$true] %s3282
          %3288 = dma.vmem_to_hbm [thread:$0]  %s3283, 768, %s3281, %s3249, 128, 128, 8
        $region56: #{_lambda_.1} parent=35 // pred_fallthru
          _
        // Predicated region
        $region57: #{_lambda_.1} parent=35 // pred_check
          %p3289 = pneg %p172
        $region58: #{_lambda_.1} parent=35 // pred_check_branch
          %3291 = sbr.rel (%p3289) target = $region60
        $region59: #{_lambda_.1} parent=35 // pred_region
          _
        $region60: #{_lambda_.1} parent=35 // pred_fallthru
          _
        // Predicated region
        $region61: #{_lambda_.1} parent=35 // pred_check
          %p3292 = pneg %p198
        $region62: #{_lambda_.1} parent=35 // pred_check_branch
          %3294 = sbr.rel (%p3292) target = $region64
        $region63: #{_lambda_.1} parent=35 // pred_region
          %s3296 = ssub.s32 768, 768
          %3297 = vsyncadd %s3259, %s3296
          %s3298 = smul.addr %s34, 6
          %s3299 = smul.addr %s3298, 128
          %s3300 = scalar_lea.hbm %s6, %s3299
          %s3301 = sshll.u32 %s3262, 4
          %s3302 = int_to_ptr.vmem [resolvable:$true] %s3301
          %3307 = dma.vmem_to_hbm [thread:$0]  %s3302, 768, %s3300, %s3259, 128, 128, 8
        $region64: #{_lambda_.1} parent=35 // pred_fallthru
          _
        // Predicated region
        $region65: #{_lambda_.1} parent=35 // pred_check
          %p3308 = pneg %p224
        $region66: #{_lambda_.1} parent=35 // pred_check_branch
          %3310 = sbr.rel (%p3308) target = $region68
        $region67: #{_lambda_.1} parent=35 // pred_region
          %s3312 = ssub.s32 256, 256
          %3313 = vsyncadd %s3264, %s3312
          %s3314 = smul.addr %s34, 2
          %s3315 = smul.addr %s3314, 128
          %s3316 = scalar_lea.hbm %s7, %s3315
          %s3317 = sshll.u32 %s3267, 4
          %s3318 = int_to_ptr.vmem [resolvable:$true] %s3317
          %3323 = dma.vmem_to_hbm [thread:$0]  %s3318, 256, %s3316, %s3264, 128, 128, 8
        $region68: #{_lambda_.1} parent=35 // pred_fallthru
          _
        // Predicated region
        $region69: #{_lambda_.1} parent=35 // pred_check
          %p3324 = pneg %p250
        $region70: #{_lambda_.1} parent=35 // pred_check_branch
          %3326 = sbr.rel (%p3324) target = $region72
        $region71: #{_lambda_.1} parent=35 // pred_region
          _
        $region72: #{_lambda_.1} parent=35 // pred_fallthru
          _
      $region36: #{_lambda_.1} parent=5 // pred_fallthru
        _
      %p3327 = scmp.le.s32.totalorder 2, %s29
      // Predicated region
      $region73: #{_lambda_.1} parent=5 // pred_check
        %p3328 = pneg %p3327
      $region74: #{_lambda_.1} parent=5 // pred_check_branch
        %3330 = sbr.rel (%p3328) target = $region76
      $region75: #{_lambda_.1} parent=5 // pred_region
        %s3331 = ssub.s32 %s29, 2
        // Predicated region
        $region77: #{_lambda_.1} parent=75 // pred_check
          %p3332 = pneg %p152
        $region78: #{_lambda_.1} parent=75 // pred_check_branch
          %3334 = sbr.rel (%p3332) target = $region80
        $region79: #{_lambda_.1} parent=75 // pred_region
          %s3335 = sand.u32 %s137, 1
          %s3336 = scalar_lea.sflag [#allocation4], %s3335
          %s3337 = sand.u32 %s137, 1
          %s3338 = smul.addr %s3337, 48
          %s3339 = scalar_lea.vmem [#allocation11], %s3338
          %3340 = dma.done %s3336, 768
        $region80: #{_lambda_.1} parent=75 // pred_fallthru
          _
        // Predicated region
        $region81: #{_lambda_.1} parent=75 // pred_check
          %p3341 = pneg %p178
        $region82: #{_lambda_.1} parent=75 // pred_check_branch
          %3343 = sbr.rel (%p3341) target = $region84
        $region83: #{_lambda_.1} parent=75 // pred_region
          %p3344 = scmp.lt.s32.totalorder %s35, 1
          %s3345 = scalar_select %p3344, %s35, 1
          %s3346 = smul.addr %s3345, 6
          %s3347 = smul.addr %s3346, 8
          %s3348 = scalar_lea.vmem %s5, %s3347
        $region84: #{_lambda_.1} parent=75 // pred_fallthru
          _
        // Predicated region
        $region85: #{_lambda_.1} parent=75 // pred_check
          %p3349 = pneg %p204
        $region86: #{_lambda_.1} parent=75 // pred_check_branch
          %3351 = sbr.rel (%p3349) target = $region88
        $region87: #{_lambda_.1} parent=75 // pred_region
          %s3352 = sand.u32 %s35, 1
          %s3353 = scalar_lea.sflag [#allocation13], %s3352
          %s3354 = sand.u32 %s189, 1
          %s3355 = smul.addr %s3354, 48
          %s3356 = scalar_lea.vmem [#allocation12], %s3355
          %3357 = dma.done %s3353, 768
        $region88: #{_lambda_.1} parent=75 // pred_fallthru
          _
        // Predicated region
        $region89: #{_lambda_.1} parent=75 // pred_check
          %p3358 = pneg %p230
        $region90: #{_lambda_.1} parent=75 // pred_check_branch
          %3360 = sbr.rel (%p3358) target = $region92
        $region91: #{_lambda_.1} parent=75 // pred_region
          %s3361 = sand.u32 %s35, 1
          %s3362 = scalar_lea.sflag [#allocation13], %s3361
          %s3363 = sand.u32 %s215, 1
          %s3364 = smul.addr %s3363, 16
          %s3365 = scalar_lea.vmem [#allocation14], %s3364
          %3366 = dma.done %s3362, 256
        $region92: #{_lambda_.1} parent=75 // pred_fallthru
          _
        // Predicated region
        $region93: #{_lambda_.1} parent=75 // pred_check
          %p3367 = pneg %p256
        $region94: #{_lambda_.1} parent=75 // pred_check_branch
          %3369 = sbr.rel (%p3367) target = $region96
        $region95: #{_lambda_.1} parent=75 // pred_region
          %p3370 = scmp.lt.s32.totalorder %s35, 1
          %s3371 = scalar_select %p3370, %s35, 1
          %s3372 = smul.addr %s3371, 2
          %s3373 = smul.addr %s3372, 8
          %s3374 = scalar_lea.vmem %s8, %s3373
        $region96: #{_lambda_.1} parent=75 // pred_fallthru
          _
      $region76: #{_lambda_.1} parent=5 // pred_fallthru
        _
    $region6: #{_lambda_.1} parent=1 // loop_footer
      %s33 = sadd.s32 1, %s29
    $region7: #{_lambda_.1} parent=1 // loop_footer_branch
      %28 = sbr.rel target = $region3
    $region8: #{_lambda_.1} parent=1 // loop_exit
      _
    %3375 = vsyncpa [#allocation3], 1
    %s3376 = scalar_lea.sflag [#allocation3], 1
    %3377 = vsyncpa %s3376, 1
    %3378 = vsyncpa [#allocation10], 1
    %s3379 = scalar_lea.sflag [#allocation10], 1
    %3380 = vsyncpa %s3379, 1
    %3381 = vsyncpa [#allocation4], 1
    %s3382 = scalar_lea.sflag [#allocation4], 1
    %3383 = vsyncpa %s3382, 1
    %3384 = vsyncpa [#allocation13], 1
    %s3385 = scalar_lea.sflag [#allocation13], 1
    %3386 = vsyncpa %s3385, 1
    %3387 = vsyncpa [#allocation5], 1
    %s3388 = scalar_lea.sflag [#allocation5], 1
    %3389 = vsyncpa %s3388, 1
    %3390 = vsyncpa [#allocation7], 1

</llo_original>
